<compile_context>
chip_gen: v7x
topology: tpu7x:2x2x1
jax: 0.10.0
libtpu: 0.0.40
codegen_flags: <defaults>
</compile_context>

<pallas_src>
import functools

import jax
import jax.numpy as jnp
import numpy as np
from jax.experimental import pallas as pl
from jax.experimental.pallas import tpu as pltpu

EPS = 1e-5  # nn.BatchNorm2d default eps


def _sigmoid(x):
    # tanh form -> EUP slot (no VALU divide), mathematically exact sigmoid.
    return 0.5 * (jnp.tanh(0.5 * x) + 1.0)


def _silu(x):
    return x * _sigmoid(x)


def _shift_flat(x, s):
    """y[:, p] = x[:, p + s] if 0 <= p + s < L else 0   (s is a static Python int)."""
    if s == 0:
        return x
    L = x.shape[-1]
    z = jnp.zeros(x.shape[:-1] + (abs(s),), x.dtype)
    if s > 0:
        return jnp.concatenate([x[:, s:], z], axis=-1)
    return jnp.concatenate([z, x[:, :L + s]], axis=-1)


# ------------------ fused MBConv kernel (batch_block images per grid step) ---
def _mbconv_kernel(x_ref, masks_ref, wexp_ref, b1_ref, wdw_ref, b2_ref,
                   sew1_ref, seb1_ref, sew2_ref, seb2_ref,
                   wproj_ref, b3_ref, o_ref, *,
                   B, H, W, kh, kw, stride, use_se, use_res, mxu_dtype):
    pad_h = (kh - 1) // 2
    pad_w = (kw - 1) // 2

    # Grid-invariant weights / biases / masks: load once per step.
    wexp = wexp_ref[...]                       # (Cexp, Cin)   mxu_dtype (BN s1 folded)
    wproj = wproj_ref[...]                     # (Cout, Cexp)  mxu_dtype (BN s3 folded)
    b1 = b1_ref[...]                           # (Cexp, 1) f32
    b2 = b2_ref[...]                           # (Cexp, 1) f32
    b3 = b3_ref[...]                           # (Cout, 1) f32
    wdw_taps = [wdw_ref[t] for t in range(kh * kw)]     # each (Cexp, 1) f32 (s2 folded)
    col_mask = [masks_ref[j] for j in range(kw)]         # each (1, HW) f32 (source-side)

    # Static unroll over the images in this grid step: per-step overhead is paid once
    # while every tensor op stays 2-D, lane-dense (HW on the 128-lane axis).
    for b in range(B):
        x = x_ref[b]                                              # (Cin, HW) f32

        # ---- expand_channel: 1x1 conv (+ folded BN scale) + bias + SiLU (MXU) ----
        e = jnp.dot(wexp, x.astype(mxu_dtype),
                    preferred_element_type=jnp.float32)           # (Cexp, HW) f32
        e = _silu(e + b1)

        # ---- DwCon_channel: depthwise kxk conv + bias + SiLU (VPU, f32) ----
        # Pre-masked horizontal source copies: one mask multiply per nonzero dj.
        e_h = []
        for j in range(kw):
            dj = j - pad_w
            e_h.append(e if dj == 0 else e * col_mask[j])

        acc = e * wdw_taps[pad_h * kw + pad_w]                    # center-tap init
        for i in range(kh):
            di = i - pad_h
            for j in range(kw):
                dj = j - pad_w
                if di == 0 and dj == 0:
                    continue
                tap = _shift_flat(e_h[j], di * W + dj)            # zero-fill flat shift
                acc = acc + tap * wdw_taps[i * kw + j]
        d = _silu(acc + b2)                                       # (Cexp, HW) f32

        if stride > 1:
            # TODO(synk): compute only the strided output positions instead of
            # full-res depthwise + lane-strided subsample (unexercised here).
            ho = (H + 2 * pad_h - kh) // stride + 1
            wo = (W + 2 * pad_w - kw) // stride + 1
            d = d.reshape(-1, H, W)[:, ::stride, ::stride].reshape(-1, ho * wo)

        # ---- se: Squeeze-Excite on the VMEM-resident activation ----
        if use_se:
            pooled = jnp.mean(d, axis=1, keepdims=True)           # (Cexp, 1) f32
            h = jnp.dot(sew1_ref[...], pooled.astype(mxu_dtype),
                        preferred_element_type=jnp.float32) + seb1_ref[...]
            h = _silu(h)                                          # (Csq, 1)
            sc = jnp.dot(sew2_ref[...], h.astype(mxu_dtype),
                         preferred_element_type=jnp.float32) + seb2_ref[...]
            sc = _sigmoid(sc)                                     # (Cexp, 1)
            d = d * sc

        # ---- Con_layer: 1x1 conv (+ folded BN scale) + bias [+ residual] ----
        y = jnp.dot(wproj, d.astype(mxu_dtype),
                    preferred_element_type=jnp.float32) + b3      # (Cout, HWo) f32
        if use_res:
            y = y + x
        o_ref[b] = y.astype(o_ref.dtype)


# ------------------ parameter setup (deterministic, synthetic) --------------
def _fold_bn(bn):
    scale = bn["gamma"] / jnp.sqrt(bn["var"] + EPS)
    bias = bn["beta"] - bn["mean"] * scale
    return scale, bias


def init_params(key, cin, cexp, cout, ksize, csq):
    ks = jax.random.split(key, 16)

    def nrm(k_, shape, scl=0.1):
        return scl * jax.random.normal(k_, shape, jnp.float32)

    def bn(k_, c):
        k1, k2, k3, k4 = jax.random.split(k_, 4)
        return {
            "gamma": 1.0 + 0.1 * jax.random.normal(k1, (c,), jnp.float32),
            "beta": 0.1 * jax.random.normal(k2, (c,), jnp.float32),
            "mean": 0.1 * jax.random.normal(k3, (c,), jnp.float32),
            "var": jax.random.uniform(k4, (c,), jnp.float32, 0.5, 1.5),
        }

    return {
        "w_exp": nrm(ks[0], (cin, cexp)),          # expand 1x1 conv (Cin, Cexp)
        "bn1": bn(ks[1], cexp),
        "w_dw": nrm(ks[2], (ksize, ksize, cexp)),  # depthwise (k, k, Cexp)
        "bn2": bn(ks[3], cexp),
        "se_w1": nrm(ks[4], (cexp, csq)),          # SE fc1 (with bias)
        "se_b1": nrm(ks[5], (csq,)),
        "se_w2": nrm(ks[6], (csq, cexp)),          # SE fc2 (with bias)
        "se_b2": nrm(ks[7], (cexp,)),
        "w_proj": nrm(ks[8], (cexp, cout)),        # project 1x1 conv
        "bn3": bn(ks[9], cout),
    }


# ------------------ full InvertResidual forward (NCHW in -> NCHW out) -------
def invert_residual_forward(x_nchw, params, *, ksize=3, stride=1, use_se=True,
                            mxu_dtype=jnp.bfloat16, batch_block=None):
    N, Cin, H, W = x_nchw.shape
    HW = H * W
    Cexp = params["w_exp"].shape[1]
    Cout = params["w_proj"].shape[1]
    Csq = params["se_w1"].shape[1]
    pad = (ksize - 1) // 2
    use_res = (stride == 1 and Cin == Cout)
    Ho = (H + 2 * pad - ksize) // stride + 1
    Wo = (W + 2 * pad - ksize) // stride + 1

    if batch_block is None:
        batch_block = N          # whole batch per grid step (amortise step overhead);
    B = batch_block              # pick N // 2 per core for v7x's two TensorCores.
    assert N % B == 0, (N, B)

    # Fold BN into per-channel scale/bias, then fold the scales into the conv weights
    # (wrapper-side: touches only tiny weight tensors, free).
    s1, b1 = _fold_bn(params["bn1"])
    s2, b2 = _fold_bn(params["bn2"])
    s3, b3 = _fold_bn(params["bn3"])

    wexp_t = (params["w_exp"].T * s1[:, None]).astype(mxu_dtype)          # (Cexp, Cin)
    wdw = (params["w_dw"] * s2[None, None, :]).reshape(
        ksize * ksize, Cexp)[:, :, None].astype(jnp.float32)              # (k*k,Cexp,1)
    wproj_t = (params["w_proj"].T * s3[:, None]).astype(mxu_dtype)        # (Cout, Cexp)
    sew1_t = params["se_w1"].T.astype(mxu_dtype)                          # (Csq, Cexp)
    sew2_t = params["se_w2"].T.astype(mxu_dtype)                          # (Cexp, Csq)

    col = lambda v: jnp.asarray(v, jnp.float32).reshape(-1, 1)

    # Source-side column pre-masks for the depthwise taps, hoisted out of the kernel:
    # for tap offset dj, valid SOURCE columns are [max(dj,0), W + min(dj,0)).
    w_idx = jnp.arange(HW, dtype=jnp.int32) % W
    masks = jnp.stack([
        ((w_idx >= max(dj, 0)) & (w_idx < W + min(dj, 0))).astype(jnp.float32)
        for dj in range(-pad, pad + 1)])[:, None, :]                      # (kw, 1, HW)

    x_flat = x_nchw.reshape(N, Cin, HW)                                   # NCHW, flat HW

    kernel = functools.partial(_mbconv_kernel, B=B, H=H, W=W, kh=ksize, kw=ksize,
                               stride=stride, use_se=use_se, use_res=use_res,
                               mxu_dtype=mxu_dtype)

    full2 = lambda n: (0, 0)
    full3 = lambda n: (0, 0, 0)

    out = pl.pallas_call(
        kernel,
        out_shape=jax.ShapeDtypeStruct((N, Cout, Ho * Wo), x_nchw.dtype),
        grid=(N // B,),
        in_specs=[
            pl.BlockSpec((B, Cin, HW), lambda n: (n, 0, 0)),          # x
            pl.BlockSpec((ksize, 1, HW), full3),                      # column pre-masks
            pl.BlockSpec((Cexp, Cin), full2),                         # expand W^T (*s1)
            pl.BlockSpec((Cexp, 1), full2),                           # bn1 bias
            pl.BlockSpec((ksize * ksize, Cexp, 1), full3),            # dw weights (*s2)
            pl.BlockSpec((Cexp, 1), full2),                           # bn2 bias
            pl.BlockSpec((Csq, Cexp), full2),                         # SE fc1 W^T
            pl.BlockSpec((Csq, 1), full2),                            # SE fc1 bias
            pl.BlockSpec((Cexp, Csq), full2),                         # SE fc2 W^T
            pl.BlockSpec((Cexp, 1), full2),                           # SE fc2 bias
            pl.BlockSpec((Cout, Cexp), full2),                        # project W^T (*s3)
            pl.BlockSpec((Cout, 1), full2),                           # bn3 bias
        ],
        out_specs=pl.BlockSpec((B, Cout, Ho * Wo), lambda n: (n, 0, 0)),
        compiler_params=pltpu.CompilerParams(dimension_semantics=("parallel",)),
    )(x_flat, masks, wexp_t, col(b1), wdw, col(b2),
      sew1_t, col(params["se_b1"]), sew2_t, col(params["se_b2"]),
      wproj_t, col(b3))

    # drop: nn.Dropout2d is identity in eval / drop_ratio == 0
    return out.reshape(N, Cout, Ho, Wo)                              # already NCHW


# ------------------ pure-JAX reference for correctness -----------------------
def ref_forward(x_nchw, p, *, ksize=3, stride=1, use_se=True):
    x = jnp.transpose(x_nchw, (0, 2, 3, 1)).astype(jnp.float32)
    N, H, W, Cin = x.shape

    def bn(y, d):
        return (y - d["mean"]) / jnp.sqrt(d["var"] + EPS) * d["gamma"] + d["beta"]

    silu = lambda v: v * jax.nn.sigmoid(v)
    e = silu(bn(jnp.einsum("nhwc,cd->nhwd", x, p["w_exp"]), p["bn1"]))
    pad = (ksize - 1) // 2
    ep = jnp.pad(e, ((0, 0), (pad, pad), (pad, pad), (0, 0)))
    acc = jnp.zeros_like(e)
    for i in range(ksize):
        for j in range(ksize):
            acc = acc + ep[:, i:i + H, j:j + W, :] * p["w_dw"][i, j]
    d = silu(bn(acc, p["bn2"]))
    if stride > 1:
        d = d[:, ::stride, ::stride, :]
    if use_se:
        pooled = d.mean(axis=(1, 2))
        h = silu(pooled @ p["se_w1"] + p["se_b1"])
        s = jax.nn.sigmoid(h @ p["se_w2"] + p["se_b2"])
        d = d * s[:, None, None, :]
    o = bn(jnp.einsum("nhwc,cd->nhwd", d, p["w_proj"]), p["bn3"])
    if stride == 1 and Cin == p["w_proj"].shape[1]:
        o = o + x
    return jnp.transpose(o, (0, 3, 1, 2))


if __name__ == "__main__":
    # Config: kernel=3, input_c=16, output_c=16, expand_ratio=4, stride=1,
    # use_se=True, drop_ratio=0.0, wid_confidence=1.0
    #  -> input_c=16, expand_c=64, output_c=16, squeeze_c = input_c // 4 = 4
    N, Cin, H, W = 2, 16, 16, 16
    ksize, stride, expand_ratio, use_se = 3, 1, 4, True
    Cexp, Cout, Csq = Cin * expand_ratio, 16, Cin // 4

    key = jax.random.PRNGKey(0)
    kx, kp = jax.random.split(key)
    x = jax.random.normal(kx, (N, Cin, H, W), jnp.float32)   # NCHW like PyTorch
    params = init_params(kp, Cin, Cexp, Cout, ksize, Csq)

    ref = jax.block_until_ready(ref_forward(x, params, ksize=ksize, stride=stride,
                                            use_se=use_se))

    # Exact-math mode (f32 MXU operands): tight correctness check.
    out_f32 = jax.block_until_ready(invert_residual_forward(
        x, params, ksize=ksize, stride=stride, use_se=use_se,
        mxu_dtype=jnp.float32))
    assert out_f32.shape == (N, Cout, H, W), out_f32.shape
    np.testing.assert_allclose(np.asarray(out_f32), np.asarray(ref),
                               rtol=1e-4, atol=1e-4)

    # Performance mode (bf16 MXU operands, f32 accumulation): loose sanity check.
    out_bf16 = jax.block_until_ready(invert_residual_forward(
        x, params, ksize=ksize, stride=stride, use_se=use_se,
        mxu_dtype=jnp.bfloat16))
    np.testing.assert_allclose(np.asarray(out_bf16), np.asarray(ref),
                               rtol=5e-2, atol=5e-2)

    print("KERNEL_OK")
</pallas_src>

<mosaic_0001>
module attributes {stable_mosaic.version = 11 : i64} {
  func.func @_mbconv_kernel(%arg0: i32, %arg1: memref<2x16x256xf32, #tpu.memory_space<vmem>>, %arg2: memref<3x1x256xf32, #tpu.memory_space<vmem>>, %arg3: memref<64x16xf32, #tpu.memory_space<vmem>>, %arg4: memref<64x1xf32, #tpu.memory_space<vmem>>, %arg5: memref<9x64x1xf32, #tpu.memory_space<vmem>>, %arg6: memref<64x1xf32, #tpu.memory_space<vmem>>, %arg7: memref<4x64xf32, #tpu.memory_space<vmem>>, %arg8: memref<4x1xf32, #tpu.memory_space<vmem>>, %arg9: memref<64x4xf32, #tpu.memory_space<vmem>>, %arg10: memref<64x1xf32, #tpu.memory_space<vmem>>, %arg11: memref<16x64xf32, #tpu.memory_space<vmem>>, %arg12: memref<16x1xf32, #tpu.memory_space<vmem>>, %arg13: memref<2x16x256xf32, #tpu.memory_space<vmem>>) attributes {dimension_semantics = [#tpu.dimension_semantics<parallel>], iteration_bounds = array<i64: 1>, scalar_prefetch = 0 : i64, scratch_operands = 0 : i64, tpu.core_type = #tpu.core_type<tc>, window_params = [{transform_indices = @transform_0, window_bounds = array<i64: 2, 16, 256>}, {pipeline_mode = #tpu.pipeline_mode<synchronous>, transform_indices = @transform_1, window_bounds = array<i64: 3, 1, 256>}, {pipeline_mode = #tpu.pipeline_mode<synchronous>, transform_indices = @transform_2, window_bounds = array<i64: 64, 16>}, {pipeline_mode = #tpu.pipeline_mode<synchronous>, transform_indices = @transform_3, window_bounds = array<i64: 64, 1>}, {pipeline_mode = #tpu.pipeline_mode<synchronous>, transform_indices = @transform_4, window_bounds = array<i64: 9, 64, 1>}, {pipeline_mode = #tpu.pipeline_mode<synchronous>, transform_indices = @transform_5, window_bounds = array<i64: 64, 1>}, {pipeline_mode = #tpu.pipeline_mode<synchronous>, transform_indices = @transform_6, window_bounds = array<i64: 4, 64>}, {pipeline_mode = #tpu.pipeline_mode<synchronous>, transform_indices = @transform_7, window_bounds = array<i64: 4, 1>}, {pipeline_mode = #tpu.pipeline_mode<synchronous>, transform_indices = @transform_8, window_bounds = array<i64: 64, 4>}, {pipeline_mode = #tpu.pipeline_mode<synchronous>, transform_indices = @transform_9, window_bounds = array<i64: 64, 1>}, {pipeline_mode = #tpu.pipeline_mode<synchronous>, transform_indices = @transform_10, window_bounds = array<i64: 16, 64>}, {pipeline_mode = #tpu.pipeline_mode<synchronous>, transform_indices = @transform_11, window_bounds = array<i64: 16, 1>}, {transform_indices = @transform_12, window_bounds = array<i64: 2, 16, 256>}]} {
    %c0 = arith.constant 0 : index
    %c0_0 = arith.constant 0 : index
    %0 = vector.load %arg3[%c0, %c0_0] : memref<64x16xf32, #tpu.memory_space<vmem>>, vector<64x16xf32>
    %c0_1 = arith.constant 0 : index
    %c0_2 = arith.constant 0 : index
    %1 = vector.load %arg11[%c0_1, %c0_2] : memref<16x64xf32, #tpu.memory_space<vmem>>, vector<16x64xf32>
    %c0_3 = arith.constant 0 : index
    %c0_4 = arith.constant 0 : index
    %2 = vector.load %arg4[%c0_3, %c0_4] : memref<64x1xf32, #tpu.memory_space<vmem>>, vector<64x1xf32>
    %c0_5 = arith.constant 0 : index
    %c0_6 = arith.constant 0 : index
    %3 = vector.load %arg6[%c0_5, %c0_6] : memref<64x1xf32, #tpu.memory_space<vmem>>, vector<64x1xf32>
    %c0_7 = arith.constant 0 : index
    %c0_8 = arith.constant 0 : index
    %4 = vector.load %arg12[%c0_7, %c0_8] : memref<16x1xf32, #tpu.memory_space<vmem>>, vector<16x1xf32>
    %c0_9 = arith.constant 0 : index
    %c0_10 = arith.constant 0 : index
    %c0_11 = arith.constant 0 : index
    %5 = vector.load %arg5[%c0_9, %c0_10, %c0_11] : memref<9x64x1xf32, #tpu.memory_space<vmem>>, vector<1x64x1xf32>
    %6 = vector.shape_cast %5 : vector<1x64x1xf32> to vector<64x1xf32>
    %c1 = arith.constant 1 : index
    %c0_12 = arith.constant 0 : index
    %c0_13 = arith.constant 0 : index
    %7 = vector.load %arg5[%c1, %c0_12, %c0_13] : memref<9x64x1xf32, #tpu.memory_space<vmem>>, vector<1x64x1xf32>
    %8 = vector.shape_cast %7 : vector<1x64x1xf32> to vector<64x1xf32>
    %c2 = arith.constant 2 : index
    %c0_14 = arith.constant 0 : index
    %c0_15 = arith.constant 0 : index
    %9 = vector.load %arg5[%c2, %c0_14, %c0_15] : memref<9x64x1xf32, #tpu.memory_space<vmem>>, vector<1x64x1xf32>
    %10 = vector.shape_cast %9 : vector<1x64x1xf32> to vector<64x1xf32>
    %c3 = arith.constant 3 : index
    %c0_16 = arith.constant 0 : index
    %c0_17 = arith.constant 0 : index
    %11 = vector.load %arg5[%c3, %c0_16, %c0_17] : memref<9x64x1xf32, #tpu.memory_space<vmem>>, vector<1x64x1xf32>
    %12 = vector.shape_cast %11 : vector<1x64x1xf32> to vector<64x1xf32>
    %c4 = arith.constant 4 : index
    %c0_18 = arith.constant 0 : index
    %c0_19 = arith.constant 0 : index
    %13 = vector.load %arg5[%c4, %c0_18, %c0_19] : memref<9x64x1xf32, #tpu.memory_space<vmem>>, vector<1x64x1xf32>
    %14 = vector.shape_cast %13 : vector<1x64x1xf32> to vector<64x1xf32>
    %c5 = arith.constant 5 : index
    %c0_20 = arith.constant 0 : index
    %c0_21 = arith.constant 0 : index
    %15 = vector.load %arg5[%c5, %c0_20, %c0_21] : memref<9x64x1xf32, #tpu.memory_space<vmem>>, vector<1x64x1xf32>
    %16 = vector.shape_cast %15 : vector<1x64x1xf32> to vector<64x1xf32>
    %c6 = arith.constant 6 : index
    %c0_22 = arith.constant 0 : index
    %c0_23 = arith.constant 0 : index
    %17 = vector.load %arg5[%c6, %c0_22, %c0_23] : memref<9x64x1xf32, #tpu.memory_space<vmem>>, vector<1x64x1xf32>
    %18 = vector.shape_cast %17 : vector<1x64x1xf32> to vector<64x1xf32>
    %c7 = arith.constant 7 : index
    %c0_24 = arith.constant 0 : index
    %c0_25 = arith.constant 0 : index
    %19 = vector.load %arg5[%c7, %c0_24, %c0_25] : memref<9x64x1xf32, #tpu.memory_space<vmem>>, vector<1x64x1xf32>
    %20 = vector.shape_cast %19 : vector<1x64x1xf32> to vector<64x1xf32>
    %c8 = arith.constant 8 : index
    %c0_26 = arith.constant 0 : index
    %c0_27 = arith.constant 0 : index
    %21 = vector.load %arg5[%c8, %c0_26, %c0_27] : memref<9x64x1xf32, #tpu.memory_space<vmem>>, vector<1x64x1xf32>
    %22 = vector.shape_cast %21 : vector<1x64x1xf32> to vector<64x1xf32>
    %c0_28 = arith.constant 0 : index
    %c0_29 = arith.constant 0 : index
    %c0_30 = arith.constant 0 : index
    %23 = vector.load %arg2[%c0_28, %c0_29, %c0_30] : memref<3x1x256xf32, #tpu.memory_space<vmem>>, vector<1x1x256xf32>
    %24 = vector.shape_cast %23 : vector<1x1x256xf32> to vector<1x256xf32>
    %c2_31 = arith.constant 2 : index
    %c0_32 = arith.constant 0 : index
    %c0_33 = arith.constant 0 : index
    %25 = vector.load %arg2[%c2_31, %c0_32, %c0_33] : memref<3x1x256xf32, #tpu.memory_space<vmem>>, vector<1x1x256xf32>
    %26 = vector.shape_cast %25 : vector<1x1x256xf32> to vector<1x256xf32>
    %c0_34 = arith.constant 0 : index
    %c0_35 = arith.constant 0 : index
    %c0_36 = arith.constant 0 : index
    %27 = vector.load %arg1[%c0_34, %c0_35, %c0_36] : memref<2x16x256xf32, #tpu.memory_space<vmem>>, vector<1x16x256xf32>
    %28 = vector.shape_cast %27 : vector<1x16x256xf32> to vector<16x256xf32>
    %cst = arith.constant dense<0.000000e+00> : vector<64x256xf32>
    %29 = tpu.matmul %0, %28, %cst {dimension_numbers = #tpu.dot_dimension_numbers<[1], [0], [0], [1], [0, 0, 1, 1], [], []>} : vector<64x16xf32>, vector<16x256xf32>, vector<64x256xf32> -> vector<64x256xf32>
    %30 = vector.broadcast %2 : vector<64x1xf32> to vector<64x256xf32>
    %31 = arith.addf %29, %30 : vector<64x256xf32>
    %cst_37 = arith.constant 5.000000e-01 : f32
    %32 = vector.broadcast %cst_37 : f32 to vector<64x256xf32>
    %33 = arith.mulf %32, %31 : vector<64x256xf32>
    %34 = math.tanh %33 : vector<64x256xf32>
    %cst_38 = arith.constant 1.000000e+00 : f32
    %35 = vector.broadcast %cst_38 : f32 to vector<64x256xf32>
    %36 = arith.addf %34, %35 : vector<64x256xf32>
    %cst_39 = arith.constant 5.000000e-01 : f32
    %37 = vector.broadcast %cst_39 : f32 to vector<64x256xf32>
    %38 = arith.mulf %37, %36 : vector<64x256xf32>
    %39 = arith.mulf %31, %38 : vector<64x256xf32>
    %40 = vector.broadcast %24 : vector<1x256xf32> to vector<64x256xf32>
    %41 = arith.mulf %39, %40 : vector<64x256xf32>
    %42 = vector.broadcast %26 : vector<1x256xf32> to vector<64x256xf32>
    %43 = arith.mulf %39, %42 : vector<64x256xf32>
    %44 = vector.broadcast %14 : vector<64x1xf32> to vector<64x256xf32>
    %45 = arith.mulf %39, %44 : vector<64x256xf32>
    %cst_40 = arith.constant 0.000000e+00 : f32
    %46 = vector.broadcast %cst_40 : f32 to vector<64x17xf32>
    %47 = vector.extract_strided_slice %41 {offsets = [0, 0], sizes = [64, 239], strides = [1, 1]} : vector<64x256xf32> to vector<64x239xf32>
    %48 = tpu.concatenate %46, %47 in 1 : vector<64x17xf32>, vector<64x239xf32> -> vector<64x256xf32>
    %49 = vector.broadcast %6 : vector<64x1xf32> to vector<64x256xf32>
    %50 = arith.mulf %48, %49 : vector<64x256xf32>
    %51 = arith.addf %45, %50 : vector<64x256xf32>
    %cst_41 = arith.constant 0.000000e+00 : f32
    %52 = vector.broadcast %cst_41 : f32 to vector<64x16xf32>
    %53 = vector.extract_strided_slice %39 {offsets = [0, 0], sizes = [64, 240], strides = [1, 1]} : vector<64x256xf32> to vector<64x240xf32>
    %54 = tpu.concatenate %52, %53 in 1 : vector<64x16xf32>, vector<64x240xf32> -> vector<64x256xf32>
    %55 = vector.broadcast %8 : vector<64x1xf32> to vector<64x256xf32>
    %56 = arith.mulf %54, %55 : vector<64x256xf32>
    %57 = arith.addf %51, %56 : vector<64x256xf32>
    %cst_42 = arith.constant 0.000000e+00 : f32
    %58 = vector.broadcast %cst_42 : f32 to vector<64x15xf32>
    %59 = vector.extract_strided_slice %43 {offsets = [0, 0], sizes = [64, 241], strides = [1, 1]} : vector<64x256xf32> to vector<64x241xf32>
    %60 = tpu.concatenate %58, %59 in 1 : vector<64x15xf32>, vector<64x241xf32> -> vector<64x256xf32>
    %61 = vector.broadcast %10 : vector<64x1xf32> to vector<64x256xf32>
    %62 = arith.mulf %60, %61 : vector<64x256xf32>
    %63 = arith.addf %57, %62 : vector<64x256xf32>
    %cst_43 = arith.constant 0.000000e+00 : f32
    %64 = vector.broadcast %cst_43 : f32 to vector<64x1xf32>
    %65 = vector.extract_strided_slice %41 {offsets = [0, 0], sizes = [64, 255], strides = [1, 1]} : vector<64x256xf32> to vector<64x255xf32>
    %66 = tpu.concatenate %64, %65 in 1 : vector<64x1xf32>, vector<64x255xf32> -> vector<64x256xf32>
    %67 = vector.broadcast %12 : vector<64x1xf32> to vector<64x256xf32>
    %68 = arith.mulf %66, %67 : vector<64x256xf32>
    %69 = arith.addf %63, %68 : vector<64x256xf32>
    %cst_44 = arith.constant 0.000000e+00 : f32
    %70 = vector.broadcast %cst_44 : f32 to vector<64x1xf32>
    %71 = vector.extract_strided_slice %43 {offsets = [0, 1], sizes = [64, 255], strides = [1, 1]} : vector<64x256xf32> to vector<64x255xf32>
    %72 = tpu.concatenate %71, %70 in 1 : vector<64x255xf32>, vector<64x1xf32> -> vector<64x256xf32>
    %73 = vector.broadcast %16 : vector<64x1xf32> to vector<64x256xf32>
    %74 = arith.mulf %72, %73 : vector<64x256xf32>
    %75 = arith.addf %69, %74 : vector<64x256xf32>
    %cst_45 = arith.constant 0.000000e+00 : f32
    %76 = vector.broadcast %cst_45 : f32 to vector<64x15xf32>
    %77 = vector.extract_strided_slice %41 {offsets = [0, 15], sizes = [64, 241], strides = [1, 1]} : vector<64x256xf32> to vector<64x241xf32>
    %78 = tpu.concatenate %77, %76 in 1 : vector<64x241xf32>, vector<64x15xf32> -> vector<64x256xf32>
    %79 = vector.broadcast %18 : vector<64x1xf32> to vector<64x256xf32>
    %80 = arith.mulf %78, %79 : vector<64x256xf32>
    %81 = arith.addf %75, %80 : vector<64x256xf32>
    %cst_46 = arith.constant 0.000000e+00 : f32
    %82 = vector.broadcast %cst_46 : f32 to vector<64x16xf32>
    %83 = vector.extract_strided_slice %39 {offsets = [0, 16], sizes = [64, 240], strides = [1, 1]} : vector<64x256xf32> to vector<64x240xf32>
    %84 = tpu.concatenate %83, %82 in 1 : vector<64x240xf32>, vector<64x16xf32> -> vector<64x256xf32>
    %85 = vector.broadcast %20 : vector<64x1xf32> to vector<64x256xf32>
    %86 = arith.mulf %84, %85 : vector<64x256xf32>
    %87 = arith.addf %81, %86 : vector<64x256xf32>
    %cst_47 = arith.constant 0.000000e+00 : f32
    %88 = vector.broadcast %cst_47 : f32 to vector<64x17xf32>
    %89 = vector.extract_strided_slice %43 {offsets = [0, 17], sizes = [64, 239], strides = [1, 1]} : vector<64x256xf32> to vector<64x239xf32>
    %90 = tpu.concatenate %89, %88 in 1 : vector<64x239xf32>, vector<64x17xf32> -> vector<64x256xf32>
    %91 = vector.broadcast %22 : vector<64x1xf32> to vector<64x256xf32>
    %92 = arith.mulf %90, %91 : vector<64x256xf32>
    %93 = arith.addf %87, %92 : vector<64x256xf32>
    %94 = vector.broadcast %3 : vector<64x1xf32> to vector<64x256xf32>
    %95 = arith.addf %93, %94 : vector<64x256xf32>
    %cst_48 = arith.constant 5.000000e-01 : f32
    %96 = vector.broadcast %cst_48 : f32 to vector<64x256xf32>
    %97 = arith.mulf %96, %95 : vector<64x256xf32>
    %98 = math.tanh %97 : vector<64x256xf32>
    %cst_49 = arith.constant 1.000000e+00 : f32
    %99 = vector.broadcast %cst_49 : f32 to vector<64x256xf32>
    %100 = arith.addf %98, %99 : vector<64x256xf32>
    %cst_50 = arith.constant 5.000000e-01 : f32
    %101 = vector.broadcast %cst_50 : f32 to vector<64x256xf32>
    %102 = arith.mulf %101, %100 : vector<64x256xf32>
    %103 = arith.mulf %95, %102 : vector<64x256xf32>
    %cst_51 = arith.constant dense<0.000000e+00> : vector<64xf32>
    %104 = vector.multi_reduction <add>, %103, %cst_51 [1] : vector<64x256xf32> to vector<64xf32>
    %105 = vector.shape_cast %104 : vector<64xf32> to vector<64x1xf32>
    %cst_52 = arith.constant 2.560000e+02 : f32
    %106 = vector.broadcast %cst_52 : f32 to vector<64x1xf32>
    %107 = arith.divf %105, %106 : vector<64x1xf32>
    %c0_53 = arith.constant 0 : index
    %c0_54 = arith.constant 0 : index
    %108 = vector.load %arg7[%c0_53, %c0_54] : memref<4x64xf32, #tpu.memory_space<vmem>>, vector<4x64xf32>
    %cst_55 = arith.constant dense<0.000000e+00> : vector<4x1xf32>
    %109 = tpu.matmul %108, %107, %cst_55 {dimension_numbers = #tpu.dot_dimension_numbers<[1], [0], [0], [1], [0, 0, 1, 1], [], []>} : vector<4x64xf32>, vector<64x1xf32>, vector<4x1xf32> -> vector<4x1xf32>
    %c0_56 = arith.constant 0 : index
    %c0_57 = arith.constant 0 : index
    %110 = vector.load %arg8[%c0_56, %c0_57] : memref<4x1xf32, #tpu.memory_space<vmem>>, vector<4x1xf32>
    %111 = arith.addf %109, %110 : vector<4x1xf32>
    %cst_58 = arith.constant 5.000000e-01 : f32
    %112 = vector.broadcast %cst_58 : f32 to vector<4x1xf32>
    %113 = arith.mulf %112, %111 : vector<4x1xf32>
    %114 = math.tanh %113 : vector<4x1xf32>
    %cst_59 = arith.constant 1.000000e+00 : f32
    %115 = vector.broadcast %cst_59 : f32 to vector<4x1xf32>
    %116 = arith.addf %114, %115 : vector<4x1xf32>
    %cst_60 = arith.constant 5.000000e-01 : f32
    %117 = vector.broadcast %cst_60 : f32 to vector<4x1xf32>
    %118 = arith.mulf %117, %116 : vector<4x1xf32>
    %119 = arith.mulf %111, %118 : vector<4x1xf32>
    %c0_61 = arith.constant 0 : index
    %c0_62 = arith.constant 0 : index
    %120 = vector.load %arg9[%c0_61, %c0_62] : memref<64x4xf32, #tpu.memory_space<vmem>>, vector<64x4xf32>
    %cst_63 = arith.constant dense<0.000000e+00> : vector<64x1xf32>
    %121 = tpu.matmul %120, %119, %cst_63 {dimension_numbers = #tpu.dot_dimension_numbers<[1], [0], [0], [1], [0, 0, 1, 1], [], []>} : vector<64x4xf32>, vector<4x1xf32>, vector<64x1xf32> -> vector<64x1xf32>
    %c0_64 = arith.constant 0 : index
    %c0_65 = arith.constant 0 : index
    %122 = vector.load %arg10[%c0_64, %c0_65] : memref<64x1xf32, #tpu.memory_space<vmem>>, vector<64x1xf32>
    %123 = arith.addf %121, %122 : vector<64x1xf32>
    %cst_66 = arith.constant 5.000000e-01 : f32
    %124 = vector.broadcast %cst_66 : f32 to vector<64x1xf32>
    %125 = arith.mulf %124, %123 : vector<64x1xf32>
    %126 = math.tanh %125 : vector<64x1xf32>
    %cst_67 = arith.constant 1.000000e+00 : f32
    %127 = vector.broadcast %cst_67 : f32 to vector<64x1xf32>
    %128 = arith.addf %126, %127 : vector<64x1xf32>
    %cst_68 = arith.constant 5.000000e-01 : f32
    %129 = vector.broadcast %cst_68 : f32 to vector<64x1xf32>
    %130 = arith.mulf %129, %128 : vector<64x1xf32>
    %131 = vector.broadcast %130 : vector<64x1xf32> to vector<64x256xf32>
    %132 = arith.mulf %103, %131 : vector<64x256xf32>
    %cst_69 = arith.constant dense<0.000000e+00> : vector<16x256xf32>
    %133 = tpu.matmul %1, %132, %cst_69 {dimension_numbers = #tpu.dot_dimension_numbers<[1], [0], [0], [1], [0, 0, 1, 1], [], []>} : vector<16x64xf32>, vector<64x256xf32>, vector<16x256xf32> -> vector<16x256xf32>
    %134 = vector.broadcast %4 : vector<16x1xf32> to vector<16x256xf32>
    %135 = arith.addf %133, %134 : vector<16x256xf32>
    %136 = arith.addf %135, %28 : vector<16x256xf32>
    %c0_70 = arith.constant 0 : index
    %c0_71 = arith.constant 0 : index
    %c0_72 = arith.constant 0 : index
    %137 = vector.load %arg13[%c0_70, %c0_71, %c0_72] : memref<2x16x256xf32, #tpu.memory_space<vmem>>, vector<1x16x256xf32>
    %138 = vector.shape_cast %137 : vector<1x16x256xf32> to vector<16x256xf32>
    %139 = vector.shape_cast %136 : vector<16x256xf32> to vector<1x16x256xf32>
    tpu.vector_store %arg13[%c0_70, %c0_71, %c0_72], %139 {strides = array<i32>} : memref<2x16x256xf32, #tpu.memory_space<vmem>>, vector<1x16x256xf32>,
    %c1_73 = arith.constant 1 : index
    %c0_74 = arith.constant 0 : index
    %c0_75 = arith.constant 0 : index
    %140 = vector.load %arg1[%c1_73, %c0_74, %c0_75] : memref<2x16x256xf32, #tpu.memory_space<vmem>>, vector<1x16x256xf32>
    %141 = vector.shape_cast %140 : vector<1x16x256xf32> to vector<16x256xf32>
    %cst_76 = arith.constant dense<0.000000e+00> : vector<64x256xf32>
    %142 = tpu.matmul %0, %141, %cst_76 {dimension_numbers = #tpu.dot_dimension_numbers<[1], [0], [0], [1], [0, 0, 1, 1], [], []>} : vector<64x16xf32>, vector<16x256xf32>, vector<64x256xf32> -> vector<64x256xf32>
    %143 = vector.broadcast %2 : vector<64x1xf32> to vector<64x256xf32>
    %144 = arith.addf %142, %143 : vector<64x256xf32>
    %cst_77 = arith.constant 5.000000e-01 : f32
    %145 = vector.broadcast %cst_77 : f32 to vector<64x256xf32>
    %146 = arith.mulf %145, %144 : vector<64x256xf32>
    %147 = math.tanh %146 : vector<64x256xf32>
    %cst_78 = arith.constant 1.000000e+00 : f32
    %148 = vector.broadcast %cst_78 : f32 to vector<64x256xf32>
    %149 = arith.addf %147, %148 : vector<64x256xf32>
    %cst_79 = arith.constant 5.000000e-01 : f32
    %150 = vector.broadcast %cst_79 : f32 to vector<64x256xf32>
    %151 = arith.mulf %150, %149 : vector<64x256xf32>
    %152 = arith.mulf %144, %151 : vector<64x256xf32>
    %153 = vector.broadcast %24 : vector<1x256xf32> to vector<64x256xf32>
    %154 = arith.mulf %152, %153 : vector<64x256xf32>
    %155 = vector.broadcast %26 : vector<1x256xf32> to vector<64x256xf32>
    %156 = arith.mulf %152, %155 : vector<64x256xf32>
    %157 = vector.broadcast %14 : vector<64x1xf32> to vector<64x256xf32>
    %158 = arith.mulf %152, %157 : vector<64x256xf32>
    %cst_80 = arith.constant 0.000000e+00 : f32
    %159 = vector.broadcast %cst_80 : f32 to vector<64x17xf32>
    %160 = vector.extract_strided_slice %154 {offsets = [0, 0], sizes = [64, 239], strides = [1, 1]} : vector<64x256xf32> to vector<64x239xf32>
    %161 = tpu.concatenate %159, %160 in 1 : vector<64x17xf32>, vector<64x239xf32> -> vector<64x256xf32>
    %162 = vector.broadcast %6 : vector<64x1xf32> to vector<64x256xf32>
    %163 = arith.mulf %161, %162 : vector<64x256xf32>
    %164 = arith.addf %158, %163 : vector<64x256xf32>
    %cst_81 = arith.constant 0.000000e+00 : f32
    %165 = vector.broadcast %cst_81 : f32 to vector<64x16xf32>
    %166 = vector.extract_strided_slice %152 {offsets = [0, 0], sizes = [64, 240], strides = [1, 1]} : vector<64x256xf32> to vector<64x240xf32>
    %167 = tpu.concatenate %165, %166 in 1 : vector<64x16xf32>, vector<64x240xf32> -> vector<64x256xf32>
    %168 = vector.broadcast %8 : vector<64x1xf32> to vector<64x256xf32>
    %169 = arith.mulf %167, %168 : vector<64x256xf32>
    %170 = arith.addf %164, %169 : vector<64x256xf32>
    %cst_82 = arith.constant 0.000000e+00 : f32
    %171 = vector.broadcast %cst_82 : f32 to vector<64x15xf32>
    %172 = vector.extract_strided_slice %156 {offsets = [0, 0], sizes = [64, 241], strides = [1, 1]} : vector<64x256xf32> to vector<64x241xf32>
    %173 = tpu.concatenate %171, %172 in 1 : vector<64x15xf32>, vector<64x241xf32> -> vector<64x256xf32>
    %174 = vector.broadcast %10 : vector<64x1xf32> to vector<64x256xf32>
    %175 = arith.mulf %173, %174 : vector<64x256xf32>
    %176 = arith.addf %170, %175 : vector<64x256xf32>
    %cst_83 = arith.constant 0.000000e+00 : f32
    %177 = vector.broadcast %cst_83 : f32 to vector<64x1xf32>
    %178 = vector.extract_strided_slice %154 {offsets = [0, 0], sizes = [64, 255], strides = [1, 1]} : vector<64x256xf32> to vector<64x255xf32>
    %179 = tpu.concatenate %177, %178 in 1 : vector<64x1xf32>, vector<64x255xf32> -> vector<64x256xf32>
    %180 = vector.broadcast %12 : vector<64x1xf32> to vector<64x256xf32>
    %181 = arith.mulf %179, %180 : vector<64x256xf32>
    %182 = arith.addf %176, %181 : vector<64x256xf32>
    %cst_84 = arith.constant 0.000000e+00 : f32
    %183 = vector.broadcast %cst_84 : f32 to vector<64x1xf32>
    %184 = vector.extract_strided_slice %156 {offsets = [0, 1], sizes = [64, 255], strides = [1, 1]} : vector<64x256xf32> to vector<64x255xf32>
    %185 = tpu.concatenate %184, %183 in 1 : vector<64x255xf32>, vector<64x1xf32> -> vector<64x256xf32>
    %186 = vector.broadcast %16 : vector<64x1xf32> to vector<64x256xf32>
    %187 = arith.mulf %185, %186 : vector<64x256xf32>
    %188 = arith.addf %182, %187 : vector<64x256xf32>
    %cst_85 = arith.constant 0.000000e+00 : f32
    %189 = vector.broadcast %cst_85 : f32 to vector<64x15xf32>
    %190 = vector.extract_strided_slice %154 {offsets = [0, 15], sizes = [64, 241], strides = [1, 1]} : vector<64x256xf32> to vector<64x241xf32>
    %191 = tpu.concatenate %190, %189 in 1 : vector<64x241xf32>, vector<64x15xf32> -> vector<64x256xf32>
    %192 = vector.broadcast %18 : vector<64x1xf32> to vector<64x256xf32>
    %193 = arith.mulf %191, %192 : vector<64x256xf32>
    %194 = arith.addf %188, %193 : vector<64x256xf32>
    %cst_86 = arith.constant 0.000000e+00 : f32
    %195 = vector.broadcast %cst_86 : f32 to vector<64x16xf32>
    %196 = vector.extract_strided_slice %152 {offsets = [0, 16], sizes = [64, 240], strides = [1, 1]} : vector<64x256xf32> to vector<64x240xf32>
    %197 = tpu.concatenate %196, %195 in 1 : vector<64x240xf32>, vector<64x16xf32> -> vector<64x256xf32>
    %198 = vector.broadcast %20 : vector<64x1xf32> to vector<64x256xf32>
    %199 = arith.mulf %197, %198 : vector<64x256xf32>
    %200 = arith.addf %194, %199 : vector<64x256xf32>
    %cst_87 = arith.constant 0.000000e+00 : f32
    %201 = vector.broadcast %cst_87 : f32 to vector<64x17xf32>
    %202 = vector.extract_strided_slice %156 {offsets = [0, 17], sizes = [64, 239], strides = [1, 1]} : vector<64x256xf32> to vector<64x239xf32>
    %203 = tpu.concatenate %202, %201 in 1 : vector<64x239xf32>, vector<64x17xf32> -> vector<64x256xf32>
    %204 = vector.broadcast %22 : vector<64x1xf32> to vector<64x256xf32>
    %205 = arith.mulf %203, %204 : vector<64x256xf32>
    %206 = arith.addf %200, %205 : vector<64x256xf32>
    %207 = vector.broadcast %3 : vector<64x1xf32> to vector<64x256xf32>
    %208 = arith.addf %206, %207 : vector<64x256xf32>
    %cst_88 = arith.constant 5.000000e-01 : f32
    %209 = vector.broadcast %cst_88 : f32 to vector<64x256xf32>
    %210 = arith.mulf %209, %208 : vector<64x256xf32>
    %211 = math.tanh %210 : vector<64x256xf32>
    %cst_89 = arith.constant 1.000000e+00 : f32
    %212 = vector.broadcast %cst_89 : f32 to vector<64x256xf32>
    %213 = arith.addf %211, %212 : vector<64x256xf32>
    %cst_90 = arith.constant 5.000000e-01 : f32
    %214 = vector.broadcast %cst_90 : f32 to vector<64x256xf32>
    %215 = arith.mulf %214, %213 : vector<64x256xf32>
    %216 = arith.mulf %208, %215 : vector<64x256xf32>
    %cst_91 = arith.constant dense<0.000000e+00> : vector<64xf32>
    %217 = vector.multi_reduction <add>, %216, %cst_91 [1] : vector<64x256xf32> to vector<64xf32>
    %218 = vector.shape_cast %217 : vector<64xf32> to vector<64x1xf32>
    %cst_92 = arith.constant 2.560000e+02 : f32
    %219 = vector.broadcast %cst_92 : f32 to vector<64x1xf32>
    %220 = arith.divf %218, %219 : vector<64x1xf32>
    %c0_93 = arith.constant 0 : index
    %c0_94 = arith.constant 0 : index
    %221 = vector.load %arg7[%c0_93, %c0_94] : memref<4x64xf32, #tpu.memory_space<vmem>>, vector<4x64xf32>
    %cst_95 = arith.constant dense<0.000000e+00> : vector<4x1xf32>
    %222 = tpu.matmul %221, %220, %cst_95 {dimension_numbers = #tpu.dot_dimension_numbers<[1], [0], [0], [1], [0, 0, 1, 1], [], []>} : vector<4x64xf32>, vector<64x1xf32>, vector<4x1xf32> -> vector<4x1xf32>
    %c0_96 = arith.constant 0 : index
    %c0_97 = arith.constant 0 : index
    %223 = vector.load %arg8[%c0_96, %c0_97] : memref<4x1xf32, #tpu.memory_space<vmem>>, vector<4x1xf32>
    %224 = arith.addf %222, %223 : vector<4x1xf32>
    %cst_98 = arith.constant 5.000000e-01 : f32
    %225 = vector.broadcast %cst_98 : f32 to vector<4x1xf32>
    %226 = arith.mulf %225, %224 : vector<4x1xf32>
    %227 = math.tanh %226 : vector<4x1xf32>
    %cst_99 = arith.constant 1.000000e+00 : f32
    %228 = vector.broadcast %cst_99 : f32 to vector<4x1xf32>
    %229 = arith.addf %227, %228 : vector<4x1xf32>
    %cst_100 = arith.constant 5.000000e-01 : f32
    %230 = vector.broadcast %cst_100 : f32 to vector<4x1xf32>
    %231 = arith.mulf %230, %229 : vector<4x1xf32>
    %232 = arith.mulf %224, %231 : vector<4x1xf32>
    %c0_101 = arith.constant 0 : index
    %c0_102 = arith.constant 0 : index
    %233 = vector.load %arg9[%c0_101, %c0_102] : memref<64x4xf32, #tpu.memory_space<vmem>>, vector<64x4xf32>
    %cst_103 = arith.constant dense<0.000000e+00> : vector<64x1xf32>
    %234 = tpu.matmul %233, %232, %cst_103 {dimension_numbers = #tpu.dot_dimension_numbers<[1], [0], [0], [1], [0, 0, 1, 1], [], []>} : vector<64x4xf32>, vector<4x1xf32>, vector<64x1xf32> -> vector<64x1xf32>
    %c0_104 = arith.constant 0 : index
    %c0_105 = arith.constant 0 : index
    %235 = vector.load %arg10[%c0_104, %c0_105] : memref<64x1xf32, #tpu.memory_space<vmem>>, vector<64x1xf32>
    %236 = arith.addf %234, %235 : vector<64x1xf32>
    %cst_106 = arith.constant 5.000000e-01 : f32
    %237 = vector.broadcast %cst_106 : f32 to vector<64x1xf32>
    %238 = arith.mulf %237, %236 : vector<64x1xf32>
    %239 = math.tanh %238 : vector<64x1xf32>
    %cst_107 = arith.constant 1.000000e+00 : f32
    %240 = vector.broadcast %cst_107 : f32 to vector<64x1xf32>
    %241 = arith.addf %239, %240 : vector<64x1xf32>
    %cst_108 = arith.constant 5.000000e-01 : f32
    %242 = vector.broadcast %cst_108 : f32 to vector<64x1xf32>
    %243 = arith.mulf %242, %241 : vector<64x1xf32>
    %244 = vector.broadcast %243 : vector<64x1xf32> to vector<64x256xf32>
    %245 = arith.mulf %216, %244 : vector<64x256xf32>
    %cst_109 = arith.constant dense<0.000000e+00> : vector<16x256xf32>
    %246 = tpu.matmul %1, %245, %cst_109 {dimension_numbers = #tpu.dot_dimension_numbers<[1], [0], [0], [1], [0, 0, 1, 1], [], []>} : vector<16x64xf32>, vector<64x256xf32>, vector<16x256xf32> -> vector<16x256xf32>
    %247 = vector.broadcast %4 : vector<16x1xf32> to vector<16x256xf32>
    %248 = arith.addf %246, %247 : vector<16x256xf32>
    %249 = arith.addf %248, %141 : vector<16x256xf32>
    %c1_110 = arith.constant 1 : index
    %c0_111 = arith.constant 0 : index
    %c0_112 = arith.constant 0 : index
    %250 = vector.load %arg13[%c1_110, %c0_111, %c0_112] : memref<2x16x256xf32, #tpu.memory_space<vmem>>, vector<1x16x256xf32>
    %251 = vector.shape_cast %250 : vector<1x16x256xf32> to vector<16x256xf32>
    %252 = vector.shape_cast %249 : vector<16x256xf32> to vector<1x16x256xf32>
    tpu.vector_store %arg13[%c1_110, %c0_111, %c0_112], %252 {strides = array<i32>} : memref<2x16x256xf32, #tpu.memory_space<vmem>>, vector<1x16x256xf32>,
    return
  }
  func.func @transform_0(%arg0: i32) -> (i32, i32, i32) {
    %c0_i32 = arith.constant 0 : i32
    %c0_i32_0 = arith.constant 0 : i32
    %c0_i32_1 = arith.constant 0 : i32
    return %arg0, %c0_i32, %c0_i32_0 : i32, i32, i32
  }
  func.func @transform_1(%arg0: i32) -> (i32, i32, i32) {
    %c0_i32 = arith.constant 0 : i32
    %c0_i32_0 = arith.constant 0 : i32
    %c0_i32_1 = arith.constant 0 : i32
    %c0_i32_2 = arith.constant 0 : i32
    return %c0_i32, %c0_i32_0, %c0_i32_1 : i32, i32, i32
  }
  func.func @transform_2(%arg0: i32) -> (i32, i32) {
    %c0_i32 = arith.constant 0 : i32
    %c0_i32_0 = arith.constant 0 : i32
    %c0_i32_1 = arith.constant 0 : i32
    return %c0_i32, %c0_i32_0 : i32, i32
  }
  func.func @transform_3(%arg0: i32) -> (i32, i32) {
    %c0_i32 = arith.constant 0 : i32
    %c0_i32_0 = arith.constant 0 : i32
    %c0_i32_1 = arith.constant 0 : i32
    return %c0_i32, %c0_i32_0 : i32, i32
  }
  func.func @transform_4(%arg0: i32) -> (i32, i32, i32) {
    %c0_i32 = arith.constant 0 : i32
    %c0_i32_0 = arith.constant 0 : i32
    %c0_i32_1 = arith.constant 0 : i32
    %c0_i32_2 = arith.constant 0 : i32
    return %c0_i32, %c0_i32_0, %c0_i32_1 : i32, i32, i32
  }
  func.func @transform_5(%arg0: i32) -> (i32, i32) {
    %c0_i32 = arith.constant 0 : i32
    %c0_i32_0 = arith.constant 0 : i32
    %c0_i32_1 = arith.constant 0 : i32
    return %c0_i32, %c0_i32_0 : i32, i32
  }
  func.func @transform_6(%arg0: i32) -> (i32, i32) {
    %c0_i32 = arith.constant 0 : i32
    %c0_i32_0 = arith.constant 0 : i32
    %c0_i32_1 = arith.constant 0 : i32
    return %c0_i32, %c0_i32_0 : i32, i32
  }
  func.func @transform_7(%arg0: i32) -> (i32, i32) {
    %c0_i32 = arith.constant 0 : i32
    %c0_i32_0 = arith.constant 0 : i32
    %c0_i32_1 = arith.constant 0 : i32
    return %c0_i32, %c0_i32_0 : i32, i32
  }
  func.func @transform_8(%arg0: i32) -> (i32, i32) {
    %c0_i32 = arith.constant 0 : i32
    %c0_i32_0 = arith.constant 0 : i32
    %c0_i32_1 = arith.constant 0 : i32
    return %c0_i32, %c0_i32_0 : i32, i32
  }
  func.func @transform_9(%arg0: i32) -> (i32, i32) {
    %c0_i32 = arith.constant 0 : i32
    %c0_i32_0 = arith.constant 0 : i32
    %c0_i32_1 = arith.constant 0 : i32
    return %c0_i32, %c0_i32_0 : i32, i32
  }
  func.func @transform_10(%arg0: i32) -> (i32, i32) {
    %c0_i32 = arith.constant 0 : i32
    %c0_i32_0 = arith.constant 0 : i32
    %c0_i32_1 = arith.constant 0 : i32
    return %c0_i32, %c0_i32_0 : i32, i32
  }
  func.func @transform_11(%arg0: i32) -> (i32, i32) {
    %c0_i32 = arith.constant 0 : i32
    %c0_i32_0 = arith.constant 0 : i32
    %c0_i32_1 = arith.constant 0 : i32
    return %c0_i32, %c0_i32_0 : i32, i32
  }
  func.func @transform_12(%arg0: i32) -> (i32, i32, i32) {
    %c0_i32 = arith.constant 0 : i32
    %c0_i32_0 = arith.constant 0 : i32
    %c0_i32_1 = arith.constant 0 : i32
    return %arg0, %c0_i32, %c0_i32_0 : i32, i32, i32
  }
}

</mosaic_0001>

<llo_original>
// kernel: tpu_custom_call.1
$region0: #{tpu_custom_call.1}
  #allocation0 [shape = 'u32[]', space=smem, size = 0x4, offset = 0x4, fixed_abs, tag = 'smem constant byte address 0x4 - core index']
  #allocation1 [shape = 'u32[144,128]{1,0:T(1,128)}', space=vmem, size = 0x12000, scoped, tag = 'internal scratch']
  %s0 = inlined_call_operand.vmem [shape: f32[2,16,256], index: 0, kind: input, shape index: {}]
  %s1 = inlined_call_operand.vmem [shape: f32[3,1,256], index: 1, kind: input, shape index: {}]
  %s2 = inlined_call_operand.vmem [shape: f32[64,16], index: 2, kind: input, shape index: {}]
  %s3 = inlined_call_operand.vmem [shape: f32[64,1], index: 3, kind: input, shape index: {}]
  %s4 = inlined_call_operand.vmem [shape: f32[9,64,1], index: 4, kind: input, shape index: {}]
  %s5 = inlined_call_operand.vmem [shape: f32[64,1], index: 5, kind: input, shape index: {}]
  %s6 = inlined_call_operand.vmem [shape: f32[4,64], index: 6, kind: input, shape index: {}]
  %s7 = inlined_call_operand.vmem [shape: f32[4,1], index: 7, kind: input, shape index: {}]
  %s8 = inlined_call_operand.vmem [shape: f32[64,4], index: 8, kind: input, shape index: {}]
  %s9 = inlined_call_operand.vmem [shape: f32[64,1], index: 9, kind: input, shape index: {}]
  %s10 = inlined_call_operand.vmem [shape: f32[16,64], index: 10, kind: input, shape index: {}]
  %s11 = inlined_call_operand.vmem [shape: f32[16,1], index: 11, kind: input, shape index: {}]
  %s12 = inlined_call_operand.hbm [shape: f32[2,16,256], index: 12, kind: output, shape index: {}]
  %s13 = sld [smem:[#allocation0]]
  $region58: #{tpu_custom_call.1} parent=0
    _
  %s15 = ssub.s32 1, %s13
  %s16 = scalar_select 0, %s15, %s13
  $region1: #{tpu_custom_call.1} parent=0
    #allocation2 [shape = 'u8[32768]{0}', space=vmem, size = 0x8000, scoped, tag = 'output window, operand 0, single buffered']
    #allocation3 [shape = 's32[1]{0}', space=sflag, size = 0x4, scoped, tag = 'scoped memory for tpu_custom_call.1']
    %17 = vsyncpa [#allocation3], 0
    // Predicated region
    $region2: #{tpu_custom_call.1} parent=1 // pred_check
      _
    $region3: #{tpu_custom_call.1} parent=1 // pred_check_branch
      %19 = sbr.rel (0) target = $region5
    $region4: #{tpu_custom_call.1} parent=1 // pred_region
      _
    $region5: #{tpu_custom_call.1} parent=1 // pred_fallthru
      _
    // Predicated region
    $region6: #{tpu_custom_call.1} parent=1 // pred_check
      _
    $region7: #{tpu_custom_call.1} parent=1 // pred_check_branch
      %21 = sbr.rel (0) target = $region9
    $region8: #{tpu_custom_call.1} parent=1 // pred_region
      _
    $region9: #{tpu_custom_call.1} parent=1 // pred_fallthru
      _
    // Predicated region
    $region10: #{tpu_custom_call.1} parent=1 // pred_check
      _
    $region11: #{tpu_custom_call.1} parent=1 // pred_check_branch
      %23 = sbr.rel (0) target = $region13
    $region12: #{tpu_custom_call.1} parent=1 // pred_region
      _
    $region13: #{tpu_custom_call.1} parent=1 // pred_fallthru
      _
    // Predicated region
    $region14: #{tpu_custom_call.1} parent=1 // pred_check
      _
    $region15: #{tpu_custom_call.1} parent=1 // pred_check_branch
      %25 = sbr.rel (0) target = $region17
    $region16: #{tpu_custom_call.1} parent=1 // pred_region
      _
    $region17: #{tpu_custom_call.1} parent=1 // pred_fallthru
      _
    // Predicated region
    $region18: #{tpu_custom_call.1} parent=1 // pred_check
      _
    $region19: #{tpu_custom_call.1} parent=1 // pred_check_branch
      %27 = sbr.rel (0) target = $region21
    $region20: #{tpu_custom_call.1} parent=1 // pred_region
      _
    $region21: #{tpu_custom_call.1} parent=1 // pred_fallthru
      _
    // Predicated region
    $region22: #{tpu_custom_call.1} parent=1 // pred_check
      _
    $region23: #{tpu_custom_call.1} parent=1 // pred_check_branch
      %29 = sbr.rel (0) target = $region25
    $region24: #{tpu_custom_call.1} parent=1 // pred_region
      _
    $region25: #{tpu_custom_call.1} parent=1 // pred_fallthru
      _
    // Predicated region
    $region26: #{tpu_custom_call.1} parent=1 // pred_check
      _
    $region27: #{tpu_custom_call.1} parent=1 // pred_check_branch
      %31 = sbr.rel (0) target = $region29
    $region28: #{tpu_custom_call.1} parent=1 // pred_region
      _
    $region29: #{tpu_custom_call.1} parent=1 // pred_fallthru
      _
    // Predicated region
    $region30: #{tpu_custom_call.1} parent=1 // pred_check
      _
    $region31: #{tpu_custom_call.1} parent=1 // pred_check_branch
      %33 = sbr.rel (0) target = $region33
    $region32: #{tpu_custom_call.1} parent=1 // pred_region
      _
    $region33: #{tpu_custom_call.1} parent=1 // pred_fallthru
      _
    // Predicated region
    $region34: #{tpu_custom_call.1} parent=1 // pred_check
      _
    $region35: #{tpu_custom_call.1} parent=1 // pred_check_branch
      %35 = sbr.rel (0) target = $region37
    $region36: #{tpu_custom_call.1} parent=1 // pred_region
      _
    $region37: #{tpu_custom_call.1} parent=1 // pred_fallthru
      _
    // Predicated region
    $region38: #{tpu_custom_call.1} parent=1 // pred_check
      _
    $region39: #{tpu_custom_call.1} parent=1 // pred_check_branch
      %37 = sbr.rel (0) target = $region41
    $region40: #{tpu_custom_call.1} parent=1 // pred_region
      _
    $region41: #{tpu_custom_call.1} parent=1 // pred_fallthru
      _
    // Predicated region
    $region42: #{tpu_custom_call.1} parent=1 // pred_check
      _
    $region43: #{tpu_custom_call.1} parent=1 // pred_check_branch
      %39 = sbr.rel (0) target = $region45
    $region44: #{tpu_custom_call.1} parent=1 // pred_region
      _
    $region45: #{tpu_custom_call.1} parent=1 // pred_fallthru
      _
    // Predicated region
    $region46: #{tpu_custom_call.1} parent=1 // pred_check
      _
    $region47: #{tpu_custom_call.1} parent=1 // pred_check_branch
      %41 = sbr.rel (0) target = $region49
    $region48: #{tpu_custom_call.1} parent=1 // pred_region
      _
    $region49: #{tpu_custom_call.1} parent=1 // pred_fallthru
      _
    %v42 = vld [vmem:[%s2] sm:$0xff]
    %v43 = vld [vmem:[%s2 + $0x8] sm:$0xff]
    %v44 = vld [vmem:[%s2 + $0x10] sm:$0xff]
    %v45 = vld [vmem:[%s2 + $0x18] sm:$0xff]
    %v46 = vld [vmem:[%s2 + $0x20] sm:$0xff]
    %v47 = vld [vmem:[%s2 + $0x28] sm:$0xff]
    %v48 = vld [vmem:[%s2 + $0x30] sm:$0xff]
    %v49 = vld [vmem:[%s2 + $0x38] sm:$0xff]
    %v50 = vld [vmem:[%s10] sm:$0xff]
    %v51 = vld [vmem:[%s10 + $0x8] sm:$0xff]
    %v52 = vld [vmem:[%s3] sm:$0xff]
    %v53 = vld [vmem:[%s3 + $0x8] sm:$0xff]
    %v54 = vld [vmem:[%s3 + $0x10] sm:$0xff]
    %v55 = vld [vmem:[%s3 + $0x18] sm:$0xff]
    %v56 = vld [vmem:[%s3 + $0x20] sm:$0xff]
    %v57 = vld [vmem:[%s3 + $0x28] sm:$0xff]
    %v58 = vld [vmem:[%s3 + $0x30] sm:$0xff]
    %v59 = vld [vmem:[%s3 + $0x38] sm:$0xff]
    %v60 = vld [vmem:[%s5] sm:$0xff]
    %v61 = vld [vmem:[%s5 + $0x8] sm:$0xff]
    %v62 = vld [vmem:[%s5 + $0x10] sm:$0xff]
    %v63 = vld [vmem:[%s5 + $0x18] sm:$0xff]
    %v64 = vld [vmem:[%s5 + $0x20] sm:$0xff]
    %v65 = vld [vmem:[%s5 + $0x28] sm:$0xff]
    %v66 = vld [vmem:[%s5 + $0x30] sm:$0xff]
    %v67 = vld [vmem:[%s5 + $0x38] sm:$0xff]
    %v68 = vld [vmem:[%s11] sm:$0xff]
    %v69 = vld [vmem:[%s11 + $0x8] sm:$0xff]
    %v70 = vld [vmem:[%s4] sm:$0xff]
    %v71 = vld [vmem:[%s4 + $0x8] sm:$0xff]
    %v72 = vld [vmem:[%s4 + $0x10] sm:$0xff]
    %v73 = vld [vmem:[%s4 + $0x18] sm:$0xff]
    %v74 = vld [vmem:[%s4 + $0x20] sm:$0xff]
    %v75 = vld [vmem:[%s4 + $0x28] sm:$0xff]
    %v76 = vld [vmem:[%s4 + $0x30] sm:$0xff]
    %v77 = vld [vmem:[%s4 + $0x38] sm:$0xff]
    %s78 = scalar_lea.vmem %s4, 64
    %v79 = vld [vmem:[%s78] sm:$0xff]
    %v80 = vld [vmem:[%s78 + $0x8] sm:$0xff]
    %v81 = vld [vmem:[%s78 + $0x10] sm:$0xff]
    %v82 = vld [vmem:[%s78 + $0x18] sm:$0xff]
    %v83 = vld [vmem:[%s78 + $0x20] sm:$0xff]
    %v84 = vld [vmem:[%s78 + $0x28] sm:$0xff]
    %v85 = vld [vmem:[%s78 + $0x30] sm:$0xff]
    %v86 = vld [vmem:[%s78 + $0x38] sm:$0xff]
    %s87 = scalar_lea.vmem %s4, 128
    %v88 = vld [vmem:[%s87] sm:$0xff]
    %v89 = vld [vmem:[%s87 + $0x8] sm:$0xff]
    %v90 = vld [vmem:[%s87 + $0x10] sm:$0xff]
    %v91 = vld [vmem:[%s87 + $0x18] sm:$0xff]
    %v92 = vld [vmem:[%s87 + $0x20] sm:$0xff]
    %v93 = vld [vmem:[%s87 + $0x28] sm:$0xff]
    %v94 = vld [vmem:[%s87 + $0x30] sm:$0xff]
    %v95 = vld [vmem:[%s87 + $0x38] sm:$0xff]
    %s96 = scalar_lea.vmem %s4, 192
    %v97 = vld [vmem:[%s96] sm:$0xff]
    %v98 = vld [vmem:[%s96 + $0x8] sm:$0xff]
    %v99 = vld [vmem:[%s96 + $0x10] sm:$0xff]
    %v100 = vld [vmem:[%s96 + $0x18] sm:$0xff]
    %v101 = vld [vmem:[%s96 + $0x20] sm:$0xff]
    %v102 = vld [vmem:[%s96 + $0x28] sm:$0xff]
    %v103 = vld [vmem:[%s96 + $0x30] sm:$0xff]
    %v104 = vld [vmem:[%s96 + $0x38] sm:$0xff]
    %s105 = scalar_lea.vmem %s4, 256
    %v106 = vld [vmem:[%s105] sm:$0xff]
    %v107 = vld [vmem:[%s105 + $0x8] sm:$0xff]
    %v108 = vld [vmem:[%s105 + $0x10] sm:$0xff]
    %v109 = vld [vmem:[%s105 + $0x18] sm:$0xff]
    %v110 = vld [vmem:[%s105 + $0x20] sm:$0xff]
    %v111 = vld [vmem:[%s105 + $0x28] sm:$0xff]
    %v112 = vld [vmem:[%s105 + $0x30] sm:$0xff]
    %v113 = vld [vmem:[%s105 + $0x38] sm:$0xff]
    %s114 = scalar_lea.vmem %s4, 320
    %v115 = vld [vmem:[%s114] sm:$0xff]
    %v116 = vld [vmem:[%s114 + $0x8] sm:$0xff]
    %v117 = vld [vmem:[%s114 + $0x10] sm:$0xff]
    %v118 = vld [vmem:[%s114 + $0x18] sm:$0xff]
    %v119 = vld [vmem:[%s114 + $0x20] sm:$0xff]
    %v120 = vld [vmem:[%s114 + $0x28] sm:$0xff]
    %v121 = vld [vmem:[%s114 + $0x30] sm:$0xff]
    %v122 = vld [vmem:[%s114 + $0x38] sm:$0xff]
    %s123 = scalar_lea.vmem %s4, 384
    %v124 = vld [vmem:[%s123] sm:$0xff]
    %v125 = vld [vmem:[%s123 + $0x8] sm:$0xff]
    %v126 = vld [vmem:[%s123 + $0x10] sm:$0xff]
    %v127 = vld [vmem:[%s123 + $0x18] sm:$0xff]
    %v128 = vld [vmem:[%s123 + $0x20] sm:$0xff]
    %v129 = vld [vmem:[%s123 + $0x28] sm:$0xff]
    %v130 = vld [vmem:[%s123 + $0x30] sm:$0xff]
    %v131 = vld [vmem:[%s123 + $0x38] sm:$0xff]
    %s132 = scalar_lea.vmem %s4, 448
    %v133 = vld [vmem:[%s132] sm:$0xff]
    %v134 = vld [vmem:[%s132 + $0x8] sm:$0xff]
    %v135 = vld [vmem:[%s132 + $0x10] sm:$0xff]
    %v136 = vld [vmem:[%s132 + $0x18] sm:$0xff]
    %v137 = vld [vmem:[%s132 + $0x20] sm:$0xff]
    %v138 = vld [vmem:[%s132 + $0x28] sm:$0xff]
    %v139 = vld [vmem:[%s132 + $0x30] sm:$0xff]
    %v140 = vld [vmem:[%s132 + $0x38] sm:$0xff]
    %s141 = scalar_lea.vmem %s4, 512
    %v142 = vld [vmem:[%s141] sm:$0xff]
    %v143 = vld [vmem:[%s141 + $0x8] sm:$0xff]
    %v144 = vld [vmem:[%s141 + $0x10] sm:$0xff]
    %v145 = vld [vmem:[%s141 + $0x18] sm:$0xff]
    %v146 = vld [vmem:[%s141 + $0x20] sm:$0xff]
    %v147 = vld [vmem:[%s141 + $0x28] sm:$0xff]
    %v148 = vld [vmem:[%s141 + $0x30] sm:$0xff]
    %v149 = vld [vmem:[%s141 + $0x38] sm:$0xff]
    %v150 = vld [vmem:[%s1] sm:$0x3]
    %s151 = scalar_lea.vmem %s1, 4
    %v152 = vld [vmem:[%s151] sm:$0x3]
    %v153 = vld [vmem:[%s0] sm:$0xff]
    %v154 = vld [vmem:[%s0 + $0x8] sm:$0xff]
    %v155 = vld [vmem:[%s0 + $0x10] sm:$0xff]
    %v156 = vld [vmem:[%s0 + $0x18] sm:$0xff]
    %158 = vset.pattern.permute.xlu0 0
    %159 = vperm.xlu0 %158, %v52
    %v160 = vpop.permute.xlu0 %159
    %163 = vset.pattern.permute.xlu0 0
    %164 = vperm.xlu0 %163, %v53
    %v165 = vpop.permute.xlu0 %164
    %168 = vset.pattern.permute.xlu0 0
    %169 = vperm.xlu0 %168, %v54
    %v170 = vpop.permute.xlu0 %169
    %173 = vset.pattern.permute.xlu0 0
    %174 = vperm.xlu0 %173, %v55
    %v175 = vpop.permute.xlu0 %174
    %178 = vset.pattern.permute.xlu0 0
    %179 = vperm.xlu0 %178, %v56
    %v180 = vpop.permute.xlu0 %179
    %183 = vset.pattern.permute.xlu0 0
    %184 = vperm.xlu0 %183, %v57
    %v185 = vpop.permute.xlu0 %184
    %188 = vset.pattern.permute.xlu0 0
    %189 = vperm.xlu0 %188, %v58
    %v190 = vpop.permute.xlu0 %189
    %193 = vset.pattern.permute.xlu0 0
    %194 = vperm.xlu0 %193, %v59
    %v195 = vpop.permute.xlu0 %194
    %vm197 = vcmask 130048
    %v199 = vsel %vm197, %v42, 0
    %v202 = vsel %vm197, %v43, 0
    %v205 = vsel %vm197, %v44, 0
    %v208 = vsel %vm197, %v45, 0
    %v211 = vsel %vm197, %v46, 0
    %v214 = vsel %vm197, %v47, 0
    %v217 = vsel %vm197, %v48, 0
    %v220 = vsel %vm197, %v49, 0
    %222 = vmatprep.subr.mxu0 %v154
    %223 = vmatpush1.msra.mxu0 %v153
    %224 = vmatprep.subr.mxu0 %v156
    %225 = vmatpush1.msra.mxu0 %v155
    %226 = vmatprep.subr.mxu0 0.0
    %227 = vmatpush1.msra.mxu0 0.0
    %228 = vmatprep.subr.mxu0 0.0
    %229 = vmatpush1.msra.mxu0 0.0
    %230 = vmatprep.subr.mxu0 0.0
    %231 = vmatpush1.msra.mxu0 0.0
    %232 = vmatprep.subr.mxu0 0.0
    %233 = vmatpush1.msra.mxu0 0.0
    %234 = vmatprep.subr.mxu0 0.0
    %235 = vmatpush1.msra.mxu0 0.0
    %236 = vmatprep.subr.mxu0 0.0
    %237 = vmatpush1.msra.mxu0 0.0
    %238 = vmatprep.subr.mxu0 0.0
    %239 = vmatpush1.msra.mxu0 0.0
    %240 = vmatprep.subr.mxu0 0.0
    %241 = vmatpush1.msra.mxu0 0.0
    %242 = vmatprep.subr.mxu0 0.0
    %243 = vmatpush1.msra.mxu0 0.0
    %244 = vmatprep.subr.mxu0 0.0
    %245 = vmatpush1.msra.mxu0 0.0
    %246 = vmatprep.subr.mxu0 0.0
    %247 = vmatpush1.msra.mxu0 0.0
    %248 = vmatprep.subr.mxu0 0.0
    %249 = vmatpush1.msra.mxu0 0.0
    %250 = vmatprep.subr.mxu0 0.0
    %251 = vmatpush1.msra.mxu0 0.0
    %252 = vmatprep.subr.mxu0 0.0
    %253 = vmatpush1.msra.mxu0 0.0
    %254 = vmatprep.subr.mxu0 0.0
    %255 = vmatpush1.msra.mxu0 0.0
    %256 = vmatprep.subr.mxu0 0.0
    %257 = vmatpush1.msra.mxu0 0.0
    %258 = vmatprep.subr.mxu0 0.0
    %259 = vmatpush1.msra.mxu0 0.0
    %260 = vmatprep.subr.mxu0 0.0
    %261 = vmatpush1.msra.mxu0 0.0
    %262 = vmatprep.subr.mxu0 0.0
    %263 = vmatpush1.msra.mxu0 0.0
    %264 = vmatprep.subr.mxu0 0.0
    %265 = vmatpush1.msra.mxu0 0.0
    %266 = vmatprep.subr.mxu0 0.0
    %267 = vmatpush1.msra.mxu0 0.0
    %268 = vmatprep.subr.mxu0 0.0
    %269 = vmatpush1.msra.mxu0 0.0
    %270 = vmatprep.subr.mxu0 0.0
    %271 = vmatpush1.msra.mxu0 0.0
    %272 = vmatprep.subr.mxu0 0.0
    %273 = vmatpush1.msra.mxu0 0.0
    %274 = vmatprep.subr.mxu0 0.0
    %275 = vmatpush1.msra.mxu0 0.0
    %276 = vmatprep.subr.mxu0 0.0
    %277 = vmatpush1.msra.mxu0 0.0
    %278 = vmatprep.subr.mxu0 0.0
    %279 = vmatpush1.msra.mxu0 0.0
    %280 = vmatprep.subr.mxu0 0.0
    %281 = vmatpush1.msra.mxu0 0.0
    %282 = vmatprep.subr.mxu0 0.0
    %283 = vmatpush1.msra.mxu0 0.0
    %284 = vmatprep.subr.mxu0 0.0
    %285 = vmatpush1.msra.mxu0 0.0
    %286 = vmatprep.mubr.f32.mxu0 0.0
    %287 = vmatmul.mubr.f32.gmra.mrb[0].mxu0 %v199
    %v288 = vpop.f32.mrb[0].mxu0
    %v289 = vadd.f32 %v160, %v288
    %v290 = vpop.f32.mrb[0].mxu0
    %v291 = vadd.f32 %v160, %v290
    %292 = vmatprep.mubr.f32.mxu0 0.0
    %293 = vmatmul.mubr.f32.gmra.mrb[0].mxu0 %v202
    %v294 = vpop.f32.mrb[0].mxu0
    %v295 = vadd.f32 %v165, %v294
    %v296 = vpop.f32.mrb[0].mxu0
    %v297 = vadd.f32 %v165, %v296
    %298 = vmatprep.mubr.f32.mxu0 0.0
    %299 = vmatmul.mubr.f32.gmra.mrb[0].mxu0 %v205
    %v300 = vpop.f32.mrb[0].mxu0
    %v301 = vadd.f32 %v170, %v300
    %v302 = vpop.f32.mrb[0].mxu0
    %v303 = vadd.f32 %v170, %v302
    %304 = vmatprep.mubr.f32.mxu0 0.0
    %305 = vmatmul.mubr.f32.gmra.mrb[0].mxu0 %v208
    %v306 = vpop.f32.mrb[0].mxu0
    %v307 = vadd.f32 %v175, %v306
    %v308 = vpop.f32.mrb[0].mxu0
    %v309 = vadd.f32 %v175, %v308
    %310 = vmatprep.mubr.f32.mxu0 0.0
    %311 = vmatmul.mubr.f32.gmra.mrb[0].mxu0 %v211
    %v312 = vpop.f32.mrb[0].mxu0
    %v313 = vadd.f32 %v180, %v312
    %v314 = vpop.f32.mrb[0].mxu0
    %v315 = vadd.f32 %v180, %v314
    %316 = vmatprep.mubr.f32.mxu0 0.0
    %317 = vmatmul.mubr.f32.gmra.mrb[0].mxu0 %v214
    %v318 = vpop.f32.mrb[0].mxu0
    %v319 = vadd.f32 %v185, %v318
    %v320 = vpop.f32.mrb[0].mxu0
    %v321 = vadd.f32 %v185, %v320
    %322 = vmatprep.mubr.f32.mxu0 0.0
    %323 = vmatmul.mubr.f32.gmra.mrb[0].mxu0 %v217
    %v324 = vpop.f32.mrb[0].mxu0
    %v325 = vadd.f32 %v190, %v324
    %v326 = vpop.f32.mrb[0].mxu0
    %v327 = vadd.f32 %v190, %v326
    %328 = vmatprep.mubr.f32.mxu0 0.0
    %329 = vmatmul.mubr.f32.gmra.mrb[0].mxu0 %v220
    %v330 = vpop.f32.mrb[0].mxu0
    %v331 = vadd.f32 %v195, %v330
    %v332 = vpop.f32.mrb[0].mxu0
    %v333 = vadd.f32 %v195, %v332
    %334 = vdwg.mxu0
    %v335 = vmul.f32 %v289, 0.5
    %v336 = vmul.f32 %v291, 0.5
    %v337 = vmul.f32 %v295, 0.5
    %v338 = vmul.f32 %v297, 0.5
    %v339 = vmul.f32 %v301, 0.5
    %v340 = vmul.f32 %v303, 0.5
    %v341 = vmul.f32 %v307, 0.5
    %v342 = vmul.f32 %v309, 0.5
    %v343 = vmul.f32 %v313, 0.5
    %v344 = vmul.f32 %v315, 0.5
    %v345 = vmul.f32 %v319, 0.5
    %v346 = vmul.f32 %v321, 0.5
    %v347 = vmul.f32 %v325, 0.5
    %v348 = vmul.f32 %v327, 0.5
    %v349 = vmul.f32 %v331, 0.5
    %v350 = vmul.f32 %v333, 0.5
    %v351 = vtanh.pop %v335
    %v352 = vtanh.pop %v336
    %v353 = vtanh.pop %v337
    %v354 = vtanh.pop %v338
    %v355 = vtanh.pop %v339
    %v356 = vtanh.pop %v340
    %v357 = vtanh.pop %v341
    %v358 = vtanh.pop %v342
    %v359 = vtanh.pop %v343
    %v360 = vtanh.pop %v344
    %v361 = vtanh.pop %v345
    %v362 = vtanh.pop %v346
    %v363 = vtanh.pop %v347
    %v364 = vtanh.pop %v348
    %v365 = vtanh.pop %v349
    %v366 = vtanh.pop %v350
    %v367 = vadd.f32 %v351, 1.0
    %v368 = vadd.f32 %v352, 1.0
    %v369 = vadd.f32 %v353, 1.0
    %v370 = vadd.f32 %v354, 1.0
    %v371 = vadd.f32 %v355, 1.0
    %v372 = vadd.f32 %v356, 1.0
    %v373 = vadd.f32 %v357, 1.0
    %v374 = vadd.f32 %v358, 1.0
    %v375 = vadd.f32 %v359, 1.0
    %v376 = vadd.f32 %v360, 1.0
    %v377 = vadd.f32 %v361, 1.0
    %v378 = vadd.f32 %v362, 1.0
    %v379 = vadd.f32 %v363, 1.0
    %v380 = vadd.f32 %v364, 1.0
    %v381 = vadd.f32 %v365, 1.0
    %v382 = vadd.f32 %v366, 1.0
    %v383 = vmul.f32 %v367, 0.5
    %v384 = vmul.f32 %v368, 0.5
    %v385 = vmul.f32 %v369, 0.5
    %v386 = vmul.f32 %v370, 0.5
    %v387 = vmul.f32 %v371, 0.5
    %v388 = vmul.f32 %v372, 0.5
    %v389 = vmul.f32 %v373, 0.5
    %v390 = vmul.f32 %v374, 0.5
    %v391 = vmul.f32 %v375, 0.5
    %v392 = vmul.f32 %v376, 0.5
    %v393 = vmul.f32 %v377, 0.5
    %v394 = vmul.f32 %v378, 0.5
    %v395 = vmul.f32 %v379, 0.5
    %v396 = vmul.f32 %v380, 0.5
    %v397 = vmul.f32 %v381, 0.5
    %v398 = vmul.f32 %v382, 0.5
    %v399 = vmul.f32 %v289, %v383
    %v400 = vmul.f32 %v291, %v384
    %v401 = vmul.f32 %v295, %v385
    %v402 = vmul.f32 %v297, %v386
    %v403 = vmul.f32 %v301, %v387
    %v404 = vmul.f32 %v303, %v388
    %v405 = vmul.f32 %v307, %v389
    %v406 = vmul.f32 %v309, %v390
    %v407 = vmul.f32 %v313, %v391
    %v408 = vmul.f32 %v315, %v392
    %v409 = vmul.f32 %v319, %v393
    %v410 = vmul.f32 %v321, %v394
    %v411 = vmul.f32 %v325, %v395
    %v412 = vmul.f32 %v327, %v396
    %v413 = vmul.f32 %v331, %v397
    %v414 = vmul.f32 %v333, %v398
    %v416 = vlaneseq
    %v417 = vshrl.u32 %v416, 7
    %v418 = vsub.s32 0, %v417
    %v419 = vrot.slane %v150, %v418
    %v420 = vlaneseq
    %v421 = vshrl.u32 %v420, 7
    %v422 = vsub.s32 1, %v421
    %v423 = vrot.slane %v150, %v422
    %v426 = vmul.f32 %v399, %v419
    %v427 = vmul.f32 %v400, %v423
    %v428 = vmul.f32 %v401, %v419
    %v429 = vmul.f32 %v402, %v423
    %v430 = vmul.f32 %v403, %v419
    %v431 = vmul.f32 %v404, %v423
    %v432 = vmul.f32 %v405, %v419
    %v433 = vmul.f32 %v406, %v423
    %v434 = vmul.f32 %v407, %v419
    %v435 = vmul.f32 %v408, %v423
    %v436 = vmul.f32 %v409, %v419
    %v437 = vmul.f32 %v410, %v423
    %v438 = vmul.f32 %v411, %v419
    %v439 = vmul.f32 %v412, %v423
    %v440 = vmul.f32 %v413, %v419
    %v441 = vmul.f32 %v414, %v423
    %v443 = vlaneseq
    %v444 = vshrl.u32 %v443, 7
    %v445 = vsub.s32 0, %v444
    %v446 = vrot.slane %v152, %v445
    %v447 = vlaneseq
    %v448 = vshrl.u32 %v447, 7
    %v449 = vsub.s32 1, %v448
    %v450 = vrot.slane %v152, %v449
    %v453 = vmul.f32 %v399, %v446
    %v454 = vmul.f32 %v400, %v450
    %v455 = vmul.f32 %v401, %v446
    %v456 = vmul.f32 %v402, %v450
    %v457 = vmul.f32 %v403, %v446
    %v458 = vmul.f32 %v404, %v450
    %v459 = vmul.f32 %v405, %v446
    %v460 = vmul.f32 %v406, %v450
    %v461 = vmul.f32 %v407, %v446
    %v462 = vmul.f32 %v408, %v450
    %v463 = vmul.f32 %v409, %v446
    %v464 = vmul.f32 %v410, %v450
    %v465 = vmul.f32 %v411, %v446
    %v466 = vmul.f32 %v412, %v450
    %v467 = vmul.f32 %v413, %v446
    %v468 = vmul.f32 %v414, %v450
    %470 = vset.pattern.permute.xlu0 0
    %471 = vperm.xlu0 %470, %v106
    %v472 = vpop.permute.xlu0 %471
    %475 = vset.pattern.permute.xlu0 0
    %476 = vperm.xlu0 %475, %v107
    %v477 = vpop.permute.xlu0 %476
    %480 = vset.pattern.permute.xlu0 0
    %481 = vperm.xlu0 %480, %v108
    %v482 = vpop.permute.xlu0 %481
    %485 = vset.pattern.permute.xlu0 0
    %486 = vperm.xlu0 %485, %v109
    %v487 = vpop.permute.xlu0 %486
    %490 = vset.pattern.permute.xlu0 0
    %491 = vperm.xlu0 %490, %v110
    %v492 = vpop.permute.xlu0 %491
    %495 = vset.pattern.permute.xlu0 0
    %496 = vperm.xlu0 %495, %v111
    %v497 = vpop.permute.xlu0 %496
    %500 = vset.pattern.permute.xlu0 0
    %501 = vperm.xlu0 %500, %v112
    %v502 = vpop.permute.xlu0 %501
    %505 = vset.pattern.permute.xlu0 0
    %506 = vperm.xlu0 %505, %v113
    %v507 = vpop.permute.xlu0 %506
    %v509 = vmul.f32 %v399, %v472
    %v510 = vmul.f32 %v400, %v472
    %v511 = vmul.f32 %v401, %v477
    %v512 = vmul.f32 %v402, %v477
    %v513 = vmul.f32 %v403, %v482
    %v514 = vmul.f32 %v404, %v482
    %v515 = vmul.f32 %v405, %v487
    %v516 = vmul.f32 %v406, %v487
    %v517 = vmul.f32 %v407, %v492
    %v518 = vmul.f32 %v408, %v492
    %v519 = vmul.f32 %v409, %v497
    %v520 = vmul.f32 %v410, %v497
    %v521 = vmul.f32 %v411, %v502
    %v522 = vmul.f32 %v412, %v502
    %v523 = vmul.f32 %v413, %v507
    %v524 = vmul.f32 %v414, %v507
    %541 = vrot.lane.b32.xlu0 %v426, 17
    %v542 = vpop.permute.xlu0 %541
    %543 = vrot.lane.b32.xlu0 %v427, 17
    %v544 = vpop.permute.xlu0 %543
    %545 = vrot.lane.b32.xlu0 %v428, 17
    %v546 = vpop.permute.xlu0 %545
    %547 = vrot.lane.b32.xlu0 %v429, 17
    %v548 = vpop.permute.xlu0 %547
    %549 = vrot.lane.b32.xlu0 %v430, 17
    %v550 = vpop.permute.xlu0 %549
    %551 = vrot.lane.b32.xlu0 %v431, 17
    %v552 = vpop.permute.xlu0 %551
    %553 = vrot.lane.b32.xlu0 %v432, 17
    %v554 = vpop.permute.xlu0 %553
    %555 = vrot.lane.b32.xlu0 %v433, 17
    %v556 = vpop.permute.xlu0 %555
    %557 = vrot.lane.b32.xlu0 %v434, 17
    %v558 = vpop.permute.xlu0 %557
    %559 = vrot.lane.b32.xlu0 %v435, 17
    %v560 = vpop.permute.xlu0 %559
    %561 = vrot.lane.b32.xlu0 %v436, 17
    %v562 = vpop.permute.xlu0 %561
    %563 = vrot.lane.b32.xlu0 %v437, 17
    %v564 = vpop.permute.xlu0 %563
    %565 = vrot.lane.b32.xlu0 %v438, 17
    %v566 = vpop.permute.xlu0 %565
    %567 = vrot.lane.b32.xlu0 %v439, 17
    %v568 = vpop.permute.xlu0 %567
    %569 = vrot.lane.b32.xlu0 %v440, 17
    %v570 = vpop.permute.xlu0 %569
    %571 = vrot.lane.b32.xlu0 %v441, 17
    %v572 = vpop.permute.xlu0 %571
    %vm573 = vcmask 138240
    %v574 = vsel %vm573, %v542, %v544
    %v575 = vsel %vm573, %v546, %v548
    %v576 = vsel %vm573, %v550, %v552
    %v577 = vsel %vm573, %v554, %v556
    %v578 = vsel %vm573, %v558, %v560
    %v579 = vsel %vm573, %v562, %v564
    %v580 = vsel %vm573, %v566, %v568
    %v581 = vsel %vm573, %v570, %v572
    %v598 = vsel %vm573, 0.0, %v542
    %v599 = vsel %vm573, 0.0, %v546
    %v600 = vsel %vm573, 0.0, %v550
    %v601 = vsel %vm573, 0.0, %v554
    %v602 = vsel %vm573, 0.0, %v558
    %v603 = vsel %vm573, 0.0, %v562
    %v604 = vsel %vm573, 0.0, %v566
    %v605 = vsel %vm573, 0.0, %v570
    %607 = vset.pattern.permute.xlu0 0
    %608 = vperm.xlu0 %607, %v70
    %v609 = vpop.permute.xlu0 %608
    %612 = vset.pattern.permute.xlu0 0
    %613 = vperm.xlu0 %612, %v71
    %v614 = vpop.permute.xlu0 %613
    %617 = vset.pattern.permute.xlu0 0
    %618 = vperm.xlu0 %617, %v72
    %v619 = vpop.permute.xlu0 %618
    %622 = vset.pattern.permute.xlu0 0
    %623 = vperm.xlu0 %622, %v73
    %v624 = vpop.permute.xlu0 %623
    %627 = vset.pattern.permute.xlu0 0
    %628 = vperm.xlu0 %627, %v74
    %v629 = vpop.permute.xlu0 %628
    %632 = vset.pattern.permute.xlu0 0
    %633 = vperm.xlu0 %632, %v75
    %v634 = vpop.permute.xlu0 %633
    %637 = vset.pattern.permute.xlu0 0
    %638 = vperm.xlu0 %637, %v76
    %v639 = vpop.permute.xlu0 %638
    %642 = vset.pattern.permute.xlu0 0
    %643 = vperm.xlu0 %642, %v77
    %v644 = vpop.permute.xlu0 %643
    %v646 = vmul.f32 %v598, %v609
    %v647 = vmul.f32 %v574, %v609
    %v648 = vmul.f32 %v599, %v614
    %v649 = vmul.f32 %v575, %v614
    %v650 = vmul.f32 %v600, %v619
    %v651 = vmul.f32 %v576, %v619
    %v652 = vmul.f32 %v601, %v624
    %v653 = vmul.f32 %v577, %v624
    %v654 = vmul.f32 %v602, %v629
    %v655 = vmul.f32 %v578, %v629
    %v656 = vmul.f32 %v603, %v634
    %v657 = vmul.f32 %v579, %v634
    %v658 = vmul.f32 %v604, %v639
    %v659 = vmul.f32 %v580, %v639
    %v660 = vmul.f32 %v605, %v644
    %v661 = vmul.f32 %v581, %v644
    %v662 = vadd.f32 %v509, %v646
    %v663 = vadd.f32 %v510, %v647
    %v664 = vadd.f32 %v511, %v648
    %v665 = vadd.f32 %v512, %v649
    %v666 = vadd.f32 %v513, %v650
    %v667 = vadd.f32 %v514, %v651
    %v668 = vadd.f32 %v515, %v652
    %v669 = vadd.f32 %v516, %v653
    %v670 = vadd.f32 %v517, %v654
    %v671 = vadd.f32 %v518, %v655
    %v672 = vadd.f32 %v519, %v656
    %v673 = vadd.f32 %v520, %v657
    %v674 = vadd.f32 %v521, %v658
    %v675 = vadd.f32 %v522, %v659
    %v676 = vadd.f32 %v523, %v660
    %v677 = vadd.f32 %v524, %v661
    %694 = vrot.lane.b32.xlu0 %v399, 16
    %v695 = vpop.permute.xlu0 %694
    %696 = vrot.lane.b32.xlu0 %v400, 16
    %v697 = vpop.permute.xlu0 %696
    %698 = vrot.lane.b32.xlu0 %v401, 16
    %v699 = vpop.permute.xlu0 %698
    %700 = vrot.lane.b32.xlu0 %v402, 16
    %v701 = vpop.permute.xlu0 %700
    %702 = vrot.lane.b32.xlu0 %v403, 16
    %v703 = vpop.permute.xlu0 %702
    %704 = vrot.lane.b32.xlu0 %v404, 16
    %v705 = vpop.permute.xlu0 %704
    %706 = vrot.lane.b32.xlu0 %v405, 16
    %v707 = vpop.permute.xlu0 %706
    %708 = vrot.lane.b32.xlu0 %v406, 16
    %v709 = vpop.permute.xlu0 %708
    %710 = vrot.lane.b32.xlu0 %v407, 16
    %v711 = vpop.permute.xlu0 %710
    %712 = vrot.lane.b32.xlu0 %v408, 16
    %v713 = vpop.permute.xlu0 %712
    %714 = vrot.lane.b32.xlu0 %v409, 16
    %v715 = vpop.permute.xlu0 %714
    %716 = vrot.lane.b32.xlu0 %v410, 16
    %v717 = vpop.permute.xlu0 %716
    %718 = vrot.lane.b32.xlu0 %v411, 16
    %v719 = vpop.permute.xlu0 %718
    %720 = vrot.lane.b32.xlu0 %v412, 16
    %v721 = vpop.permute.xlu0 %720
    %722 = vrot.lane.b32.xlu0 %v413, 16
    %v723 = vpop.permute.xlu0 %722
    %724 = vrot.lane.b32.xlu0 %v414, 16
    %v725 = vpop.permute.xlu0 %724
    %v726 = vsel %vm197, %v695, %v697
    %v727 = vsel %vm197, %v699, %v701
    %v728 = vsel %vm197, %v703, %v705
    %v729 = vsel %vm197, %v707, %v709
    %v730 = vsel %vm197, %v711, %v713
    %v731 = vsel %vm197, %v715, %v717
    %v732 = vsel %vm197, %v719, %v721
    %v733 = vsel %vm197, %v723, %v725
    %v750 = vsel %vm197, 0.0, %v695
    %v751 = vsel %vm197, 0.0, %v699
    %v752 = vsel %vm197, 0.0, %v703
    %v753 = vsel %vm197, 0.0, %v707
    %v754 = vsel %vm197, 0.0, %v711
    %v755 = vsel %vm197, 0.0, %v715
    %v756 = vsel %vm197, 0.0, %v719
    %v757 = vsel %vm197, 0.0, %v723
    %759 = vset.pattern.permute.xlu0 0
    %760 = vperm.xlu0 %759, %v79
    %v761 = vpop.permute.xlu0 %760
    %764 = vset.pattern.permute.xlu0 0
    %765 = vperm.xlu0 %764, %v80
    %v766 = vpop.permute.xlu0 %765
    %769 = vset.pattern.permute.xlu0 0
    %770 = vperm.xlu0 %769, %v81
    %v771 = vpop.permute.xlu0 %770
    %774 = vset.pattern.permute.xlu0 0
    %775 = vperm.xlu0 %774, %v82
    %v776 = vpop.permute.xlu0 %775
    %779 = vset.pattern.permute.xlu0 0
    %780 = vperm.xlu0 %779, %v83
    %v781 = vpop.permute.xlu0 %780
    %784 = vset.pattern.permute.xlu0 0
    %785 = vperm.xlu0 %784, %v84
    %v786 = vpop.permute.xlu0 %785
    %789 = vset.pattern.permute.xlu0 0
    %790 = vperm.xlu0 %789, %v85
    %v791 = vpop.permute.xlu0 %790
    %794 = vset.pattern.permute.xlu0 0
    %795 = vperm.xlu0 %794, %v86
    %v796 = vpop.permute.xlu0 %795
    %v798 = vmul.f32 %v750, %v761
    %v799 = vmul.f32 %v726, %v761
    %v800 = vmul.f32 %v751, %v766
    %v801 = vmul.f32 %v727, %v766
    %v802 = vmul.f32 %v752, %v771
    %v803 = vmul.f32 %v728, %v771
    %v804 = vmul.f32 %v753, %v776
    %v805 = vmul.f32 %v729, %v776
    %v806 = vmul.f32 %v754, %v781
    %v807 = vmul.f32 %v730, %v781
    %v808 = vmul.f32 %v755, %v786
    %v809 = vmul.f32 %v731, %v786
    %v810 = vmul.f32 %v756, %v791
    %v811 = vmul.f32 %v732, %v791
    %v812 = vmul.f32 %v757, %v796
    %v813 = vmul.f32 %v733, %v796
    %v814 = vadd.f32 %v662, %v798
    %v815 = vadd.f32 %v663, %v799
    %v816 = vadd.f32 %v664, %v800
    %v817 = vadd.f32 %v665, %v801
    %v818 = vadd.f32 %v666, %v802
    %v819 = vadd.f32 %v667, %v803
    %v820 = vadd.f32 %v668, %v804
    %v821 = vadd.f32 %v669, %v805
    %v822 = vadd.f32 %v670, %v806
    %v823 = vadd.f32 %v671, %v807
    %v824 = vadd.f32 %v672, %v808
    %v825 = vadd.f32 %v673, %v809
    %v826 = vadd.f32 %v674, %v810
    %v827 = vadd.f32 %v675, %v811
    %v828 = vadd.f32 %v676, %v812
    %v829 = vadd.f32 %v677, %v813
    %846 = vrot.lane.b32.xlu0 %v453, 15
    %v847 = vpop.permute.xlu0 %846
    %848 = vrot.lane.b32.xlu0 %v454, 15
    %v849 = vpop.permute.xlu0 %848
    %850 = vrot.lane.b32.xlu0 %v455, 15
    %v851 = vpop.permute.xlu0 %850
    %852 = vrot.lane.b32.xlu0 %v456, 15
    %v853 = vpop.permute.xlu0 %852
    %854 = vrot.lane.b32.xlu0 %v457, 15
    %v855 = vpop.permute.xlu0 %854
    %856 = vrot.lane.b32.xlu0 %v458, 15
    %v857 = vpop.permute.xlu0 %856
    %858 = vrot.lane.b32.xlu0 %v459, 15
    %v859 = vpop.permute.xlu0 %858
    %860 = vrot.lane.b32.xlu0 %v460, 15
    %v861 = vpop.permute.xlu0 %860
    %862 = vrot.lane.b32.xlu0 %v461, 15
    %v863 = vpop.permute.xlu0 %862
    %864 = vrot.lane.b32.xlu0 %v462, 15
    %v865 = vpop.permute.xlu0 %864
    %866 = vrot.lane.b32.xlu0 %v463, 15
    %v867 = vpop.permute.xlu0 %866
    %868 = vrot.lane.b32.xlu0 %v464, 15
    %v869 = vpop.permute.xlu0 %868
    %870 = vrot.lane.b32.xlu0 %v465, 15
    %v871 = vpop.permute.xlu0 %870
    %872 = vrot.lane.b32.xlu0 %v466, 15
    %v873 = vpop.permute.xlu0 %872
    %874 = vrot.lane.b32.xlu0 %v467, 15
    %v875 = vpop.permute.xlu0 %874
    %876 = vrot.lane.b32.xlu0 %v468, 15
    %v877 = vpop.permute.xlu0 %876
    %vm878 = vcmask 121856
    %v879 = vsel %vm878, %v847, %v849
    %v880 = vsel %vm878, %v851, %v853
    %v881 = vsel %vm878, %v855, %v857
    %v882 = vsel %vm878, %v859, %v861
    %v883 = vsel %vm878, %v863, %v865
    %v884 = vsel %vm878, %v867, %v869
    %v885 = vsel %vm878, %v871, %v873
    %v886 = vsel %vm878, %v875, %v877
    %v903 = vsel %vm878, 0.0, %v847
    %v904 = vsel %vm878, 0.0, %v851
    %v905 = vsel %vm878, 0.0, %v855
    %v906 = vsel %vm878, 0.0, %v859
    %v907 = vsel %vm878, 0.0, %v863
    %v908 = vsel %vm878, 0.0, %v867
    %v909 = vsel %vm878, 0.0, %v871
    %v910 = vsel %vm878, 0.0, %v875
    %912 = vset.pattern.permute.xlu0 0
    %913 = vperm.xlu0 %912, %v88
    %v914 = vpop.permute.xlu0 %913
    %917 = vset.pattern.permute.xlu0 0
    %918 = vperm.xlu0 %917, %v89
    %v919 = vpop.permute.xlu0 %918
    %922 = vset.pattern.permute.xlu0 0
    %923 = vperm.xlu0 %922, %v90
    %v924 = vpop.permute.xlu0 %923
    %927 = vset.pattern.permute.xlu0 0
    %928 = vperm.xlu0 %927, %v91
    %v929 = vpop.permute.xlu0 %928
    %932 = vset.pattern.permute.xlu0 0
    %933 = vperm.xlu0 %932, %v92
    %v934 = vpop.permute.xlu0 %933
    %937 = vset.pattern.permute.xlu0 0
    %938 = vperm.xlu0 %937, %v93
    %v939 = vpop.permute.xlu0 %938
    %942 = vset.pattern.permute.xlu0 0
    %943 = vperm.xlu0 %942, %v94
    %v944 = vpop.permute.xlu0 %943
    %947 = vset.pattern.permute.xlu0 0
    %948 = vperm.xlu0 %947, %v95
    %v949 = vpop.permute.xlu0 %948
    %v951 = vmul.f32 %v903, %v914
    %v952 = vmul.f32 %v879, %v914
    %v953 = vmul.f32 %v904, %v919
    %v954 = vmul.f32 %v880, %v919
    %v955 = vmul.f32 %v905, %v924
    %v956 = vmul.f32 %v881, %v924
    %v957 = vmul.f32 %v906, %v929
    %v958 = vmul.f32 %v882, %v929
    %v959 = vmul.f32 %v907, %v934
    %v960 = vmul.f32 %v883, %v934
    %v961 = vmul.f32 %v908, %v939
    %v962 = vmul.f32 %v884, %v939
    %v963 = vmul.f32 %v909, %v944
    %v964 = vmul.f32 %v885, %v944
    %v965 = vmul.f32 %v910, %v949
    %v966 = vmul.f32 %v886, %v949
    %v967 = vadd.f32 %v814, %v951
    %v968 = vadd.f32 %v815, %v952
    %v969 = vadd.f32 %v816, %v953
    %v970 = vadd.f32 %v817, %v954
    %v971 = vadd.f32 %v818, %v955
    %v972 = vadd.f32 %v819, %v956
    %v973 = vadd.f32 %v820, %v957
    %v974 = vadd.f32 %v821, %v958
    %v975 = vadd.f32 %v822, %v959
    %v976 = vadd.f32 %v823, %v960
    %v977 = vadd.f32 %v824, %v961
    %v978 = vadd.f32 %v825, %v962
    %v979 = vadd.f32 %v826, %v963
    %v980 = vadd.f32 %v827, %v964
    %v981 = vadd.f32 %v828, %v965
    %v982 = vadd.f32 %v829, %v966
    %983 = vrot.lane.b32.xlu0 %v426, 1
    %v984 = vpop.permute.xlu0 %983
    %985 = vrot.lane.b32.xlu0 %v427, 1
    %v986 = vpop.permute.xlu0 %985
    %987 = vrot.lane.b32.xlu0 %v428, 1
    %v988 = vpop.permute.xlu0 %987
    %989 = vrot.lane.b32.xlu0 %v429, 1
    %v990 = vpop.permute.xlu0 %989
    %991 = vrot.lane.b32.xlu0 %v430, 1
    %v992 = vpop.permute.xlu0 %991
    %993 = vrot.lane.b32.xlu0 %v431, 1
    %v994 = vpop.permute.xlu0 %993
    %995 = vrot.lane.b32.xlu0 %v432, 1
    %v996 = vpop.permute.xlu0 %995
    %997 = vrot.lane.b32.xlu0 %v433, 1
    %v998 = vpop.permute.xlu0 %997
    %999 = vrot.lane.b32.xlu0 %v434, 1
    %v1000 = vpop.permute.xlu0 %999
    %1001 = vrot.lane.b32.xlu0 %v435, 1
    %v1002 = vpop.permute.xlu0 %1001
    %1003 = vrot.lane.b32.xlu0 %v436, 1
    %v1004 = vpop.permute.xlu0 %1003
    %1005 = vrot.lane.b32.xlu0 %v437, 1
    %v1006 = vpop.permute.xlu0 %1005
    %1007 = vrot.lane.b32.xlu0 %v438, 1
    %v1008 = vpop.permute.xlu0 %1007
    %1009 = vrot.lane.b32.xlu0 %v439, 1
    %v1010 = vpop.permute.xlu0 %1009
    %1011 = vrot.lane.b32.xlu0 %v440, 1
    %v1012 = vpop.permute.xlu0 %1011
    %1013 = vrot.lane.b32.xlu0 %v441, 1
    %v1014 = vpop.permute.xlu0 %1013
    %vm1015 = vcmask 7168
    %v1016 = vsel %vm1015, %v984, %v986
    %v1017 = vsel %vm1015, %v988, %v990
    %v1018 = vsel %vm1015, %v992, %v994
    %v1019 = vsel %vm1015, %v996, %v998
    %v1020 = vsel %vm1015, %v1000, %v1002
    %v1021 = vsel %vm1015, %v1004, %v1006
    %v1022 = vsel %vm1015, %v1008, %v1010
    %v1023 = vsel %vm1015, %v1012, %v1014
    %v1040 = vsel %vm1015, 0.0, %v984
    %v1041 = vsel %vm1015, 0.0, %v988
    %v1042 = vsel %vm1015, 0.0, %v992
    %v1043 = vsel %vm1015, 0.0, %v996
    %v1044 = vsel %vm1015, 0.0, %v1000
    %v1045 = vsel %vm1015, 0.0, %v1004
    %v1046 = vsel %vm1015, 0.0, %v1008
    %v1047 = vsel %vm1015, 0.0, %v1012
    %1049 = vset.pattern.permute.xlu0 0
    %1050 = vperm.xlu0 %1049, %v97
    %v1051 = vpop.permute.xlu0 %1050
    %1054 = vset.pattern.permute.xlu0 0
    %1055 = vperm.xlu0 %1054, %v98
    %v1056 = vpop.permute.xlu0 %1055
    %1059 = vset.pattern.permute.xlu0 0
    %1060 = vperm.xlu0 %1059, %v99
    %v1061 = vpop.permute.xlu0 %1060
    %1064 = vset.pattern.permute.xlu0 0
    %1065 = vperm.xlu0 %1064, %v100
    %v1066 = vpop.permute.xlu0 %1065
    %1069 = vset.pattern.permute.xlu0 0
    %1070 = vperm.xlu0 %1069, %v101
    %v1071 = vpop.permute.xlu0 %1070
    %1074 = vset.pattern.permute.xlu0 0
    %1075 = vperm.xlu0 %1074, %v102
    %v1076 = vpop.permute.xlu0 %1075
    %1079 = vset.pattern.permute.xlu0 0
    %1080 = vperm.xlu0 %1079, %v103
    %v1081 = vpop.permute.xlu0 %1080
    %1084 = vset.pattern.permute.xlu0 0
    %1085 = vperm.xlu0 %1084, %v104
    %v1086 = vpop.permute.xlu0 %1085
    %v1088 = vmul.f32 %v1040, %v1051
    %v1089 = vmul.f32 %v1016, %v1051
    %v1090 = vmul.f32 %v1041, %v1056
    %v1091 = vmul.f32 %v1017, %v1056
    %v1092 = vmul.f32 %v1042, %v1061
    %v1093 = vmul.f32 %v1018, %v1061
    %v1094 = vmul.f32 %v1043, %v1066
    %v1095 = vmul.f32 %v1019, %v1066
    %v1096 = vmul.f32 %v1044, %v1071
    %v1097 = vmul.f32 %v1020, %v1071
    %v1098 = vmul.f32 %v1045, %v1076
    %v1099 = vmul.f32 %v1021, %v1076
    %v1100 = vmul.f32 %v1046, %v1081
    %v1101 = vmul.f32 %v1022, %v1081
    %v1102 = vmul.f32 %v1047, %v1086
    %v1103 = vmul.f32 %v1023, %v1086
    %v1104 = vadd.f32 %v967, %v1088
    %v1105 = vadd.f32 %v968, %v1089
    %v1106 = vadd.f32 %v969, %v1090
    %v1107 = vadd.f32 %v970, %v1091
    %v1108 = vadd.f32 %v971, %v1092
    %v1109 = vadd.f32 %v972, %v1093
    %v1110 = vadd.f32 %v973, %v1094
    %v1111 = vadd.f32 %v974, %v1095
    %v1112 = vadd.f32 %v975, %v1096
    %v1113 = vadd.f32 %v976, %v1097
    %v1114 = vadd.f32 %v977, %v1098
    %v1115 = vadd.f32 %v978, %v1099
    %v1116 = vadd.f32 %v979, %v1100
    %v1117 = vadd.f32 %v980, %v1101
    %v1118 = vadd.f32 %v981, %v1102
    %v1119 = vadd.f32 %v982, %v1103
    %1120 = vrot.lane.b32.xlu0 %v453, 127
    %v1121 = vpop.permute.xlu0 %1120
    %1122 = vrot.lane.b32.xlu0 %v454, 127
    %v1123 = vpop.permute.xlu0 %1122
    %1124 = vrot.lane.b32.xlu0 %v455, 127
    %v1125 = vpop.permute.xlu0 %1124
    %1126 = vrot.lane.b32.xlu0 %v456, 127
    %v1127 = vpop.permute.xlu0 %1126
    %1128 = vrot.lane.b32.xlu0 %v457, 127
    %v1129 = vpop.permute.xlu0 %1128
    %1130 = vrot.lane.b32.xlu0 %v458, 127
    %v1131 = vpop.permute.xlu0 %1130
    %1132 = vrot.lane.b32.xlu0 %v459, 127
    %v1133 = vpop.permute.xlu0 %1132
    %1134 = vrot.lane.b32.xlu0 %v460, 127
    %v1135 = vpop.permute.xlu0 %1134
    %1136 = vrot.lane.b32.xlu0 %v461, 127
    %v1137 = vpop.permute.xlu0 %1136
    %1138 = vrot.lane.b32.xlu0 %v462, 127
    %v1139 = vpop.permute.xlu0 %1138
    %1140 = vrot.lane.b32.xlu0 %v463, 127
    %v1141 = vpop.permute.xlu0 %1140
    %1142 = vrot.lane.b32.xlu0 %v464, 127
    %v1143 = vpop.permute.xlu0 %1142
    %1144 = vrot.lane.b32.xlu0 %v465, 127
    %v1145 = vpop.permute.xlu0 %1144
    %1146 = vrot.lane.b32.xlu0 %v466, 127
    %v1147 = vpop.permute.xlu0 %1146
    %1148 = vrot.lane.b32.xlu0 %v467, 127
    %v1149 = vpop.permute.xlu0 %1148
    %1150 = vrot.lane.b32.xlu0 %v468, 127
    %v1151 = vpop.permute.xlu0 %1150
    %vm1152 = vcmask 1039360
    %v1153 = vsel %vm1152, %v1121, %v1123
    %v1154 = vsel %vm1152, %v1125, %v1127
    %v1155 = vsel %vm1152, %v1129, %v1131
    %v1156 = vsel %vm1152, %v1133, %v1135
    %v1157 = vsel %vm1152, %v1137, %v1139
    %v1158 = vsel %vm1152, %v1141, %v1143
    %v1159 = vsel %vm1152, %v1145, %v1147
    %v1160 = vsel %vm1152, %v1149, %v1151
    %v1177 = vsel %vm1152, %v1123, 0.0
    %v1178 = vsel %vm1152, %v1127, 0.0
    %v1179 = vsel %vm1152, %v1131, 0.0
    %v1180 = vsel %vm1152, %v1135, 0.0
    %v1181 = vsel %vm1152, %v1139, 0.0
    %v1182 = vsel %vm1152, %v1143, 0.0
    %v1183 = vsel %vm1152, %v1147, 0.0
    %v1184 = vsel %vm1152, %v1151, 0.0
    %1186 = vset.pattern.permute.xlu0 0
    %1187 = vperm.xlu0 %1186, %v115
    %v1188 = vpop.permute.xlu0 %1187
    %1191 = vset.pattern.permute.xlu0 0
    %1192 = vperm.xlu0 %1191, %v116
    %v1193 = vpop.permute.xlu0 %1192
    %1196 = vset.pattern.permute.xlu0 0
    %1197 = vperm.xlu0 %1196, %v117
    %v1198 = vpop.permute.xlu0 %1197
    %1201 = vset.pattern.permute.xlu0 0
    %1202 = vperm.xlu0 %1201, %v118
    %v1203 = vpop.permute.xlu0 %1202
    %1206 = vset.pattern.permute.xlu0 0
    %1207 = vperm.xlu0 %1206, %v119
    %v1208 = vpop.permute.xlu0 %1207
    %1211 = vset.pattern.permute.xlu0 0
    %1212 = vperm.xlu0 %1211, %v120
    %v1213 = vpop.permute.xlu0 %1212
    %1216 = vset.pattern.permute.xlu0 0
    %1217 = vperm.xlu0 %1216, %v121
    %v1218 = vpop.permute.xlu0 %1217
    %1221 = vset.pattern.permute.xlu0 0
    %1222 = vperm.xlu0 %1221, %v122
    %v1223 = vpop.permute.xlu0 %1222
    %v1225 = vmul.f32 %v1153, %v1188
    %v1226 = vmul.f32 %v1177, %v1188
    %v1227 = vmul.f32 %v1154, %v1193
    %v1228 = vmul.f32 %v1178, %v1193
    %v1229 = vmul.f32 %v1155, %v1198
    %v1230 = vmul.f32 %v1179, %v1198
    %v1231 = vmul.f32 %v1156, %v1203
    %v1232 = vmul.f32 %v1180, %v1203
    %v1233 = vmul.f32 %v1157, %v1208
    %v1234 = vmul.f32 %v1181, %v1208
    %v1235 = vmul.f32 %v1158, %v1213
    %v1236 = vmul.f32 %v1182, %v1213
    %v1237 = vmul.f32 %v1159, %v1218
    %v1238 = vmul.f32 %v1183, %v1218
    %v1239 = vmul.f32 %v1160, %v1223
    %v1240 = vmul.f32 %v1184, %v1223
    %v1241 = vadd.f32 %v1104, %v1225
    %v1242 = vadd.f32 %v1105, %v1226
    %v1243 = vadd.f32 %v1106, %v1227
    %v1244 = vadd.f32 %v1107, %v1228
    %v1245 = vadd.f32 %v1108, %v1229
    %v1246 = vadd.f32 %v1109, %v1230
    %v1247 = vadd.f32 %v1110, %v1231
    %v1248 = vadd.f32 %v1111, %v1232
    %v1249 = vadd.f32 %v1112, %v1233
    %v1250 = vadd.f32 %v1113, %v1234
    %v1251 = vadd.f32 %v1114, %v1235
    %v1252 = vadd.f32 %v1115, %v1236
    %v1253 = vadd.f32 %v1116, %v1237
    %v1254 = vadd.f32 %v1117, %v1238
    %v1255 = vadd.f32 %v1118, %v1239
    %v1256 = vadd.f32 %v1119, %v1240
    %1257 = vrot.lane.b32.xlu0 %v426, 113
    %v1258 = vpop.permute.xlu0 %1257
    %1259 = vrot.lane.b32.xlu0 %v427, 113
    %v1260 = vpop.permute.xlu0 %1259
    %1261 = vrot.lane.b32.xlu0 %v428, 113
    %v1262 = vpop.permute.xlu0 %1261
    %1263 = vrot.lane.b32.xlu0 %v429, 113
    %v1264 = vpop.permute.xlu0 %1263
    %1265 = vrot.lane.b32.xlu0 %v430, 113
    %v1266 = vpop.permute.xlu0 %1265
    %1267 = vrot.lane.b32.xlu0 %v431, 113
    %v1268 = vpop.permute.xlu0 %1267
    %1269 = vrot.lane.b32.xlu0 %v432, 113
    %v1270 = vpop.permute.xlu0 %1269
    %1271 = vrot.lane.b32.xlu0 %v433, 113
    %v1272 = vpop.permute.xlu0 %1271
    %1273 = vrot.lane.b32.xlu0 %v434, 113
    %v1274 = vpop.permute.xlu0 %1273
    %1275 = vrot.lane.b32.xlu0 %v435, 113
    %v1276 = vpop.permute.xlu0 %1275
    %1277 = vrot.lane.b32.xlu0 %v436, 113
    %v1278 = vpop.permute.xlu0 %1277
    %1279 = vrot.lane.b32.xlu0 %v437, 113
    %v1280 = vpop.permute.xlu0 %1279
    %1281 = vrot.lane.b32.xlu0 %v438, 113
    %v1282 = vpop.permute.xlu0 %1281
    %1283 = vrot.lane.b32.xlu0 %v439, 113
    %v1284 = vpop.permute.xlu0 %1283
    %1285 = vrot.lane.b32.xlu0 %v440, 113
    %v1286 = vpop.permute.xlu0 %1285
    %1287 = vrot.lane.b32.xlu0 %v441, 113
    %v1288 = vpop.permute.xlu0 %1287
    %vm1289 = vcmask 924672
    %v1290 = vsel %vm1289, %v1258, %v1260
    %v1291 = vsel %vm1289, %v1262, %v1264
    %v1292 = vsel %vm1289, %v1266, %v1268
    %v1293 = vsel %vm1289, %v1270, %v1272
    %v1294 = vsel %vm1289, %v1274, %v1276
    %v1295 = vsel %vm1289, %v1278, %v1280
    %v1296 = vsel %vm1289, %v1282, %v1284
    %v1297 = vsel %vm1289, %v1286, %v1288
    %v1314 = vsel %vm1289, %v1260, 0.0
    %v1315 = vsel %vm1289, %v1264, 0.0
    %v1316 = vsel %vm1289, %v1268, 0.0
    %v1317 = vsel %vm1289, %v1272, 0.0
    %v1318 = vsel %vm1289, %v1276, 0.0
    %v1319 = vsel %vm1289, %v1280, 0.0
    %v1320 = vsel %vm1289, %v1284, 0.0
    %v1321 = vsel %vm1289, %v1288, 0.0
    %1323 = vset.pattern.permute.xlu0 0
    %1324 = vperm.xlu0 %1323, %v124
    %v1325 = vpop.permute.xlu0 %1324
    %1328 = vset.pattern.permute.xlu0 0
    %1329 = vperm.xlu0 %1328, %v125
    %v1330 = vpop.permute.xlu0 %1329
    %1333 = vset.pattern.permute.xlu0 0
    %1334 = vperm.xlu0 %1333, %v126
    %v1335 = vpop.permute.xlu0 %1334
    %1338 = vset.pattern.permute.xlu0 0
    %1339 = vperm.xlu0 %1338, %v127
    %v1340 = vpop.permute.xlu0 %1339
    %1343 = vset.pattern.permute.xlu0 0
    %1344 = vperm.xlu0 %1343, %v128
    %v1345 = vpop.permute.xlu0 %1344
    %1348 = vset.pattern.permute.xlu0 0
    %1349 = vperm.xlu0 %1348, %v129
    %v1350 = vpop.permute.xlu0 %1349
    %1353 = vset.pattern.permute.xlu0 0
    %1354 = vperm.xlu0 %1353, %v130
    %v1355 = vpop.permute.xlu0 %1354
    %1358 = vset.pattern.permute.xlu0 0
    %1359 = vperm.xlu0 %1358, %v131
    %v1360 = vpop.permute.xlu0 %1359
    %v1362 = vmul.f32 %v1290, %v1325
    %v1363 = vmul.f32 %v1314, %v1325
    %v1364 = vmul.f32 %v1291, %v1330
    %v1365 = vmul.f32 %v1315, %v1330
    %v1366 = vmul.f32 %v1292, %v1335
    %v1367 = vmul.f32 %v1316, %v1335
    %v1368 = vmul.f32 %v1293, %v1340
    %v1369 = vmul.f32 %v1317, %v1340
    %v1370 = vmul.f32 %v1294, %v1345
    %v1371 = vmul.f32 %v1318, %v1345
    %v1372 = vmul.f32 %v1295, %v1350
    %v1373 = vmul.f32 %v1319, %v1350
    %v1374 = vmul.f32 %v1296, %v1355
    %v1375 = vmul.f32 %v1320, %v1355
    %v1376 = vmul.f32 %v1297, %v1360
    %v1377 = vmul.f32 %v1321, %v1360
    %v1378 = vadd.f32 %v1241, %v1362
    %v1379 = vadd.f32 %v1242, %v1363
    %v1380 = vadd.f32 %v1243, %v1364
    %v1381 = vadd.f32 %v1244, %v1365
    %v1382 = vadd.f32 %v1245, %v1366
    %v1383 = vadd.f32 %v1246, %v1367
    %v1384 = vadd.f32 %v1247, %v1368
    %v1385 = vadd.f32 %v1248, %v1369
    %v1386 = vadd.f32 %v1249, %v1370
    %v1387 = vadd.f32 %v1250, %v1371
    %v1388 = vadd.f32 %v1251, %v1372
    %v1389 = vadd.f32 %v1252, %v1373
    %v1390 = vadd.f32 %v1253, %v1374
    %v1391 = vadd.f32 %v1254, %v1375
    %v1392 = vadd.f32 %v1255, %v1376
    %v1393 = vadd.f32 %v1256, %v1377
    %1394 = vrot.lane.b32.xlu0 %v399, 112
    %v1395 = vpop.permute.xlu0 %1394
    %1396 = vrot.lane.b32.xlu0 %v400, 112
    %v1397 = vpop.permute.xlu0 %1396
    %1398 = vrot.lane.b32.xlu0 %v401, 112
    %v1399 = vpop.permute.xlu0 %1398
    %1400 = vrot.lane.b32.xlu0 %v402, 112
    %v1401 = vpop.permute.xlu0 %1400
    %1402 = vrot.lane.b32.xlu0 %v403, 112
    %v1403 = vpop.permute.xlu0 %1402
    %1404 = vrot.lane.b32.xlu0 %v404, 112
    %v1405 = vpop.permute.xlu0 %1404
    %1406 = vrot.lane.b32.xlu0 %v405, 112
    %v1407 = vpop.permute.xlu0 %1406
    %1408 = vrot.lane.b32.xlu0 %v406, 112
    %v1409 = vpop.permute.xlu0 %1408
    %1410 = vrot.lane.b32.xlu0 %v407, 112
    %v1411 = vpop.permute.xlu0 %1410
    %1412 = vrot.lane.b32.xlu0 %v408, 112
    %v1413 = vpop.permute.xlu0 %1412
    %1414 = vrot.lane.b32.xlu0 %v409, 112
    %v1415 = vpop.permute.xlu0 %1414
    %1416 = vrot.lane.b32.xlu0 %v410, 112
    %v1417 = vpop.permute.xlu0 %1416
    %1418 = vrot.lane.b32.xlu0 %v411, 112
    %v1419 = vpop.permute.xlu0 %1418
    %1420 = vrot.lane.b32.xlu0 %v412, 112
    %v1421 = vpop.permute.xlu0 %1420
    %1422 = vrot.lane.b32.xlu0 %v413, 112
    %v1423 = vpop.permute.xlu0 %1422
    %1424 = vrot.lane.b32.xlu0 %v414, 112
    %v1425 = vpop.permute.xlu0 %1424
    %vm1426 = vcmask 916480
    %v1427 = vsel %vm1426, %v1395, %v1397
    %v1428 = vsel %vm1426, %v1399, %v1401
    %v1429 = vsel %vm1426, %v1403, %v1405
    %v1430 = vsel %vm1426, %v1407, %v1409
    %v1431 = vsel %vm1426, %v1411, %v1413
    %v1432 = vsel %vm1426, %v1415, %v1417
    %v1433 = vsel %vm1426, %v1419, %v1421
    %v1434 = vsel %vm1426, %v1423, %v1425
    %v1451 = vsel %vm1426, %v1397, 0.0
    %v1452 = vsel %vm1426, %v1401, 0.0
    %v1453 = vsel %vm1426, %v1405, 0.0
    %v1454 = vsel %vm1426, %v1409, 0.0
    %v1455 = vsel %vm1426, %v1413, 0.0
    %v1456 = vsel %vm1426, %v1417, 0.0
    %v1457 = vsel %vm1426, %v1421, 0.0
    %v1458 = vsel %vm1426, %v1425, 0.0
    %1460 = vset.pattern.permute.xlu0 0
    %1461 = vperm.xlu0 %1460, %v133
    %v1462 = vpop.permute.xlu0 %1461
    %1465 = vset.pattern.permute.xlu0 0
    %1466 = vperm.xlu0 %1465, %v134
    %v1467 = vpop.permute.xlu0 %1466
    %1470 = vset.pattern.permute.xlu0 0
    %1471 = vperm.xlu0 %1470, %v135
    %v1472 = vpop.permute.xlu0 %1471
    %1475 = vset.pattern.permute.xlu0 0
    %1476 = vperm.xlu0 %1475, %v136
    %v1477 = vpop.permute.xlu0 %1476
    %1480 = vset.pattern.permute.xlu0 0
    %1481 = vperm.xlu0 %1480, %v137
    %v1482 = vpop.permute.xlu0 %1481
    %1485 = vset.pattern.permute.xlu0 0
    %1486 = vperm.xlu0 %1485, %v138
    %v1487 = vpop.permute.xlu0 %1486
    %1490 = vset.pattern.permute.xlu0 0
    %1491 = vperm.xlu0 %1490, %v139
    %v1492 = vpop.permute.xlu0 %1491
    %1495 = vset.pattern.permute.xlu0 0
    %1496 = vperm.xlu0 %1495, %v140
    %v1497 = vpop.permute.xlu0 %1496
    %v1499 = vmul.f32 %v1427, %v1462
    %v1500 = vmul.f32 %v1451, %v1462
    %v1501 = vmul.f32 %v1428, %v1467
    %v1502 = vmul.f32 %v1452, %v1467
    %v1503 = vmul.f32 %v1429, %v1472
    %v1504 = vmul.f32 %v1453, %v1472
    %v1505 = vmul.f32 %v1430, %v1477
    %v1506 = vmul.f32 %v1454, %v1477
    %v1507 = vmul.f32 %v1431, %v1482
    %v1508 = vmul.f32 %v1455, %v1482
    %v1509 = vmul.f32 %v1432, %v1487
    %v1510 = vmul.f32 %v1456, %v1487
    %v1511 = vmul.f32 %v1433, %v1492
    %v1512 = vmul.f32 %v1457, %v1492
    %v1513 = vmul.f32 %v1434, %v1497
    %v1514 = vmul.f32 %v1458, %v1497
    %v1515 = vadd.f32 %v1378, %v1499
    %v1516 = vadd.f32 %v1379, %v1500
    %v1517 = vadd.f32 %v1380, %v1501
    %v1518 = vadd.f32 %v1381, %v1502
    %v1519 = vadd.f32 %v1382, %v1503
    %v1520 = vadd.f32 %v1383, %v1504
    %v1521 = vadd.f32 %v1384, %v1505
    %v1522 = vadd.f32 %v1385, %v1506
    %v1523 = vadd.f32 %v1386, %v1507
    %v1524 = vadd.f32 %v1387, %v1508
    %v1525 = vadd.f32 %v1388, %v1509
    %v1526 = vadd.f32 %v1389, %v1510
    %v1527 = vadd.f32 %v1390, %v1511
    %v1528 = vadd.f32 %v1391, %v1512
    %v1529 = vadd.f32 %v1392, %v1513
    %v1530 = vadd.f32 %v1393, %v1514
    %1531 = vrot.lane.b32.xlu0 %v453, 111
    %v1532 = vpop.permute.xlu0 %1531
    %1533 = vrot.lane.b32.xlu0 %v454, 111
    %v1534 = vpop.permute.xlu0 %1533
    %1535 = vrot.lane.b32.xlu0 %v455, 111
    %v1536 = vpop.permute.xlu0 %1535
    %1537 = vrot.lane.b32.xlu0 %v456, 111
    %v1538 = vpop.permute.xlu0 %1537
    %1539 = vrot.lane.b32.xlu0 %v457, 111
    %v1540 = vpop.permute.xlu0 %1539
    %1541 = vrot.lane.b32.xlu0 %v458, 111
    %v1542 = vpop.permute.xlu0 %1541
    %1543 = vrot.lane.b32.xlu0 %v459, 111
    %v1544 = vpop.permute.xlu0 %1543
    %1545 = vrot.lane.b32.xlu0 %v460, 111
    %v1546 = vpop.permute.xlu0 %1545
    %1547 = vrot.lane.b32.xlu0 %v461, 111
    %v1548 = vpop.permute.xlu0 %1547
    %1549 = vrot.lane.b32.xlu0 %v462, 111
    %v1550 = vpop.permute.xlu0 %1549
    %1551 = vrot.lane.b32.xlu0 %v463, 111
    %v1552 = vpop.permute.xlu0 %1551
    %1553 = vrot.lane.b32.xlu0 %v464, 111
    %v1554 = vpop.permute.xlu0 %1553
    %1555 = vrot.lane.b32.xlu0 %v465, 111
    %v1556 = vpop.permute.xlu0 %1555
    %1557 = vrot.lane.b32.xlu0 %v466, 111
    %v1558 = vpop.permute.xlu0 %1557
    %1559 = vrot.lane.b32.xlu0 %v467, 111
    %v1560 = vpop.permute.xlu0 %1559
    %1561 = vrot.lane.b32.xlu0 %v468, 111
    %v1562 = vpop.permute.xlu0 %1561
    %vm1563 = vcmask 908288
    %v1564 = vsel %vm1563, %v1532, %v1534
    %v1565 = vsel %vm1563, %v1536, %v1538
    %v1566 = vsel %vm1563, %v1540, %v1542
    %v1567 = vsel %vm1563, %v1544, %v1546
    %v1568 = vsel %vm1563, %v1548, %v1550
    %v1569 = vsel %vm1563, %v1552, %v1554
    %v1570 = vsel %vm1563, %v1556, %v1558
    %v1571 = vsel %vm1563, %v1560, %v1562
    %v1588 = vsel %vm1563, %v1534, 0.0
    %v1589 = vsel %vm1563, %v1538, 0.0
    %v1590 = vsel %vm1563, %v1542, 0.0
    %v1591 = vsel %vm1563, %v1546, 0.0
    %v1592 = vsel %vm1563, %v1550, 0.0
    %v1593 = vsel %vm1563, %v1554, 0.0
    %v1594 = vsel %vm1563, %v1558, 0.0
    %v1595 = vsel %vm1563, %v1562, 0.0
    %1597 = vset.pattern.permute.xlu0 0
    %1598 = vperm.xlu0 %1597, %v142
    %v1599 = vpop.permute.xlu0 %1598
    %1602 = vset.pattern.permute.xlu0 0
    %1603 = vperm.xlu0 %1602, %v143
    %v1604 = vpop.permute.xlu0 %1603
    %1607 = vset.pattern.permute.xlu0 0
    %1608 = vperm.xlu0 %1607, %v144
    %v1609 = vpop.permute.xlu0 %1608
    %1612 = vset.pattern.permute.xlu0 0
    %1613 = vperm.xlu0 %1612, %v145
    %v1614 = vpop.permute.xlu0 %1613
    %1617 = vset.pattern.permute.xlu0 0
    %1618 = vperm.xlu0 %1617, %v146
    %v1619 = vpop.permute.xlu0 %1618
    %1622 = vset.pattern.permute.xlu0 0
    %1623 = vperm.xlu0 %1622, %v147
    %v1624 = vpop.permute.xlu0 %1623
    %1627 = vset.pattern.permute.xlu0 0
    %1628 = vperm.xlu0 %1627, %v148
    %v1629 = vpop.permute.xlu0 %1628
    %1632 = vset.pattern.permute.xlu0 0
    %1633 = vperm.xlu0 %1632, %v149
    %v1634 = vpop.permute.xlu0 %1633
    %v1636 = vmul.f32 %v1564, %v1599
    %v1637 = vmul.f32 %v1588, %v1599
    %v1638 = vmul.f32 %v1565, %v1604
    %v1639 = vmul.f32 %v1589, %v1604
    %v1640 = vmul.f32 %v1566, %v1609
    %v1641 = vmul.f32 %v1590, %v1609
    %v1642 = vmul.f32 %v1567, %v1614
    %v1643 = vmul.f32 %v1591, %v1614
    %v1644 = vmul.f32 %v1568, %v1619
    %v1645 = vmul.f32 %v1592, %v1619
    %v1646 = vmul.f32 %v1569, %v1624
    %v1647 = vmul.f32 %v1593, %v1624
    %v1648 = vmul.f32 %v1570, %v1629
    %v1649 = vmul.f32 %v1594, %v1629
    %v1650 = vmul.f32 %v1571, %v1634
    %v1651 = vmul.f32 %v1595, %v1634
    %v1652 = vadd.f32 %v1515, %v1636
    %v1653 = vadd.f32 %v1516, %v1637
    %v1654 = vadd.f32 %v1517, %v1638
    %v1655 = vadd.f32 %v1518, %v1639
    %v1656 = vadd.f32 %v1519, %v1640
    %v1657 = vadd.f32 %v1520, %v1641
    %v1658 = vadd.f32 %v1521, %v1642
    %v1659 = vadd.f32 %v1522, %v1643
    %v1660 = vadd.f32 %v1523, %v1644
    %v1661 = vadd.f32 %v1524, %v1645
    %v1662 = vadd.f32 %v1525, %v1646
    %v1663 = vadd.f32 %v1526, %v1647
    %v1664 = vadd.f32 %v1527, %v1648
    %v1665 = vadd.f32 %v1528, %v1649
    %v1666 = vadd.f32 %v1529, %v1650
    %v1667 = vadd.f32 %v1530, %v1651
    %1669 = vset.pattern.permute.xlu0 0
    %1670 = vperm.xlu0 %1669, %v60
    %v1671 = vpop.permute.xlu0 %1670
    %1674 = vset.pattern.permute.xlu0 0
    %1675 = vperm.xlu0 %1674, %v61
    %v1676 = vpop.permute.xlu0 %1675
    %1679 = vset.pattern.permute.xlu0 0
    %1680 = vperm.xlu0 %1679, %v62
    %v1681 = vpop.permute.xlu0 %1680
    %1684 = vset.pattern.permute.xlu0 0
    %1685 = vperm.xlu0 %1684, %v63
    %v1686 = vpop.permute.xlu0 %1685
    %1689 = vset.pattern.permute.xlu0 0
    %1690 = vperm.xlu0 %1689, %v64
    %v1691 = vpop.permute.xlu0 %1690
    %1694 = vset.pattern.permute.xlu0 0
    %1695 = vperm.xlu0 %1694, %v65
    %v1696 = vpop.permute.xlu0 %1695
    %1699 = vset.pattern.permute.xlu0 0
    %1700 = vperm.xlu0 %1699, %v66
    %v1701 = vpop.permute.xlu0 %1700
    %1704 = vset.pattern.permute.xlu0 0
    %1705 = vperm.xlu0 %1704, %v67
    %v1706 = vpop.permute.xlu0 %1705
    %v1708 = vadd.f32 %v1652, %v1671
    %v1709 = vadd.f32 %v1653, %v1671
    %v1710 = vadd.f32 %v1654, %v1676
    %v1711 = vadd.f32 %v1655, %v1676
    %v1712 = vadd.f32 %v1656, %v1681
    %v1713 = vadd.f32 %v1657, %v1681
    %v1714 = vadd.f32 %v1658, %v1686
    %v1715 = vadd.f32 %v1659, %v1686
    %v1716 = vadd.f32 %v1660, %v1691
    %v1717 = vadd.f32 %v1661, %v1691
    %v1718 = vadd.f32 %v1662, %v1696
    %v1719 = vadd.f32 %v1663, %v1696
    %v1720 = vadd.f32 %v1664, %v1701
    %v1721 = vadd.f32 %v1665, %v1701
    %v1722 = vadd.f32 %v1666, %v1706
    %v1723 = vadd.f32 %v1667, %v1706
    %v1724 = vmul.f32 %v1708, 0.5
    %v1725 = vmul.f32 %v1709, 0.5
    %v1726 = vmul.f32 %v1710, 0.5
    %v1727 = vmul.f32 %v1711, 0.5
    %v1728 = vmul.f32 %v1712, 0.5
    %v1729 = vmul.f32 %v1713, 0.5
    %v1730 = vmul.f32 %v1714, 0.5
    %v1731 = vmul.f32 %v1715, 0.5
    %v1732 = vmul.f32 %v1716, 0.5
    %v1733 = vmul.f32 %v1717, 0.5
    %v1734 = vmul.f32 %v1718, 0.5
    %v1735 = vmul.f32 %v1719, 0.5
    %v1736 = vmul.f32 %v1720, 0.5
    %v1737 = vmul.f32 %v1721, 0.5
    %v1738 = vmul.f32 %v1722, 0.5
    %v1739 = vmul.f32 %v1723, 0.5
    %v1740 = vtanh.pop %v1724
    %v1741 = vtanh.pop %v1725
    %v1742 = vtanh.pop %v1726
    %v1743 = vtanh.pop %v1727
    %v1744 = vtanh.pop %v1728
    %v1745 = vtanh.pop %v1729
    %v1746 = vtanh.pop %v1730
    %v1747 = vtanh.pop %v1731
    %v1748 = vtanh.pop %v1732
    %v1749 = vtanh.pop %v1733
    %v1750 = vtanh.pop %v1734
    %v1751 = vtanh.pop %v1735
    %v1752 = vtanh.pop %v1736
    %v1753 = vtanh.pop %v1737
    %v1754 = vtanh.pop %v1738
    %v1755 = vtanh.pop %v1739
    %v1756 = vadd.f32 %v1740, 1.0
    %v1757 = vadd.f32 %v1741, 1.0
    %v1758 = vadd.f32 %v1742, 1.0
    %v1759 = vadd.f32 %v1743, 1.0
    %v1760 = vadd.f32 %v1744, 1.0
    %v1761 = vadd.f32 %v1745, 1.0
    %v1762 = vadd.f32 %v1746, 1.0
    %v1763 = vadd.f32 %v1747, 1.0
    %v1764 = vadd.f32 %v1748, 1.0
    %v1765 = vadd.f32 %v1749, 1.0
    %v1766 = vadd.f32 %v1750, 1.0
    %v1767 = vadd.f32 %v1751, 1.0
    %v1768 = vadd.f32 %v1752, 1.0
    %v1769 = vadd.f32 %v1753, 1.0
    %v1770 = vadd.f32 %v1754, 1.0
    %v1771 = vadd.f32 %v1755, 1.0
    %v1772 = vmul.f32 %v1756, 0.5
    %v1773 = vmul.f32 %v1757, 0.5
    %v1774 = vmul.f32 %v1758, 0.5
    %v1775 = vmul.f32 %v1759, 0.5
    %v1776 = vmul.f32 %v1760, 0.5
    %v1777 = vmul.f32 %v1761, 0.5
    %v1778 = vmul.f32 %v1762, 0.5
    %v1779 = vmul.f32 %v1763, 0.5
    %v1780 = vmul.f32 %v1764, 0.5
    %v1781 = vmul.f32 %v1765, 0.5
    %v1782 = vmul.f32 %v1766, 0.5
    %v1783 = vmul.f32 %v1767, 0.5
    %v1784 = vmul.f32 %v1768, 0.5
    %v1785 = vmul.f32 %v1769, 0.5
    %v1786 = vmul.f32 %v1770, 0.5
    %v1787 = vmul.f32 %v1771, 0.5
    %v1788 = vmul.f32 %v1708, %v1772
    %v1789 = vmul.f32 %v1709, %v1773
    %v1790 = vmul.f32 %v1710, %v1774
    %v1791 = vmul.f32 %v1711, %v1775
    %v1792 = vmul.f32 %v1712, %v1776
    %v1793 = vmul.f32 %v1713, %v1777
    %v1794 = vmul.f32 %v1714, %v1778
    %v1795 = vmul.f32 %v1715, %v1779
    %v1796 = vmul.f32 %v1716, %v1780
    %v1797 = vmul.f32 %v1717, %v1781
    %v1798 = vmul.f32 %v1718, %v1782
    %v1799 = vmul.f32 %v1719, %v1783
    %v1800 = vmul.f32 %v1720, %v1784
    %v1801 = vmul.f32 %v1721, %v1785
    %v1802 = vmul.f32 %v1722, %v1786
    %v1803 = vmul.f32 %v1723, %v1787
    %v1804 = vadd.f32 %v1788, %v1789
    %1805 = vadd.xlane.f32.xlu0 %v1804
    %v1806 = vpop.xlane.xlu0 %1805
    %v1807 = vadd.f32 %v1790, %v1791
    %1808 = vadd.xlane.f32.xlu0 %v1807
    %v1809 = vpop.xlane.xlu0 %1808
    %v1810 = vadd.f32 %v1792, %v1793
    %1811 = vadd.xlane.f32.xlu0 %v1810
    %v1812 = vpop.xlane.xlu0 %1811
    %v1813 = vadd.f32 %v1794, %v1795
    %1814 = vadd.xlane.f32.xlu0 %v1813
    %v1815 = vpop.xlane.xlu0 %1814
    %v1816 = vadd.f32 %v1796, %v1797
    %1817 = vadd.xlane.f32.xlu0 %v1816
    %v1818 = vpop.xlane.xlu0 %1817
    %v1819 = vadd.f32 %v1798, %v1799
    %1820 = vadd.xlane.f32.xlu0 %v1819
    %v1821 = vpop.xlane.xlu0 %1820
    %v1822 = vadd.f32 %v1800, %v1801
    %1823 = vadd.xlane.f32.xlu0 %v1822
    %v1824 = vpop.xlane.xlu0 %1823
    %v1825 = vadd.f32 %v1802, %v1803
    %1826 = vadd.xlane.f32.xlu0 %v1825
    %v1827 = vpop.xlane.xlu0 %1826
    %v1828 = vrcp.pop 256.0
    %v1829 = vmul.f32 %v1806, %v1828
    %v1830 = vmul.f32 %v1809, %v1828
    %v1831 = vmul.f32 %v1812, %v1828
    %v1832 = vmul.f32 %v1815, %v1828
    %v1833 = vmul.f32 %v1818, %v1828
    %v1834 = vmul.f32 %v1821, %v1828
    %v1835 = vmul.f32 %v1824, %v1828
    %v1836 = vmul.f32 %v1827, %v1828
    %v1837 = vld [vmem:[%s6] sm:$0xf]
    %v1838 = vld [vmem:[%s7] sm:$0xf]
    %vm1839 = vcmask 523264
    %v1841 = vsel %vm1839, %v1837, 0
    %1843 = vmatprep.subr.mxu0 0.0
    %1844 = vmatpush1.msra.mxu0 %v1829
    %1845 = vmatprep.subr.mxu0 0.0
    %1846 = vmatpush1.msra.mxu0 %v1830
    %1847 = vmatprep.subr.mxu0 0.0
    %1848 = vmatpush1.msra.mxu0 %v1831
    %1849 = vmatprep.subr.mxu0 0.0
    %1850 = vmatpush1.msra.mxu0 %v1832
    %1851 = vmatprep.subr.mxu0 0.0
    %1852 = vmatpush1.msra.mxu0 %v1833
    %1853 = vmatprep.subr.mxu0 0.0
    %1854 = vmatpush1.msra.mxu0 %v1834
    %1855 = vmatprep.subr.mxu0 0.0
    %1856 = vmatpush1.msra.mxu0 %v1835
    %1857 = vmatprep.subr.mxu0 0.0
    %1858 = vmatpush1.msra.mxu0 %v1836
    %1859 = vmatprep.subr.mxu0 0.0
    %1860 = vmatpush1.msra.mxu0 0.0
    %1861 = vmatprep.subr.mxu0 0.0
    %1862 = vmatpush1.msra.mxu0 0.0
    %1863 = vmatprep.subr.mxu0 0.0
    %1864 = vmatpush1.msra.mxu0 0.0
    %1865 = vmatprep.subr.mxu0 0.0
    %1866 = vmatpush1.msra.mxu0 0.0
    %1867 = vmatprep.subr.mxu0 0.0
    %1868 = vmatpush1.msra.mxu0 0.0
    %1869 = vmatprep.subr.mxu0 0.0
    %1870 = vmatpush1.msra.mxu0 0.0
    %1871 = vmatprep.subr.mxu0 0.0
    %1872 = vmatpush1.msra.mxu0 0.0
    %1873 = vmatprep.subr.mxu0 0.0
    %1874 = vmatpush1.msra.mxu0 0.0
    %1875 = vmatprep.subr.mxu0 0.0
    %1876 = vmatpush1.msra.mxu0 0.0
    %1877 = vmatprep.subr.mxu0 0.0
    %1878 = vmatpush1.msra.mxu0 0.0
    %1879 = vmatprep.subr.mxu0 0.0
    %1880 = vmatpush1.msra.mxu0 0.0
    %1881 = vmatprep.subr.mxu0 0.0
    %1882 = vmatpush1.msra.mxu0 0.0
    %1883 = vmatprep.subr.mxu0 0.0
    %1884 = vmatpush1.msra.mxu0 0.0
    %1885 = vmatprep.subr.mxu0 0.0
    %1886 = vmatpush1.msra.mxu0 0.0
    %1887 = vmatprep.subr.mxu0 0.0
    %1888 = vmatpush1.msra.mxu0 0.0
    %1889 = vmatprep.subr.mxu0 0.0
    %1890 = vmatpush1.msra.mxu0 0.0
    %1891 = vmatprep.subr.mxu0 0.0
    %1892 = vmatpush1.msra.mxu0 0.0
    %1893 = vmatprep.subr.mxu0 0.0
    %1894 = vmatpush1.msra.mxu0 0.0
    %1895 = vmatprep.subr.mxu0 0.0
    %1896 = vmatpush1.msra.mxu0 0.0
    %1897 = vmatprep.subr.mxu0 0.0
    %1898 = vmatpush1.msra.mxu0 0.0
    %1899 = vmatprep.subr.mxu0 0.0
    %1900 = vmatpush1.msra.mxu0 0.0
    %1901 = vmatprep.subr.mxu0 0.0
    %1902 = vmatpush1.msra.mxu0 0.0
    %1903 = vmatprep.subr.mxu0 0.0
    %1904 = vmatpush1.msra.mxu0 0.0
    %1905 = vmatprep.subr.mxu0 0.0
    %1906 = vmatpush1.msra.mxu0 0.0
    %1907 = vmatprep.mubr.f32.mxu0 0.0
    %1908 = vmatmul.mubr.f32.gmra.mrb[0].mxu0 %v1841
    %v1909 = vpop.f32.mrb[0].mxu0
    %v1910 = vadd.f32 %v1838, %v1909
    %v1911 = vpop.f32.mrb[0].mxu0
    %1912 = vdwg.mxu0
    %v1913 = vmul.f32 %v1910, 0.5
    %v1914 = vtanh.pop %v1913
    %v1915 = vadd.f32 %v1914, 1.0
    %v1916 = vmul.f32 %v1915, 0.5
    %v1917 = vmul.f32 %v1910, %v1916
    %v1918 = vld [vmem:[%s8] sm:$0xff]
    %v1919 = vld [vmem:[%s8 + $0x8] sm:$0xff]
    %v1920 = vld [vmem:[%s8 + $0x10] sm:$0xff]
    %v1921 = vld [vmem:[%s8 + $0x18] sm:$0xff]
    %v1922 = vld [vmem:[%s8 + $0x20] sm:$0xff]
    %v1923 = vld [vmem:[%s8 + $0x28] sm:$0xff]
    %v1924 = vld [vmem:[%s8 + $0x30] sm:$0xff]
    %v1925 = vld [vmem:[%s8 + $0x38] sm:$0xff]
    %v1926 = vld [vmem:[%s9] sm:$0xff]
    %v1927 = vld [vmem:[%s9 + $0x8] sm:$0xff]
    %v1928 = vld [vmem:[%s9 + $0x10] sm:$0xff]
    %v1929 = vld [vmem:[%s9 + $0x18] sm:$0xff]
    %v1930 = vld [vmem:[%s9 + $0x20] sm:$0xff]
    %v1931 = vld [vmem:[%s9 + $0x28] sm:$0xff]
    %v1932 = vld [vmem:[%s9 + $0x30] sm:$0xff]
    %v1933 = vld [vmem:[%s9 + $0x38] sm:$0xff]
    %vm1934 = vcmask 31744
    %v1936 = vsel %vm1934, %v1918, 0
    %v1939 = vsel %vm1934, %v1919, 0
    %v1942 = vsel %vm1934, %v1920, 0
    %v1945 = vsel %vm1934, %v1921, 0
    %v1948 = vsel %vm1934, %v1922, 0
    %v1951 = vsel %vm1934, %v1923, 0
    %v1954 = vsel %vm1934, %v1924, 0
    %v1957 = vsel %vm1934, %v1925, 0
    %vm1959 = vcmask 1043456
    %v1961 = vsel %vm1959, %v1917, 0
    %1963 = vmatprep.subr.mxu0 0.0
    %1964 = vmatpush1.msra.mxu0 %v1961
    %1965 = vmatprep.subr.mxu0 0.0
    %1966 = vmatpush1.msra.mxu0 0.0
    %1967 = vmatprep.subr.mxu0 0.0
    %1968 = vmatpush1.msra.mxu0 0.0
    %1969 = vmatprep.subr.mxu0 0.0
    %1970 = vmatpush1.msra.mxu0 0.0
    %1971 = vmatprep.subr.mxu0 0.0
    %1972 = vmatpush1.msra.mxu0 0.0
    %1973 = vmatprep.subr.mxu0 0.0
    %1974 = vmatpush1.msra.mxu0 0.0
    %1975 = vmatprep.subr.mxu0 0.0
    %1976 = vmatpush1.msra.mxu0 0.0
    %1977 = vmatprep.subr.mxu0 0.0
    %1978 = vmatpush1.msra.mxu0 0.0
    %1979 = vmatprep.subr.mxu0 0.0
    %1980 = vmatpush1.msra.mxu0 0.0
    %1981 = vmatprep.subr.mxu0 0.0
    %1982 = vmatpush1.msra.mxu0 0.0
    %1983 = vmatprep.subr.mxu0 0.0
    %1984 = vmatpush1.msra.mxu0 0.0
    %1985 = vmatprep.subr.mxu0 0.0
    %1986 = vmatpush1.msra.mxu0 0.0
    %1987 = vmatprep.subr.mxu0 0.0
    %1988 = vmatpush1.msra.mxu0 0.0
    %1989 = vmatprep.subr.mxu0 0.0
    %1990 = vmatpush1.msra.mxu0 0.0
    %1991 = vmatprep.subr.mxu0 0.0
    %1992 = vmatpush1.msra.mxu0 0.0
    %1993 = vmatprep.subr.mxu0 0.0
    %1994 = vmatpush1.msra.mxu0 0.0
    %1995 = vmatprep.subr.mxu0 0.0
    %1996 = vmatpush1.msra.mxu0 0.0
    %1997 = vmatprep.subr.mxu0 0.0
    %1998 = vmatpush1.msra.mxu0 0.0
    %1999 = vmatprep.subr.mxu0 0.0
    %2000 = vmatpush1.msra.mxu0 0.0
    %2001 = vmatprep.subr.mxu0 0.0
    %2002 = vmatpush1.msra.mxu0 0.0
    %2003 = vmatprep.subr.mxu0 0.0
    %2004 = vmatpush1.msra.mxu0 0.0
    %2005 = vmatprep.subr.mxu0 0.0
    %2006 = vmatpush1.msra.mxu0 0.0
    %2007 = vmatprep.subr.mxu0 0.0
    %2008 = vmatpush1.msra.mxu0 0.0
    %2009 = vmatprep.subr.mxu0 0.0
    %2010 = vmatpush1.msra.mxu0 0.0
    %2011 = vmatprep.subr.mxu0 0.0
    %2012 = vmatpush1.msra.mxu0 0.0
    %2013 = vmatprep.subr.mxu0 0.0
    %2014 = vmatpush1.msra.mxu0 0.0
    %2015 = vmatprep.subr.mxu0 0.0
    %2016 = vmatpush1.msra.mxu0 0.0
    %2017 = vmatprep.subr.mxu0 0.0
    %2018 = vmatpush1.msra.mxu0 0.0
    %2019 = vmatprep.subr.mxu0 0.0
    %2020 = vmatpush1.msra.mxu0 0.0
    %2021 = vmatprep.subr.mxu0 0.0
    %2022 = vmatpush1.msra.mxu0 0.0
    %2023 = vmatprep.subr.mxu0 0.0
    %2024 = vmatpush1.msra.mxu0 0.0
    %2025 = vmatprep.subr.mxu0 0.0
    %2026 = vmatpush1.msra.mxu0 0.0
    %2027 = vmatprep.mubr.f32.mxu0 0.0
    %2028 = vmatmul.mubr.f32.gmra.mrb[0].mxu0 %v1936
    %v2029 = vpop.f32.mrb[0].mxu0
    %v2030 = vadd.f32 %v1926, %v2029
    %v2031 = vpop.f32.mrb[0].mxu0
    %2032 = vmatprep.mubr.f32.mxu0 0.0
    %2033 = vmatmul.mubr.f32.gmra.mrb[0].mxu0 %v1939
    %v2034 = vpop.f32.mrb[0].mxu0
    %v2035 = vadd.f32 %v1927, %v2034
    %v2036 = vpop.f32.mrb[0].mxu0
    %2037 = vmatprep.mubr.f32.mxu0 0.0
    %2038 = vmatmul.mubr.f32.gmra.mrb[0].mxu0 %v1942
    %v2039 = vpop.f32.mrb[0].mxu0
    %v2040 = vadd.f32 %v1928, %v2039
    %v2041 = vpop.f32.mrb[0].mxu0
    %2042 = vmatprep.mubr.f32.mxu0 0.0
    %2043 = vmatmul.mubr.f32.gmra.mrb[0].mxu0 %v1945
    %v2044 = vpop.f32.mrb[0].mxu0
    %v2045 = vadd.f32 %v1929, %v2044
    %v2046 = vpop.f32.mrb[0].mxu0
    %2047 = vmatprep.mubr.f32.mxu0 0.0
    %2048 = vmatmul.mubr.f32.gmra.mrb[0].mxu0 %v1948
    %v2049 = vpop.f32.mrb[0].mxu0
    %v2050 = vadd.f32 %v1930, %v2049
    %v2051 = vpop.f32.mrb[0].mxu0
    %2052 = vmatprep.mubr.f32.mxu0 0.0
    %2053 = vmatmul.mubr.f32.gmra.mrb[0].mxu0 %v1951
    %v2054 = vpop.f32.mrb[0].mxu0
    %v2055 = vadd.f32 %v1931, %v2054
    %v2056 = vpop.f32.mrb[0].mxu0
    %2057 = vmatprep.mubr.f32.mxu0 0.0
    %2058 = vmatmul.mubr.f32.gmra.mrb[0].mxu0 %v1954
    %v2059 = vpop.f32.mrb[0].mxu0
    %v2060 = vadd.f32 %v1932, %v2059
    %v2061 = vpop.f32.mrb[0].mxu0
    %2062 = vmatprep.mubr.f32.mxu0 0.0
    %2063 = vmatmul.mubr.f32.gmra.mrb[0].mxu0 %v1957
    %v2064 = vpop.f32.mrb[0].mxu0
    %v2065 = vadd.f32 %v1933, %v2064
    %v2066 = vpop.f32.mrb[0].mxu0
    %2067 = vdwg.mxu0
    %v2068 = vmul.f32 %v2030, 0.5
    %v2069 = vmul.f32 %v2035, 0.5
    %v2070 = vmul.f32 %v2040, 0.5
    %v2071 = vmul.f32 %v2045, 0.5
    %v2072 = vmul.f32 %v2050, 0.5
    %v2073 = vmul.f32 %v2055, 0.5
    %v2074 = vmul.f32 %v2060, 0.5
    %v2075 = vmul.f32 %v2065, 0.5
    %v2076 = vtanh.pop %v2068
    %v2077 = vtanh.pop %v2069
    %v2078 = vtanh.pop %v2070
    %v2079 = vtanh.pop %v2071
    %v2080 = vtanh.pop %v2072
    %v2081 = vtanh.pop %v2073
    %v2082 = vtanh.pop %v2074
    %v2083 = vtanh.pop %v2075
    %v2084 = vadd.f32 %v2076, 1.0
    %v2085 = vadd.f32 %v2077, 1.0
    %v2086 = vadd.f32 %v2078, 1.0
    %v2087 = vadd.f32 %v2079, 1.0
    %v2088 = vadd.f32 %v2080, 1.0
    %v2089 = vadd.f32 %v2081, 1.0
    %v2090 = vadd.f32 %v2082, 1.0
    %v2091 = vadd.f32 %v2083, 1.0
    %v2092 = vmul.f32 %v2084, 0.5
    %v2093 = vmul.f32 %v2085, 0.5
    %v2094 = vmul.f32 %v2086, 0.5
    %v2095 = vmul.f32 %v2087, 0.5
    %v2096 = vmul.f32 %v2088, 0.5
    %v2097 = vmul.f32 %v2089, 0.5
    %v2098 = vmul.f32 %v2090, 0.5
    %v2099 = vmul.f32 %v2091, 0.5
    %2101 = vset.pattern.permute.xlu0 0
    %2102 = vperm.xlu0 %2101, %v2092
    %v2103 = vpop.permute.xlu0 %2102
    %2106 = vset.pattern.permute.xlu0 0
    %2107 = vperm.xlu0 %2106, %v2093
    %v2108 = vpop.permute.xlu0 %2107
    %2111 = vset.pattern.permute.xlu0 0
    %2112 = vperm.xlu0 %2111, %v2094
    %v2113 = vpop.permute.xlu0 %2112
    %2116 = vset.pattern.permute.xlu0 0
    %2117 = vperm.xlu0 %2116, %v2095
    %v2118 = vpop.permute.xlu0 %2117
    %2121 = vset.pattern.permute.xlu0 0
    %2122 = vperm.xlu0 %2121, %v2096
    %v2123 = vpop.permute.xlu0 %2122
    %2126 = vset.pattern.permute.xlu0 0
    %2127 = vperm.xlu0 %2126, %v2097
    %v2128 = vpop.permute.xlu0 %2127
    %2131 = vset.pattern.permute.xlu0 0
    %2132 = vperm.xlu0 %2131, %v2098
    %v2133 = vpop.permute.xlu0 %2132
    %2136 = vset.pattern.permute.xlu0 0
    %2137 = vperm.xlu0 %2136, %v2099
    %v2138 = vpop.permute.xlu0 %2137
    %v2140 = vmul.f32 %v1788, %v2103
    %v2141 = vmul.f32 %v1789, %v2103
    %v2142 = vmul.f32 %v1790, %v2108
    %v2143 = vmul.f32 %v1791, %v2108
    %v2144 = vmul.f32 %v1792, %v2113
    %v2145 = vmul.f32 %v1793, %v2113
    %v2146 = vmul.f32 %v1794, %v2118
    %v2147 = vmul.f32 %v1795, %v2118
    %v2148 = vmul.f32 %v1796, %v2123
    %v2149 = vmul.f32 %v1797, %v2123
    %v2150 = vmul.f32 %v1798, %v2128
    %v2151 = vmul.f32 %v1799, %v2128
    %v2152 = vmul.f32 %v1800, %v2133
    %v2153 = vmul.f32 %v1801, %v2133
    %v2154 = vmul.f32 %v1802, %v2138
    %v2155 = vmul.f32 %v1803, %v2138
    %2157 = vset.pattern.permute.xlu0 0
    %2158 = vperm.xlu0 %2157, %v68
    %v2159 = vpop.permute.xlu0 %2158
    %2162 = vset.pattern.permute.xlu0 0
    %2163 = vperm.xlu0 %2162, %v69
    %v2164 = vpop.permute.xlu0 %2163
    %v2167 = vsel %vm1839, %v50, 0
    %v2170 = vsel %vm1839, %v51, 0
    %2172 = vmatprep.subr.mxu0 %v2141
    %2173 = vmatpush1.msra.mxu0 %v2140
    %2174 = vmatprep.subr.mxu0 %v2143
    %2175 = vmatpush1.msra.mxu0 %v2142
    %2176 = vmatprep.subr.mxu0 %v2145
    %2177 = vmatpush1.msra.mxu0 %v2144
    %2178 = vmatprep.subr.mxu0 %v2147
    %2179 = vmatpush1.msra.mxu0 %v2146
    %2180 = vmatprep.subr.mxu0 %v2149
    %2181 = vmatpush1.msra.mxu0 %v2148
    %2182 = vmatprep.subr.mxu0 %v2151
    %2183 = vmatpush1.msra.mxu0 %v2150
    %2184 = vmatprep.subr.mxu0 %v2153
    %2185 = vmatpush1.msra.mxu0 %v2152
    %2186 = vmatprep.subr.mxu0 %v2155
    %2187 = vmatpush1.msra.mxu0 %v2154
    %2188 = vmatprep.subr.mxu0 0.0
    %2189 = vmatpush1.msra.mxu0 0.0
    %2190 = vmatprep.subr.mxu0 0.0
    %2191 = vmatpush1.msra.mxu0 0.0
    %2192 = vmatprep.subr.mxu0 0.0
    %2193 = vmatpush1.msra.mxu0 0.0
    %2194 = vmatprep.subr.mxu0 0.0
    %2195 = vmatpush1.msra.mxu0 0.0
    %2196 = vmatprep.subr.mxu0 0.0
    %2197 = vmatpush1.msra.mxu0 0.0
    %2198 = vmatprep.subr.mxu0 0.0
    %2199 = vmatpush1.msra.mxu0 0.0
    %2200 = vmatprep.subr.mxu0 0.0
    %2201 = vmatpush1.msra.mxu0 0.0
    %2202 = vmatprep.subr.mxu0 0.0
    %2203 = vmatpush1.msra.mxu0 0.0
    %2204 = vmatprep.subr.mxu0 0.0
    %2205 = vmatpush1.msra.mxu0 0.0
    %2206 = vmatprep.subr.mxu0 0.0
    %2207 = vmatpush1.msra.mxu0 0.0
    %2208 = vmatprep.subr.mxu0 0.0
    %2209 = vmatpush1.msra.mxu0 0.0
    %2210 = vmatprep.subr.mxu0 0.0
    %2211 = vmatpush1.msra.mxu0 0.0
    %2212 = vmatprep.subr.mxu0 0.0
    %2213 = vmatpush1.msra.mxu0 0.0
    %2214 = vmatprep.subr.mxu0 0.0
    %2215 = vmatpush1.msra.mxu0 0.0
    %2216 = vmatprep.subr.mxu0 0.0
    %2217 = vmatpush1.msra.mxu0 0.0
    %2218 = vmatprep.subr.mxu0 0.0
    %2219 = vmatpush1.msra.mxu0 0.0
    %2220 = vmatprep.subr.mxu0 0.0
    %2221 = vmatpush1.msra.mxu0 0.0
    %2222 = vmatprep.subr.mxu0 0.0
    %2223 = vmatpush1.msra.mxu0 0.0
    %2224 = vmatprep.subr.mxu0 0.0
    %2225 = vmatpush1.msra.mxu0 0.0
    %2226 = vmatprep.subr.mxu0 0.0
    %2227 = vmatpush1.msra.mxu0 0.0
    %2228 = vmatprep.subr.mxu0 0.0
    %2229 = vmatpush1.msra.mxu0 0.0
    %2230 = vmatprep.subr.mxu0 0.0
    %2231 = vmatpush1.msra.mxu0 0.0
    %2232 = vmatprep.subr.mxu0 0.0
    %2233 = vmatpush1.msra.mxu0 0.0
    %2234 = vmatprep.subr.mxu0 0.0
    %2235 = vmatpush1.msra.mxu0 0.0
    %2236 = vmatprep.mubr.f32.mxu0 0.0
    %2237 = vmatmul.mubr.f32.gmra.mrb[0].mxu0 %v2167
    %v2238 = vpop.f32.mrb[0].mxu0
    %v2239 = vadd.f32 %v2159, %v2238
    %v2240 = vpop.f32.mrb[0].mxu0
    %v2241 = vadd.f32 %v2159, %v2240
    %2242 = vmatprep.mubr.f32.mxu0 0.0
    %2243 = vmatmul.mubr.f32.gmra.mrb[0].mxu0 %v2170
    %v2244 = vpop.f32.mrb[0].mxu0
    %v2245 = vadd.f32 %v2164, %v2244
    %v2246 = vpop.f32.mrb[0].mxu0
    %v2247 = vadd.f32 %v2164, %v2246
    %2248 = vdwg.mxu0
    %v2249 = vadd.f32 %v2239, %v153
    %v2250 = vadd.f32 %v2241, %v154
    %v2251 = vadd.f32 %v2245, %v155
    %v2252 = vadd.f32 %v2247, %v156
    %2253 = vst [vmem:[#allocation2] sm:$0xff] %v2249
    %2254 = vst [vmem:[#allocation2 + $0x8] sm:$0xff] %v2250
    %2255 = vst [vmem:[#allocation2 + $0x10] sm:$0xff] %v2251
    %2256 = vst [vmem:[#allocation2 + $0x18] sm:$0xff] %v2252
    %s2257 = scalar_lea.vmem %s0, 32
    %v2258 = vld [vmem:[%s2257] sm:$0xff]
    %v2259 = vld [vmem:[%s2257 + $0x8] sm:$0xff]
    %v2260 = vld [vmem:[%s2257 + $0x10] sm:$0xff]
    %v2261 = vld [vmem:[%s2257 + $0x18] sm:$0xff]
    %2262 = vmatprep.subr.mxu0 %v2259
    %2263 = vmatpush1.msra.mxu0 %v2258
    %2264 = vmatprep.subr.mxu0 %v2261
    %2265 = vmatpush1.msra.mxu0 %v2260
    %2266 = vmatprep.subr.mxu0 0.0
    %2267 = vmatpush1.msra.mxu0 0.0
    %2268 = vmatprep.subr.mxu0 0.0
    %2269 = vmatpush1.msra.mxu0 0.0
    %2270 = vmatprep.subr.mxu0 0.0
    %2271 = vmatpush1.msra.mxu0 0.0
    %2272 = vmatprep.subr.mxu0 0.0
    %2273 = vmatpush1.msra.mxu0 0.0
    %2274 = vmatprep.subr.mxu0 0.0
    %2275 = vmatpush1.msra.mxu0 0.0
    %2276 = vmatprep.subr.mxu0 0.0
    %2277 = vmatpush1.msra.mxu0 0.0
    %2278 = vmatprep.subr.mxu0 0.0
    %2279 = vmatpush1.msra.mxu0 0.0
    %2280 = vmatprep.subr.mxu0 0.0
    %2281 = vmatpush1.msra.mxu0 0.0
    %2282 = vmatprep.subr.mxu0 0.0
    %2283 = vmatpush1.msra.mxu0 0.0
    %2284 = vmatprep.subr.mxu0 0.0
    %2285 = vmatpush1.msra.mxu0 0.0
    %2286 = vmatprep.subr.mxu0 0.0
    %2287 = vmatpush1.msra.mxu0 0.0
    %2288 = vmatprep.subr.mxu0 0.0
    %2289 = vmatpush1.msra.mxu0 0.0
    %2290 = vmatprep.subr.mxu0 0.0
    %2291 = vmatpush1.msra.mxu0 0.0
    %2292 = vmatprep.subr.mxu0 0.0
    %2293 = vmatpush1.msra.mxu0 0.0
    %2294 = vmatprep.subr.mxu0 0.0
    %2295 = vmatpush1.msra.mxu0 0.0
    %2296 = vmatprep.subr.mxu0 0.0
    %2297 = vmatpush1.msra.mxu0 0.0
    %2298 = vmatprep.subr.mxu0 0.0
    %2299 = vmatpush1.msra.mxu0 0.0
    %2300 = vmatprep.subr.mxu0 0.0
    %2301 = vmatpush1.msra.mxu0 0.0
    %2302 = vmatprep.subr.mxu0 0.0
    %2303 = vmatpush1.msra.mxu0 0.0
    %2304 = vmatprep.subr.mxu0 0.0
    %2305 = vmatpush1.msra.mxu0 0.0
    %2306 = vmatprep.subr.mxu0 0.0
    %2307 = vmatpush1.msra.mxu0 0.0
    %2308 = vmatprep.subr.mxu0 0.0
    %2309 = vmatpush1.msra.mxu0 0.0
    %2310 = vmatprep.subr.mxu0 0.0
    %2311 = vmatpush1.msra.mxu0 0.0
    %2312 = vmatprep.subr.mxu0 0.0
    %2313 = vmatpush1.msra.mxu0 0.0
    %2314 = vmatprep.subr.mxu0 0.0
    %2315 = vmatpush1.msra.mxu0 0.0
    %2316 = vmatprep.subr.mxu0 0.0
    %2317 = vmatpush1.msra.mxu0 0.0
    %2318 = vmatprep.subr.mxu0 0.0
    %2319 = vmatpush1.msra.mxu0 0.0
    %2320 = vmatprep.subr.mxu0 0.0
    %2321 = vmatpush1.msra.mxu0 0.0
    %2322 = vmatprep.subr.mxu0 0.0
    %2323 = vmatpush1.msra.mxu0 0.0
    %2324 = vmatprep.subr.mxu0 0.0
    %2325 = vmatpush1.msra.mxu0 0.0
    %2326 = vmatprep.mubr.f32.mxu0 0.0
    %2327 = vmatmul.mubr.f32.gmra.mrb[0].mxu0 %v199
    %v2328 = vpop.f32.mrb[0].mxu0
    %v2329 = vadd.f32 %v160, %v2328
    %v2330 = vpop.f32.mrb[0].mxu0
    %v2331 = vadd.f32 %v160, %v2330
    %2332 = vmatprep.mubr.f32.mxu0 0.0
    %2333 = vmatmul.mubr.f32.gmra.mrb[0].mxu0 %v202
    %v2334 = vpop.f32.mrb[0].mxu0
    %v2335 = vadd.f32 %v165, %v2334
    %v2336 = vpop.f32.mrb[0].mxu0
    %v2337 = vadd.f32 %v165, %v2336
    %2338 = vmatprep.mubr.f32.mxu0 0.0
    %2339 = vmatmul.mubr.f32.gmra.mrb[0].mxu0 %v205
    %v2340 = vpop.f32.mrb[0].mxu0
    %v2341 = vadd.f32 %v170, %v2340
    %v2342 = vpop.f32.mrb[0].mxu0
    %v2343 = vadd.f32 %v170, %v2342
    %2344 = vmatprep.mubr.f32.mxu0 0.0
    %2345 = vmatmul.mubr.f32.gmra.mrb[0].mxu0 %v208
    %v2346 = vpop.f32.mrb[0].mxu0
    %v2347 = vadd.f32 %v175, %v2346
    %v2348 = vpop.f32.mrb[0].mxu0
    %v2349 = vadd.f32 %v175, %v2348
    %2350 = vmatprep.mubr.f32.mxu0 0.0
    %2351 = vmatmul.mubr.f32.gmra.mrb[0].mxu0 %v211
    %v2352 = vpop.f32.mrb[0].mxu0
    %v2353 = vadd.f32 %v180, %v2352
    %v2354 = vpop.f32.mrb[0].mxu0
    %v2355 = vadd.f32 %v180, %v2354
    %2356 = vmatprep.mubr.f32.mxu0 0.0
    %2357 = vmatmul.mubr.f32.gmra.mrb[0].mxu0 %v214
    %v2358 = vpop.f32.mrb[0].mxu0
    %v2359 = vadd.f32 %v185, %v2358
    %v2360 = vpop.f32.mrb[0].mxu0
    %v2361 = vadd.f32 %v185, %v2360
    %2362 = vmatprep.mubr.f32.mxu0 0.0
    %2363 = vmatmul.mubr.f32.gmra.mrb[0].mxu0 %v217
    %v2364 = vpop.f32.mrb[0].mxu0
    %v2365 = vadd.f32 %v190, %v2364
    %v2366 = vpop.f32.mrb[0].mxu0
    %v2367 = vadd.f32 %v190, %v2366
    %2368 = vmatprep.mubr.f32.mxu0 0.0
    %2369 = vmatmul.mubr.f32.gmra.mrb[0].mxu0 %v220
    %v2370 = vpop.f32.mrb[0].mxu0
    %v2371 = vadd.f32 %v195, %v2370
    %v2372 = vpop.f32.mrb[0].mxu0
    %v2373 = vadd.f32 %v195, %v2372
    %2374 = vdwg.mxu0
    %v2375 = vmul.f32 %v2329, 0.5
    %v2376 = vmul.f32 %v2331, 0.5
    %v2377 = vmul.f32 %v2335, 0.5
    %v2378 = vmul.f32 %v2337, 0.5
    %v2379 = vmul.f32 %v2341, 0.5
    %v2380 = vmul.f32 %v2343, 0.5
    %v2381 = vmul.f32 %v2347, 0.5
    %v2382 = vmul.f32 %v2349, 0.5
    %v2383 = vmul.f32 %v2353, 0.5
    %v2384 = vmul.f32 %v2355, 0.5
    %v2385 = vmul.f32 %v2359, 0.5
    %v2386 = vmul.f32 %v2361, 0.5
    %v2387 = vmul.f32 %v2365, 0.5
    %v2388 = vmul.f32 %v2367, 0.5
    %v2389 = vmul.f32 %v2371, 0.5
    %v2390 = vmul.f32 %v2373, 0.5
    %v2391 = vtanh.pop %v2375
    %v2392 = vtanh.pop %v2376
    %v2393 = vtanh.pop %v2377
    %v2394 = vtanh.pop %v2378
    %v2395 = vtanh.pop %v2379
    %v2396 = vtanh.pop %v2380
    %v2397 = vtanh.pop %v2381
    %v2398 = vtanh.pop %v2382
    %v2399 = vtanh.pop %v2383
    %v2400 = vtanh.pop %v2384
    %v2401 = vtanh.pop %v2385
    %v2402 = vtanh.pop %v2386
    %v2403 = vtanh.pop %v2387
    %v2404 = vtanh.pop %v2388
    %v2405 = vtanh.pop %v2389
    %v2406 = vtanh.pop %v2390
    %v2407 = vadd.f32 %v2391, 1.0
    %v2408 = vadd.f32 %v2392, 1.0
    %v2409 = vadd.f32 %v2393, 1.0
    %v2410 = vadd.f32 %v2394, 1.0
    %v2411 = vadd.f32 %v2395, 1.0
    %v2412 = vadd.f32 %v2396, 1.0
    %v2413 = vadd.f32 %v2397, 1.0
    %v2414 = vadd.f32 %v2398, 1.0
    %v2415 = vadd.f32 %v2399, 1.0
    %v2416 = vadd.f32 %v2400, 1.0
    %v2417 = vadd.f32 %v2401, 1.0
    %v2418 = vadd.f32 %v2402, 1.0
    %v2419 = vadd.f32 %v2403, 1.0
    %v2420 = vadd.f32 %v2404, 1.0
    %v2421 = vadd.f32 %v2405, 1.0
    %v2422 = vadd.f32 %v2406, 1.0
    %v2423 = vmul.f32 %v2407, 0.5
    %v2424 = vmul.f32 %v2408, 0.5
    %v2425 = vmul.f32 %v2409, 0.5
    %v2426 = vmul.f32 %v2410, 0.5
    %v2427 = vmul.f32 %v2411, 0.5
    %v2428 = vmul.f32 %v2412, 0.5
    %v2429 = vmul.f32 %v2413, 0.5
    %v2430 = vmul.f32 %v2414, 0.5
    %v2431 = vmul.f32 %v2415, 0.5
    %v2432 = vmul.f32 %v2416, 0.5
    %v2433 = vmul.f32 %v2417, 0.5
    %v2434 = vmul.f32 %v2418, 0.5
    %v2435 = vmul.f32 %v2419, 0.5
    %v2436 = vmul.f32 %v2420, 0.5
    %v2437 = vmul.f32 %v2421, 0.5
    %v2438 = vmul.f32 %v2422, 0.5
    %v2439 = vmul.f32 %v2329, %v2423
    %v2440 = vmul.f32 %v2331, %v2424
    %v2441 = vmul.f32 %v2335, %v2425
    %v2442 = vmul.f32 %v2337, %v2426
    %v2443 = vmul.f32 %v2341, %v2427
    %v2444 = vmul.f32 %v2343, %v2428
    %v2445 = vmul.f32 %v2347, %v2429
    %v2446 = vmul.f32 %v2349, %v2430
    %v2447 = vmul.f32 %v2353, %v2431
    %v2448 = vmul.f32 %v2355, %v2432
    %v2449 = vmul.f32 %v2359, %v2433
    %v2450 = vmul.f32 %v2361, %v2434
    %v2451 = vmul.f32 %v2365, %v2435
    %v2452 = vmul.f32 %v2367, %v2436
    %v2453 = vmul.f32 %v2371, %v2437
    %v2454 = vmul.f32 %v2373, %v2438
    %v2455 = vmul.f32 %v2439, %v419
    %v2456 = vmul.f32 %v2440, %v423
    %v2457 = vmul.f32 %v2441, %v419
    %v2458 = vmul.f32 %v2442, %v423
    %v2459 = vmul.f32 %v2443, %v419
    %v2460 = vmul.f32 %v2444, %v423
    %v2461 = vmul.f32 %v2445, %v419
    %v2462 = vmul.f32 %v2446, %v423
    %v2463 = vmul.f32 %v2447, %v419
    %v2464 = vmul.f32 %v2448, %v423
    %v2465 = vmul.f32 %v2449, %v419
    %v2466 = vmul.f32 %v2450, %v423
    %v2467 = vmul.f32 %v2451, %v419
    %v2468 = vmul.f32 %v2452, %v423
    %v2469 = vmul.f32 %v2453, %v419
    %v2470 = vmul.f32 %v2454, %v423
    %v2471 = vmul.f32 %v2439, %v446
    %v2472 = vmul.f32 %v2440, %v450
    %v2473 = vmul.f32 %v2441, %v446
    %v2474 = vmul.f32 %v2442, %v450
    %v2475 = vmul.f32 %v2443, %v446
    %v2476 = vmul.f32 %v2444, %v450
    %v2477 = vmul.f32 %v2445, %v446
    %v2478 = vmul.f32 %v2446, %v450
    %v2479 = vmul.f32 %v2447, %v446
    %v2480 = vmul.f32 %v2448, %v450
    %v2481 = vmul.f32 %v2449, %v446
    %v2482 = vmul.f32 %v2450, %v450
    %v2483 = vmul.f32 %v2451, %v446
    %v2484 = vmul.f32 %v2452, %v450
    %v2485 = vmul.f32 %v2453, %v446
    %v2486 = vmul.f32 %v2454, %v450
    %v2487 = vmul.f32 %v2439, %v472
    %v2488 = vmul.f32 %v2440, %v472
    %v2489 = vmul.f32 %v2441, %v477
    %v2490 = vmul.f32 %v2442, %v477
    %v2491 = vmul.f32 %v2443, %v482
    %v2492 = vmul.f32 %v2444, %v482
    %v2493 = vmul.f32 %v2445, %v487
    %v2494 = vmul.f32 %v2446, %v487
    %v2495 = vmul.f32 %v2447, %v492
    %v2496 = vmul.f32 %v2448, %v492
    %v2497 = vmul.f32 %v2449, %v497
    %v2498 = vmul.f32 %v2450, %v497
    %v2499 = vmul.f32 %v2451, %v502
    %v2500 = vmul.f32 %v2452, %v502
    %v2501 = vmul.f32 %v2453, %v507
    %v2502 = vmul.f32 %v2454, %v507
    %2519 = vrot.lane.b32.xlu0 %v2455, 17
    %v2520 = vpop.permute.xlu0 %2519
    %2521 = vrot.lane.b32.xlu0 %v2456, 17
    %v2522 = vpop.permute.xlu0 %2521
    %2523 = vrot.lane.b32.xlu0 %v2457, 17
    %v2524 = vpop.permute.xlu0 %2523
    %2525 = vrot.lane.b32.xlu0 %v2458, 17
    %v2526 = vpop.permute.xlu0 %2525
    %2527 = vrot.lane.b32.xlu0 %v2459, 17
    %v2528 = vpop.permute.xlu0 %2527
    %2529 = vrot.lane.b32.xlu0 %v2460, 17
    %v2530 = vpop.permute.xlu0 %2529
    %2531 = vrot.lane.b32.xlu0 %v2461, 17
    %v2532 = vpop.permute.xlu0 %2531
    %2533 = vrot.lane.b32.xlu0 %v2462, 17
    %v2534 = vpop.permute.xlu0 %2533
    %2535 = vrot.lane.b32.xlu0 %v2463, 17
    %v2536 = vpop.permute.xlu0 %2535
    %2537 = vrot.lane.b32.xlu0 %v2464, 17
    %v2538 = vpop.permute.xlu0 %2537
    %2539 = vrot.lane.b32.xlu0 %v2465, 17
    %v2540 = vpop.permute.xlu0 %2539
    %2541 = vrot.lane.b32.xlu0 %v2466, 17
    %v2542 = vpop.permute.xlu0 %2541
    %2543 = vrot.lane.b32.xlu0 %v2467, 17
    %v2544 = vpop.permute.xlu0 %2543
    %2545 = vrot.lane.b32.xlu0 %v2468, 17
    %v2546 = vpop.permute.xlu0 %2545
    %2547 = vrot.lane.b32.xlu0 %v2469, 17
    %v2548 = vpop.permute.xlu0 %2547
    %2549 = vrot.lane.b32.xlu0 %v2470, 17
    %v2550 = vpop.permute.xlu0 %2549
    %v2551 = vsel %vm573, %v2520, %v2522
    %v2552 = vsel %vm573, %v2524, %v2526
    %v2553 = vsel %vm573, %v2528, %v2530
    %v2554 = vsel %vm573, %v2532, %v2534
    %v2555 = vsel %vm573, %v2536, %v2538
    %v2556 = vsel %vm573, %v2540, %v2542
    %v2557 = vsel %vm573, %v2544, %v2546
    %v2558 = vsel %vm573, %v2548, %v2550
    %v2575 = vsel %vm573, 0.0, %v2520
    %v2576 = vsel %vm573, 0.0, %v2524
    %v2577 = vsel %vm573, 0.0, %v2528
    %v2578 = vsel %vm573, 0.0, %v2532
    %v2579 = vsel %vm573, 0.0, %v2536
    %v2580 = vsel %vm573, 0.0, %v2540
    %v2581 = vsel %vm573, 0.0, %v2544
    %v2582 = vsel %vm573, 0.0, %v2548
    %v2583 = vmul.f32 %v2575, %v609
    %v2584 = vmul.f32 %v2551, %v609
    %v2585 = vmul.f32 %v2576, %v614
    %v2586 = vmul.f32 %v2552, %v614
    %v2587 = vmul.f32 %v2577, %v619
    %v2588 = vmul.f32 %v2553, %v619
    %v2589 = vmul.f32 %v2578, %v624
    %v2590 = vmul.f32 %v2554, %v624
    %v2591 = vmul.f32 %v2579, %v629
    %v2592 = vmul.f32 %v2555, %v629
    %v2593 = vmul.f32 %v2580, %v634
    %v2594 = vmul.f32 %v2556, %v634
    %v2595 = vmul.f32 %v2581, %v639
    %v2596 = vmul.f32 %v2557, %v639
    %v2597 = vmul.f32 %v2582, %v644
    %v2598 = vmul.f32 %v2558, %v644
    %v2599 = vadd.f32 %v2487, %v2583
    %v2600 = vadd.f32 %v2488, %v2584
    %v2601 = vadd.f32 %v2489, %v2585
    %v2602 = vadd.f32 %v2490, %v2586
    %v2603 = vadd.f32 %v2491, %v2587
    %v2604 = vadd.f32 %v2492, %v2588
    %v2605 = vadd.f32 %v2493, %v2589
    %v2606 = vadd.f32 %v2494, %v2590
    %v2607 = vadd.f32 %v2495, %v2591
    %v2608 = vadd.f32 %v2496, %v2592
    %v2609 = vadd.f32 %v2497, %v2593
    %v2610 = vadd.f32 %v2498, %v2594
    %v2611 = vadd.f32 %v2499, %v2595
    %v2612 = vadd.f32 %v2500, %v2596
    %v2613 = vadd.f32 %v2501, %v2597
    %v2614 = vadd.f32 %v2502, %v2598
    %2631 = vrot.lane.b32.xlu0 %v2439, 16
    %v2632 = vpop.permute.xlu0 %2631
    %2633 = vrot.lane.b32.xlu0 %v2440, 16
    %v2634 = vpop.permute.xlu0 %2633
    %2635 = vrot.lane.b32.xlu0 %v2441, 16
    %v2636 = vpop.permute.xlu0 %2635
    %2637 = vrot.lane.b32.xlu0 %v2442, 16
    %v2638 = vpop.permute.xlu0 %2637
    %2639 = vrot.lane.b32.xlu0 %v2443, 16
    %v2640 = vpop.permute.xlu0 %2639
    %2641 = vrot.lane.b32.xlu0 %v2444, 16
    %v2642 = vpop.permute.xlu0 %2641
    %2643 = vrot.lane.b32.xlu0 %v2445, 16
    %v2644 = vpop.permute.xlu0 %2643
    %2645 = vrot.lane.b32.xlu0 %v2446, 16
    %v2646 = vpop.permute.xlu0 %2645
    %2647 = vrot.lane.b32.xlu0 %v2447, 16
    %v2648 = vpop.permute.xlu0 %2647
    %2649 = vrot.lane.b32.xlu0 %v2448, 16
    %v2650 = vpop.permute.xlu0 %2649
    %2651 = vrot.lane.b32.xlu0 %v2449, 16
    %v2652 = vpop.permute.xlu0 %2651
    %2653 = vrot.lane.b32.xlu0 %v2450, 16
    %v2654 = vpop.permute.xlu0 %2653
    %2655 = vrot.lane.b32.xlu0 %v2451, 16
    %v2656 = vpop.permute.xlu0 %2655
    %2657 = vrot.lane.b32.xlu0 %v2452, 16
    %v2658 = vpop.permute.xlu0 %2657
    %2659 = vrot.lane.b32.xlu0 %v2453, 16
    %v2660 = vpop.permute.xlu0 %2659
    %2661 = vrot.lane.b32.xlu0 %v2454, 16
    %v2662 = vpop.permute.xlu0 %2661
    %v2663 = vsel %vm197, %v2632, %v2634
    %v2664 = vsel %vm197, %v2636, %v2638
    %v2665 = vsel %vm197, %v2640, %v2642
    %v2666 = vsel %vm197, %v2644, %v2646
    %v2667 = vsel %vm197, %v2648, %v2650
    %v2668 = vsel %vm197, %v2652, %v2654
    %v2669 = vsel %vm197, %v2656, %v2658
    %v2670 = vsel %vm197, %v2660, %v2662
    %v2687 = vsel %vm197, 0.0, %v2632
    %v2688 = vsel %vm197, 0.0, %v2636
    %v2689 = vsel %vm197, 0.0, %v2640
    %v2690 = vsel %vm197, 0.0, %v2644
    %v2691 = vsel %vm197, 0.0, %v2648
    %v2692 = vsel %vm197, 0.0, %v2652
    %v2693 = vsel %vm197, 0.0, %v2656
    %v2694 = vsel %vm197, 0.0, %v2660
    %v2695 = vmul.f32 %v2687, %v761
    %v2696 = vmul.f32 %v2663, %v761
    %v2697 = vmul.f32 %v2688, %v766
    %v2698 = vmul.f32 %v2664, %v766
    %v2699 = vmul.f32 %v2689, %v771
    %v2700 = vmul.f32 %v2665, %v771
    %v2701 = vmul.f32 %v2690, %v776
    %v2702 = vmul.f32 %v2666, %v776
    %v2703 = vmul.f32 %v2691, %v781
    %v2704 = vmul.f32 %v2667, %v781
    %v2705 = vmul.f32 %v2692, %v786
    %v2706 = vmul.f32 %v2668, %v786
    %v2707 = vmul.f32 %v2693, %v791
    %v2708 = vmul.f32 %v2669, %v791
    %v2709 = vmul.f32 %v2694, %v796
    %v2710 = vmul.f32 %v2670, %v796
    %v2711 = vadd.f32 %v2599, %v2695
    %v2712 = vadd.f32 %v2600, %v2696
    %v2713 = vadd.f32 %v2601, %v2697
    %v2714 = vadd.f32 %v2602, %v2698
    %v2715 = vadd.f32 %v2603, %v2699
    %v2716 = vadd.f32 %v2604, %v2700
    %v2717 = vadd.f32 %v2605, %v2701
    %v2718 = vadd.f32 %v2606, %v2702
    %v2719 = vadd.f32 %v2607, %v2703
    %v2720 = vadd.f32 %v2608, %v2704
    %v2721 = vadd.f32 %v2609, %v2705
    %v2722 = vadd.f32 %v2610, %v2706
    %v2723 = vadd.f32 %v2611, %v2707
    %v2724 = vadd.f32 %v2612, %v2708
    %v2725 = vadd.f32 %v2613, %v2709
    %v2726 = vadd.f32 %v2614, %v2710
    %2743 = vrot.lane.b32.xlu0 %v2471, 15
    %v2744 = vpop.permute.xlu0 %2743
    %2745 = vrot.lane.b32.xlu0 %v2472, 15
    %v2746 = vpop.permute.xlu0 %2745
    %2747 = vrot.lane.b32.xlu0 %v2473, 15
    %v2748 = vpop.permute.xlu0 %2747
    %2749 = vrot.lane.b32.xlu0 %v2474, 15
    %v2750 = vpop.permute.xlu0 %2749
    %2751 = vrot.lane.b32.xlu0 %v2475, 15
    %v2752 = vpop.permute.xlu0 %2751
    %2753 = vrot.lane.b32.xlu0 %v2476, 15
    %v2754 = vpop.permute.xlu0 %2753
    %2755 = vrot.lane.b32.xlu0 %v2477, 15
    %v2756 = vpop.permute.xlu0 %2755
    %2757 = vrot.lane.b32.xlu0 %v2478, 15
    %v2758 = vpop.permute.xlu0 %2757
    %2759 = vrot.lane.b32.xlu0 %v2479, 15
    %v2760 = vpop.permute.xlu0 %2759
    %2761 = vrot.lane.b32.xlu0 %v2480, 15
    %v2762 = vpop.permute.xlu0 %2761
    %2763 = vrot.lane.b32.xlu0 %v2481, 15
    %v2764 = vpop.permute.xlu0 %2763
    %2765 = vrot.lane.b32.xlu0 %v2482, 15
    %v2766 = vpop.permute.xlu0 %2765
    %2767 = vrot.lane.b32.xlu0 %v2483, 15
    %v2768 = vpop.permute.xlu0 %2767
    %2769 = vrot.lane.b32.xlu0 %v2484, 15
    %v2770 = vpop.permute.xlu0 %2769
    %2771 = vrot.lane.b32.xlu0 %v2485, 15
    %v2772 = vpop.permute.xlu0 %2771
    %2773 = vrot.lane.b32.xlu0 %v2486, 15
    %v2774 = vpop.permute.xlu0 %2773
    %v2775 = vsel %vm878, %v2744, %v2746
    %v2776 = vsel %vm878, %v2748, %v2750
    %v2777 = vsel %vm878, %v2752, %v2754
    %v2778 = vsel %vm878, %v2756, %v2758
    %v2779 = vsel %vm878, %v2760, %v2762
    %v2780 = vsel %vm878, %v2764, %v2766
    %v2781 = vsel %vm878, %v2768, %v2770
    %v2782 = vsel %vm878, %v2772, %v2774
    %v2799 = vsel %vm878, 0.0, %v2744
    %v2800 = vsel %vm878, 0.0, %v2748
    %v2801 = vsel %vm878, 0.0, %v2752
    %v2802 = vsel %vm878, 0.0, %v2756
    %v2803 = vsel %vm878, 0.0, %v2760
    %v2804 = vsel %vm878, 0.0, %v2764
    %v2805 = vsel %vm878, 0.0, %v2768
    %v2806 = vsel %vm878, 0.0, %v2772
    %v2807 = vmul.f32 %v2799, %v914
    %v2808 = vmul.f32 %v2775, %v914
    %v2809 = vmul.f32 %v2800, %v919
    %v2810 = vmul.f32 %v2776, %v919
    %v2811 = vmul.f32 %v2801, %v924
    %v2812 = vmul.f32 %v2777, %v924
    %v2813 = vmul.f32 %v2802, %v929
    %v2814 = vmul.f32 %v2778, %v929
    %v2815 = vmul.f32 %v2803, %v934
    %v2816 = vmul.f32 %v2779, %v934
    %v2817 = vmul.f32 %v2804, %v939
    %v2818 = vmul.f32 %v2780, %v939
    %v2819 = vmul.f32 %v2805, %v944
    %v2820 = vmul.f32 %v2781, %v944
    %v2821 = vmul.f32 %v2806, %v949
    %v2822 = vmul.f32 %v2782, %v949
    %v2823 = vadd.f32 %v2711, %v2807
    %v2824 = vadd.f32 %v2712, %v2808
    %v2825 = vadd.f32 %v2713, %v2809
    %v2826 = vadd.f32 %v2714, %v2810
    %v2827 = vadd.f32 %v2715, %v2811
    %v2828 = vadd.f32 %v2716, %v2812
    %v2829 = vadd.f32 %v2717, %v2813
    %v2830 = vadd.f32 %v2718, %v2814
    %v2831 = vadd.f32 %v2719, %v2815
    %v2832 = vadd.f32 %v2720, %v2816
    %v2833 = vadd.f32 %v2721, %v2817
    %v2834 = vadd.f32 %v2722, %v2818
    %v2835 = vadd.f32 %v2723, %v2819
    %v2836 = vadd.f32 %v2724, %v2820
    %v2837 = vadd.f32 %v2725, %v2821
    %v2838 = vadd.f32 %v2726, %v2822
    %2839 = vrot.lane.b32.xlu0 %v2455, 1
    %v2840 = vpop.permute.xlu0 %2839
    %2841 = vrot.lane.b32.xlu0 %v2456, 1
    %v2842 = vpop.permute.xlu0 %2841
    %2843 = vrot.lane.b32.xlu0 %v2457, 1
    %v2844 = vpop.permute.xlu0 %2843
    %2845 = vrot.lane.b32.xlu0 %v2458, 1
    %v2846 = vpop.permute.xlu0 %2845
    %2847 = vrot.lane.b32.xlu0 %v2459, 1
    %v2848 = vpop.permute.xlu0 %2847
    %2849 = vrot.lane.b32.xlu0 %v2460, 1
    %v2850 = vpop.permute.xlu0 %2849
    %2851 = vrot.lane.b32.xlu0 %v2461, 1
    %v2852 = vpop.permute.xlu0 %2851
    %2853 = vrot.lane.b32.xlu0 %v2462, 1
    %v2854 = vpop.permute.xlu0 %2853
    %2855 = vrot.lane.b32.xlu0 %v2463, 1
    %v2856 = vpop.permute.xlu0 %2855
    %2857 = vrot.lane.b32.xlu0 %v2464, 1
    %v2858 = vpop.permute.xlu0 %2857
    %2859 = vrot.lane.b32.xlu0 %v2465, 1
    %v2860 = vpop.permute.xlu0 %2859
    %2861 = vrot.lane.b32.xlu0 %v2466, 1
    %v2862 = vpop.permute.xlu0 %2861
    %2863 = vrot.lane.b32.xlu0 %v2467, 1
    %v2864 = vpop.permute.xlu0 %2863
    %2865 = vrot.lane.b32.xlu0 %v2468, 1
    %v2866 = vpop.permute.xlu0 %2865
    %2867 = vrot.lane.b32.xlu0 %v2469, 1
    %v2868 = vpop.permute.xlu0 %2867
    %2869 = vrot.lane.b32.xlu0 %v2470, 1
    %v2870 = vpop.permute.xlu0 %2869
    %v2871 = vsel %vm1015, %v2840, %v2842
    %v2872 = vsel %vm1015, %v2844, %v2846
    %v2873 = vsel %vm1015, %v2848, %v2850
    %v2874 = vsel %vm1015, %v2852, %v2854
    %v2875 = vsel %vm1015, %v2856, %v2858
    %v2876 = vsel %vm1015, %v2860, %v2862
    %v2877 = vsel %vm1015, %v2864, %v2866
    %v2878 = vsel %vm1015, %v2868, %v2870
    %v2895 = vsel %vm1015, 0.0, %v2840
    %v2896 = vsel %vm1015, 0.0, %v2844
    %v2897 = vsel %vm1015, 0.0, %v2848
    %v2898 = vsel %vm1015, 0.0, %v2852
    %v2899 = vsel %vm1015, 0.0, %v2856
    %v2900 = vsel %vm1015, 0.0, %v2860
    %v2901 = vsel %vm1015, 0.0, %v2864
    %v2902 = vsel %vm1015, 0.0, %v2868
    %v2903 = vmul.f32 %v2895, %v1051
    %v2904 = vmul.f32 %v2871, %v1051
    %v2905 = vmul.f32 %v2896, %v1056
    %v2906 = vmul.f32 %v2872, %v1056
    %v2907 = vmul.f32 %v2897, %v1061
    %v2908 = vmul.f32 %v2873, %v1061
    %v2909 = vmul.f32 %v2898, %v1066
    %v2910 = vmul.f32 %v2874, %v1066
    %v2911 = vmul.f32 %v2899, %v1071
    %v2912 = vmul.f32 %v2875, %v1071
    %v2913 = vmul.f32 %v2900, %v1076
    %v2914 = vmul.f32 %v2876, %v1076
    %v2915 = vmul.f32 %v2901, %v1081
    %v2916 = vmul.f32 %v2877, %v1081
    %v2917 = vmul.f32 %v2902, %v1086
    %v2918 = vmul.f32 %v2878, %v1086
    %v2919 = vadd.f32 %v2823, %v2903
    %v2920 = vadd.f32 %v2824, %v2904
    %v2921 = vadd.f32 %v2825, %v2905
    %v2922 = vadd.f32 %v2826, %v2906
    %v2923 = vadd.f32 %v2827, %v2907
    %v2924 = vadd.f32 %v2828, %v2908
    %v2925 = vadd.f32 %v2829, %v2909
    %v2926 = vadd.f32 %v2830, %v2910
    %v2927 = vadd.f32 %v2831, %v2911
    %v2928 = vadd.f32 %v2832, %v2912
    %v2929 = vadd.f32 %v2833, %v2913
    %v2930 = vadd.f32 %v2834, %v2914
    %v2931 = vadd.f32 %v2835, %v2915
    %v2932 = vadd.f32 %v2836, %v2916
    %v2933 = vadd.f32 %v2837, %v2917
    %v2934 = vadd.f32 %v2838, %v2918
    %2935 = vrot.lane.b32.xlu0 %v2471, 127
    %v2936 = vpop.permute.xlu0 %2935
    %2937 = vrot.lane.b32.xlu0 %v2472, 127
    %v2938 = vpop.permute.xlu0 %2937
    %2939 = vrot.lane.b32.xlu0 %v2473, 127
    %v2940 = vpop.permute.xlu0 %2939
    %2941 = vrot.lane.b32.xlu0 %v2474, 127
    %v2942 = vpop.permute.xlu0 %2941
    %2943 = vrot.lane.b32.xlu0 %v2475, 127
    %v2944 = vpop.permute.xlu0 %2943
    %2945 = vrot.lane.b32.xlu0 %v2476, 127
    %v2946 = vpop.permute.xlu0 %2945
    %2947 = vrot.lane.b32.xlu0 %v2477, 127
    %v2948 = vpop.permute.xlu0 %2947
    %2949 = vrot.lane.b32.xlu0 %v2478, 127
    %v2950 = vpop.permute.xlu0 %2949
    %2951 = vrot.lane.b32.xlu0 %v2479, 127
    %v2952 = vpop.permute.xlu0 %2951
    %2953 = vrot.lane.b32.xlu0 %v2480, 127
    %v2954 = vpop.permute.xlu0 %2953
    %2955 = vrot.lane.b32.xlu0 %v2481, 127
    %v2956 = vpop.permute.xlu0 %2955
    %2957 = vrot.lane.b32.xlu0 %v2482, 127
    %v2958 = vpop.permute.xlu0 %2957
    %2959 = vrot.lane.b32.xlu0 %v2483, 127
    %v2960 = vpop.permute.xlu0 %2959
    %2961 = vrot.lane.b32.xlu0 %v2484, 127
    %v2962 = vpop.permute.xlu0 %2961
    %2963 = vrot.lane.b32.xlu0 %v2485, 127
    %v2964 = vpop.permute.xlu0 %2963
    %2965 = vrot.lane.b32.xlu0 %v2486, 127
    %v2966 = vpop.permute.xlu0 %2965
    %v2967 = vsel %vm1152, %v2936, %v2938
    %v2968 = vsel %vm1152, %v2940, %v2942
    %v2969 = vsel %vm1152, %v2944, %v2946
    %v2970 = vsel %vm1152, %v2948, %v2950
    %v2971 = vsel %vm1152, %v2952, %v2954
    %v2972 = vsel %vm1152, %v2956, %v2958
    %v2973 = vsel %vm1152, %v2960, %v2962
    %v2974 = vsel %vm1152, %v2964, %v2966
    %v2991 = vsel %vm1152, %v2938, 0.0
    %v2992 = vsel %vm1152, %v2942, 0.0
    %v2993 = vsel %vm1152, %v2946, 0.0
    %v2994 = vsel %vm1152, %v2950, 0.0
    %v2995 = vsel %vm1152, %v2954, 0.0
    %v2996 = vsel %vm1152, %v2958, 0.0
    %v2997 = vsel %vm1152, %v2962, 0.0
    %v2998 = vsel %vm1152, %v2966, 0.0
    %v2999 = vmul.f32 %v2967, %v1188
    %v3000 = vmul.f32 %v2991, %v1188
    %v3001 = vmul.f32 %v2968, %v1193
    %v3002 = vmul.f32 %v2992, %v1193
    %v3003 = vmul.f32 %v2969, %v1198
    %v3004 = vmul.f32 %v2993, %v1198
    %v3005 = vmul.f32 %v2970, %v1203
    %v3006 = vmul.f32 %v2994, %v1203
    %v3007 = vmul.f32 %v2971, %v1208
    %v3008 = vmul.f32 %v2995, %v1208
    %v3009 = vmul.f32 %v2972, %v1213
    %v3010 = vmul.f32 %v2996, %v1213
    %v3011 = vmul.f32 %v2973, %v1218
    %v3012 = vmul.f32 %v2997, %v1218
    %v3013 = vmul.f32 %v2974, %v1223
    %v3014 = vmul.f32 %v2998, %v1223
    %v3015 = vadd.f32 %v2919, %v2999
    %v3016 = vadd.f32 %v2920, %v3000
    %v3017 = vadd.f32 %v2921, %v3001
    %v3018 = vadd.f32 %v2922, %v3002
    %v3019 = vadd.f32 %v2923, %v3003
    %v3020 = vadd.f32 %v2924, %v3004
    %v3021 = vadd.f32 %v2925, %v3005
    %v3022 = vadd.f32 %v2926, %v3006
    %v3023 = vadd.f32 %v2927, %v3007
    %v3024 = vadd.f32 %v2928, %v3008
    %v3025 = vadd.f32 %v2929, %v3009
    %v3026 = vadd.f32 %v2930, %v3010
    %v3027 = vadd.f32 %v2931, %v3011
    %v3028 = vadd.f32 %v2932, %v3012
    %v3029 = vadd.f32 %v2933, %v3013
    %v3030 = vadd.f32 %v2934, %v3014
    %3031 = vrot.lane.b32.xlu0 %v2455, 113
    %v3032 = vpop.permute.xlu0 %3031
    %3033 = vrot.lane.b32.xlu0 %v2456, 113
    %v3034 = vpop.permute.xlu0 %3033
    %3035 = vrot.lane.b32.xlu0 %v2457, 113
    %v3036 = vpop.permute.xlu0 %3035
    %3037 = vrot.lane.b32.xlu0 %v2458, 113
    %v3038 = vpop.permute.xlu0 %3037
    %3039 = vrot.lane.b32.xlu0 %v2459, 113
    %v3040 = vpop.permute.xlu0 %3039
    %3041 = vrot.lane.b32.xlu0 %v2460, 113
    %v3042 = vpop.permute.xlu0 %3041
    %3043 = vrot.lane.b32.xlu0 %v2461, 113
    %v3044 = vpop.permute.xlu0 %3043
    %3045 = vrot.lane.b32.xlu0 %v2462, 113
    %v3046 = vpop.permute.xlu0 %3045
    %3047 = vrot.lane.b32.xlu0 %v2463, 113
    %v3048 = vpop.permute.xlu0 %3047
    %3049 = vrot.lane.b32.xlu0 %v2464, 113
    %v3050 = vpop.permute.xlu0 %3049
    %3051 = vrot.lane.b32.xlu0 %v2465, 113
    %v3052 = vpop.permute.xlu0 %3051
    %3053 = vrot.lane.b32.xlu0 %v2466, 113
    %v3054 = vpop.permute.xlu0 %3053
    %3055 = vrot.lane.b32.xlu0 %v2467, 113
    %v3056 = vpop.permute.xlu0 %3055
    %3057 = vrot.lane.b32.xlu0 %v2468, 113
    %v3058 = vpop.permute.xlu0 %3057
    %3059 = vrot.lane.b32.xlu0 %v2469, 113
    %v3060 = vpop.permute.xlu0 %3059
    %3061 = vrot.lane.b32.xlu0 %v2470, 113
    %v3062 = vpop.permute.xlu0 %3061
    %v3063 = vsel %vm1289, %v3032, %v3034
    %v3064 = vsel %vm1289, %v3036, %v3038
    %v3065 = vsel %vm1289, %v3040, %v3042
    %v3066 = vsel %vm1289, %v3044, %v3046
    %v3067 = vsel %vm1289, %v3048, %v3050
    %v3068 = vsel %vm1289, %v3052, %v3054
    %v3069 = vsel %vm1289, %v3056, %v3058
    %v3070 = vsel %vm1289, %v3060, %v3062
    %v3087 = vsel %vm1289, %v3034, 0.0
    %v3088 = vsel %vm1289, %v3038, 0.0
    %v3089 = vsel %vm1289, %v3042, 0.0
    %v3090 = vsel %vm1289, %v3046, 0.0
    %v3091 = vsel %vm1289, %v3050, 0.0
    %v3092 = vsel %vm1289, %v3054, 0.0
    %v3093 = vsel %vm1289, %v3058, 0.0
    %v3094 = vsel %vm1289, %v3062, 0.0
    %v3095 = vmul.f32 %v3063, %v1325
    %v3096 = vmul.f32 %v3087, %v1325
    %v3097 = vmul.f32 %v3064, %v1330
    %v3098 = vmul.f32 %v3088, %v1330
    %v3099 = vmul.f32 %v3065, %v1335
    %v3100 = vmul.f32 %v3089, %v1335
    %v3101 = vmul.f32 %v3066, %v1340
    %v3102 = vmul.f32 %v3090, %v1340
    %v3103 = vmul.f32 %v3067, %v1345
    %v3104 = vmul.f32 %v3091, %v1345
    %v3105 = vmul.f32 %v3068, %v1350
    %v3106 = vmul.f32 %v3092, %v1350
    %v3107 = vmul.f32 %v3069, %v1355
    %v3108 = vmul.f32 %v3093, %v1355
    %v3109 = vmul.f32 %v3070, %v1360
    %v3110 = vmul.f32 %v3094, %v1360
    %v3111 = vadd.f32 %v3015, %v3095
    %v3112 = vadd.f32 %v3016, %v3096
    %v3113 = vadd.f32 %v3017, %v3097
    %v3114 = vadd.f32 %v3018, %v3098
    %v3115 = vadd.f32 %v3019, %v3099
    %v3116 = vadd.f32 %v3020, %v3100
    %v3117 = vadd.f32 %v3021, %v3101
    %v3118 = vadd.f32 %v3022, %v3102
    %v3119 = vadd.f32 %v3023, %v3103
    %v3120 = vadd.f32 %v3024, %v3104
    %v3121 = vadd.f32 %v3025, %v3105
    %v3122 = vadd.f32 %v3026, %v3106
    %v3123 = vadd.f32 %v3027, %v3107
    %v3124 = vadd.f32 %v3028, %v3108
    %v3125 = vadd.f32 %v3029, %v3109
    %v3126 = vadd.f32 %v3030, %v3110
    %3127 = vrot.lane.b32.xlu0 %v2439, 112
    %v3128 = vpop.permute.xlu0 %3127
    %3129 = vrot.lane.b32.xlu0 %v2440, 112
    %v3130 = vpop.permute.xlu0 %3129
    %3131 = vrot.lane.b32.xlu0 %v2441, 112
    %v3132 = vpop.permute.xlu0 %3131
    %3133 = vrot.lane.b32.xlu0 %v2442, 112
    %v3134 = vpop.permute.xlu0 %3133
    %3135 = vrot.lane.b32.xlu0 %v2443, 112
    %v3136 = vpop.permute.xlu0 %3135
    %3137 = vrot.lane.b32.xlu0 %v2444, 112
    %v3138 = vpop.permute.xlu0 %3137
    %3139 = vrot.lane.b32.xlu0 %v2445, 112
    %v3140 = vpop.permute.xlu0 %3139
    %3141 = vrot.lane.b32.xlu0 %v2446, 112
    %v3142 = vpop.permute.xlu0 %3141
    %3143 = vrot.lane.b32.xlu0 %v2447, 112
    %v3144 = vpop.permute.xlu0 %3143
    %3145 = vrot.lane.b32.xlu0 %v2448, 112
    %v3146 = vpop.permute.xlu0 %3145
    %3147 = vrot.lane.b32.xlu0 %v2449, 112
    %v3148 = vpop.permute.xlu0 %3147
    %3149 = vrot.lane.b32.xlu0 %v2450, 112
    %v3150 = vpop.permute.xlu0 %3149
    %3151 = vrot.lane.b32.xlu0 %v2451, 112
    %v3152 = vpop.permute.xlu0 %3151
    %3153 = vrot.lane.b32.xlu0 %v2452, 112
    %v3154 = vpop.permute.xlu0 %3153
    %3155 = vrot.lane.b32.xlu0 %v2453, 112
    %v3156 = vpop.permute.xlu0 %3155
    %3157 = vrot.lane.b32.xlu0 %v2454, 112
    %v3158 = vpop.permute.xlu0 %3157
    %v3159 = vsel %vm1426, %v3128, %v3130
    %v3160 = vsel %vm1426, %v3132, %v3134
    %v3161 = vsel %vm1426, %v3136, %v3138
    %v3162 = vsel %vm1426, %v3140, %v3142
    %v3163 = vsel %vm1426, %v3144, %v3146
    %v3164 = vsel %vm1426, %v3148, %v3150
    %v3165 = vsel %vm1426, %v3152, %v3154
    %v3166 = vsel %vm1426, %v3156, %v3158
    %v3183 = vsel %vm1426, %v3130, 0.0
    %v3184 = vsel %vm1426, %v3134, 0.0
    %v3185 = vsel %vm1426, %v3138, 0.0
    %v3186 = vsel %vm1426, %v3142, 0.0
    %v3187 = vsel %vm1426, %v3146, 0.0
    %v3188 = vsel %vm1426, %v3150, 0.0
    %v3189 = vsel %vm1426, %v3154, 0.0
    %v3190 = vsel %vm1426, %v3158, 0.0
    %v3191 = vmul.f32 %v3159, %v1462
    %v3192 = vmul.f32 %v3183, %v1462
    %v3193 = vmul.f32 %v3160, %v1467
    %v3194 = vmul.f32 %v3184, %v1467
    %v3195 = vmul.f32 %v3161, %v1472
    %v3196 = vmul.f32 %v3185, %v1472
    %v3197 = vmul.f32 %v3162, %v1477
    %v3198 = vmul.f32 %v3186, %v1477
    %v3199 = vmul.f32 %v3163, %v1482
    %v3200 = vmul.f32 %v3187, %v1482
    %v3201 = vmul.f32 %v3164, %v1487
    %v3202 = vmul.f32 %v3188, %v1487
    %v3203 = vmul.f32 %v3165, %v1492
    %v3204 = vmul.f32 %v3189, %v1492
    %v3205 = vmul.f32 %v3166, %v1497
    %v3206 = vmul.f32 %v3190, %v1497
    %v3207 = vadd.f32 %v3111, %v3191
    %v3208 = vadd.f32 %v3112, %v3192
    %v3209 = vadd.f32 %v3113, %v3193
    %v3210 = vadd.f32 %v3114, %v3194
    %v3211 = vadd.f32 %v3115, %v3195
    %v3212 = vadd.f32 %v3116, %v3196
    %v3213 = vadd.f32 %v3117, %v3197
    %v3214 = vadd.f32 %v3118, %v3198
    %v3215 = vadd.f32 %v3119, %v3199
    %v3216 = vadd.f32 %v3120, %v3200
    %v3217 = vadd.f32 %v3121, %v3201
    %v3218 = vadd.f32 %v3122, %v3202
    %v3219 = vadd.f32 %v3123, %v3203
    %v3220 = vadd.f32 %v3124, %v3204
    %v3221 = vadd.f32 %v3125, %v3205
    %v3222 = vadd.f32 %v3126, %v3206
    %3223 = vrot.lane.b32.xlu0 %v2471, 111
    %v3224 = vpop.permute.xlu0 %3223
    %3225 = vrot.lane.b32.xlu0 %v2472, 111
    %v3226 = vpop.permute.xlu0 %3225
    %3227 = vrot.lane.b32.xlu0 %v2473, 111
    %v3228 = vpop.permute.xlu0 %3227
    %3229 = vrot.lane.b32.xlu0 %v2474, 111
    %v3230 = vpop.permute.xlu0 %3229
    %3231 = vrot.lane.b32.xlu0 %v2475, 111
    %v3232 = vpop.permute.xlu0 %3231
    %3233 = vrot.lane.b32.xlu0 %v2476, 111
    %v3234 = vpop.permute.xlu0 %3233
    %3235 = vrot.lane.b32.xlu0 %v2477, 111
    %v3236 = vpop.permute.xlu0 %3235
    %3237 = vrot.lane.b32.xlu0 %v2478, 111
    %v3238 = vpop.permute.xlu0 %3237
    %3239 = vrot.lane.b32.xlu0 %v2479, 111
    %v3240 = vpop.permute.xlu0 %3239
    %3241 = vrot.lane.b32.xlu0 %v2480, 111
    %v3242 = vpop.permute.xlu0 %3241
    %3243 = vrot.lane.b32.xlu0 %v2481, 111
    %v3244 = vpop.permute.xlu0 %3243
    %3245 = vrot.lane.b32.xlu0 %v2482, 111
    %v3246 = vpop.permute.xlu0 %3245
    %3247 = vrot.lane.b32.xlu0 %v2483, 111
    %v3248 = vpop.permute.xlu0 %3247
    %3249 = vrot.lane.b32.xlu0 %v2484, 111
    %v3250 = vpop.permute.xlu0 %3249
    %3251 = vrot.lane.b32.xlu0 %v2485, 111
    %v3252 = vpop.permute.xlu0 %3251
    %3253 = vrot.lane.b32.xlu0 %v2486, 111
    %v3254 = vpop.permute.xlu0 %3253
    %v3255 = vsel %vm1563, %v3224, %v3226
    %v3256 = vsel %vm1563, %v3228, %v3230
    %v3257 = vsel %vm1563, %v3232, %v3234
    %v3258 = vsel %vm1563, %v3236, %v3238
    %v3259 = vsel %vm1563, %v3240, %v3242
    %v3260 = vsel %vm1563, %v3244, %v3246
    %v3261 = vsel %vm1563, %v3248, %v3250
    %v3262 = vsel %vm1563, %v3252, %v3254
    %v3279 = vsel %vm1563, %v3226, 0.0
    %v3280 = vsel %vm1563, %v3230, 0.0
    %v3281 = vsel %vm1563, %v3234, 0.0
    %v3282 = vsel %vm1563, %v3238, 0.0
    %v3283 = vsel %vm1563, %v3242, 0.0
    %v3284 = vsel %vm1563, %v3246, 0.0
    %v3285 = vsel %vm1563, %v3250, 0.0
    %v3286 = vsel %vm1563, %v3254, 0.0
    %v3287 = vmul.f32 %v3255, %v1599
    %v3288 = vmul.f32 %v3279, %v1599
    %v3289 = vmul.f32 %v3256, %v1604
    %v3290 = vmul.f32 %v3280, %v1604
    %v3291 = vmul.f32 %v3257, %v1609
    %v3292 = vmul.f32 %v3281, %v1609
    %v3293 = vmul.f32 %v3258, %v1614
    %v3294 = vmul.f32 %v3282, %v1614
    %v3295 = vmul.f32 %v3259, %v1619
    %v3296 = vmul.f32 %v3283, %v1619
    %v3297 = vmul.f32 %v3260, %v1624
    %v3298 = vmul.f32 %v3284, %v1624
    %v3299 = vmul.f32 %v3261, %v1629
    %v3300 = vmul.f32 %v3285, %v1629
    %v3301 = vmul.f32 %v3262, %v1634
    %v3302 = vmul.f32 %v3286, %v1634
    %v3303 = vadd.f32 %v3207, %v3287
    %v3304 = vadd.f32 %v3208, %v3288
    %v3305 = vadd.f32 %v3209, %v3289
    %v3306 = vadd.f32 %v3210, %v3290
    %v3307 = vadd.f32 %v3211, %v3291
    %v3308 = vadd.f32 %v3212, %v3292
    %v3309 = vadd.f32 %v3213, %v3293
    %v3310 = vadd.f32 %v3214, %v3294
    %v3311 = vadd.f32 %v3215, %v3295
    %v3312 = vadd.f32 %v3216, %v3296
    %v3313 = vadd.f32 %v3217, %v3297
    %v3314 = vadd.f32 %v3218, %v3298
    %v3315 = vadd.f32 %v3219, %v3299
    %v3316 = vadd.f32 %v3220, %v3300
    %v3317 = vadd.f32 %v3221, %v3301
    %v3318 = vadd.f32 %v3222, %v3302
    %v3319 = vadd.f32 %v3303, %v1671
    %v3320 = vadd.f32 %v3304, %v1671
    %v3321 = vadd.f32 %v3305, %v1676
    %v3322 = vadd.f32 %v3306, %v1676
    %v3323 = vadd.f32 %v3307, %v1681
    %v3324 = vadd.f32 %v3308, %v1681
    %v3325 = vadd.f32 %v3309, %v1686
    %v3326 = vadd.f32 %v3310, %v1686
    %v3327 = vadd.f32 %v3311, %v1691
    %v3328 = vadd.f32 %v3312, %v1691
    %v3329 = vadd.f32 %v3313, %v1696
    %v3330 = vadd.f32 %v3314, %v1696
    %v3331 = vadd.f32 %v3315, %v1701
    %v3332 = vadd.f32 %v3316, %v1701
    %v3333 = vadd.f32 %v3317, %v1706
    %v3334 = vadd.f32 %v3318, %v1706
    %v3335 = vmul.f32 %v3319, 0.5
    %v3336 = vmul.f32 %v3320, 0.5
    %v3337 = vmul.f32 %v3321, 0.5
    %v3338 = vmul.f32 %v3322, 0.5
    %v3339 = vmul.f32 %v3323, 0.5
    %v3340 = vmul.f32 %v3324, 0.5
    %v3341 = vmul.f32 %v3325, 0.5
    %v3342 = vmul.f32 %v3326, 0.5
    %v3343 = vmul.f32 %v3327, 0.5
    %v3344 = vmul.f32 %v3328, 0.5
    %v3345 = vmul.f32 %v3329, 0.5
    %v3346 = vmul.f32 %v3330, 0.5
    %v3347 = vmul.f32 %v3331, 0.5
    %v3348 = vmul.f32 %v3332, 0.5
    %v3349 = vmul.f32 %v3333, 0.5
    %v3350 = vmul.f32 %v3334, 0.5
    %v3351 = vtanh.pop %v3335
    %v3352 = vtanh.pop %v3336
    %v3353 = vtanh.pop %v3337
    %v3354 = vtanh.pop %v3338
    %v3355 = vtanh.pop %v3339
    %v3356 = vtanh.pop %v3340
    %v3357 = vtanh.pop %v3341
    %v3358 = vtanh.pop %v3342
    %v3359 = vtanh.pop %v3343
    %v3360 = vtanh.pop %v3344
    %v3361 = vtanh.pop %v3345
    %v3362 = vtanh.pop %v3346
    %v3363 = vtanh.pop %v3347
    %v3364 = vtanh.pop %v3348
    %v3365 = vtanh.pop %v3349
    %v3366 = vtanh.pop %v3350
    %v3367 = vadd.f32 %v3351, 1.0
    %v3368 = vadd.f32 %v3352, 1.0
    %v3369 = vadd.f32 %v3353, 1.0
    %v3370 = vadd.f32 %v3354, 1.0
    %v3371 = vadd.f32 %v3355, 1.0
    %v3372 = vadd.f32 %v3356, 1.0
    %v3373 = vadd.f32 %v3357, 1.0
    %v3374 = vadd.f32 %v3358, 1.0
    %v3375 = vadd.f32 %v3359, 1.0
    %v3376 = vadd.f32 %v3360, 1.0
    %v3377 = vadd.f32 %v3361, 1.0
    %v3378 = vadd.f32 %v3362, 1.0
    %v3379 = vadd.f32 %v3363, 1.0
    %v3380 = vadd.f32 %v3364, 1.0
    %v3381 = vadd.f32 %v3365, 1.0
    %v3382 = vadd.f32 %v3366, 1.0
    %v3383 = vmul.f32 %v3367, 0.5
    %v3384 = vmul.f32 %v3368, 0.5
    %v3385 = vmul.f32 %v3369, 0.5
    %v3386 = vmul.f32 %v3370, 0.5
    %v3387 = vmul.f32 %v3371, 0.5
    %v3388 = vmul.f32 %v3372, 0.5
    %v3389 = vmul.f32 %v3373, 0.5
    %v3390 = vmul.f32 %v3374, 0.5
    %v3391 = vmul.f32 %v3375, 0.5
    %v3392 = vmul.f32 %v3376, 0.5
    %v3393 = vmul.f32 %v3377, 0.5
    %v3394 = vmul.f32 %v3378, 0.5
    %v3395 = vmul.f32 %v3379, 0.5
    %v3396 = vmul.f32 %v3380, 0.5
    %v3397 = vmul.f32 %v3381, 0.5
    %v3398 = vmul.f32 %v3382, 0.5
    %v3399 = vmul.f32 %v3319, %v3383
    %v3400 = vmul.f32 %v3320, %v3384
    %v3401 = vmul.f32 %v3321, %v3385
    %v3402 = vmul.f32 %v3322, %v3386
    %v3403 = vmul.f32 %v3323, %v3387
    %v3404 = vmul.f32 %v3324, %v3388
    %v3405 = vmul.f32 %v3325, %v3389
    %v3406 = vmul.f32 %v3326, %v3390
    %v3407 = vmul.f32 %v3327, %v3391
    %v3408 = vmul.f32 %v3328, %v3392
    %v3409 = vmul.f32 %v3329, %v3393
    %v3410 = vmul.f32 %v3330, %v3394
    %v3411 = vmul.f32 %v3331, %v3395
    %v3412 = vmul.f32 %v3332, %v3396
    %v3413 = vmul.f32 %v3333, %v3397
    %v3414 = vmul.f32 %v3334, %v3398
    %v3415 = vadd.f32 %v3399, %v3400
    %3416 = vadd.xlane.f32.xlu0 %v3415
    %v3417 = vpop.xlane.xlu0 %3416
    %v3418 = vadd.f32 %v3401, %v3402
    %3419 = vadd.xlane.f32.xlu0 %v3418
    %v3420 = vpop.xlane.xlu0 %3419
    %v3421 = vadd.f32 %v3403, %v3404
    %3422 = vadd.xlane.f32.xlu0 %v3421
    %v3423 = vpop.xlane.xlu0 %3422
    %v3424 = vadd.f32 %v3405, %v3406
    %3425 = vadd.xlane.f32.xlu0 %v3424
    %v3426 = vpop.xlane.xlu0 %3425
    %v3427 = vadd.f32 %v3407, %v3408
    %3428 = vadd.xlane.f32.xlu0 %v3427
    %v3429 = vpop.xlane.xlu0 %3428
    %v3430 = vadd.f32 %v3409, %v3410
    %3431 = vadd.xlane.f32.xlu0 %v3430
    %v3432 = vpop.xlane.xlu0 %3431
    %v3433 = vadd.f32 %v3411, %v3412
    %3434 = vadd.xlane.f32.xlu0 %v3433
    %v3435 = vpop.xlane.xlu0 %3434
    %v3436 = vadd.f32 %v3413, %v3414
    %3437 = vadd.xlane.f32.xlu0 %v3436
    %v3438 = vpop.xlane.xlu0 %3437
    %v3439 = vmul.f32 %v3417, %v1828
    %v3440 = vmul.f32 %v3420, %v1828
    %v3441 = vmul.f32 %v3423, %v1828
    %v3442 = vmul.f32 %v3426, %v1828
    %v3443 = vmul.f32 %v3429, %v1828
    %v3444 = vmul.f32 %v3432, %v1828
    %v3445 = vmul.f32 %v3435, %v1828
    %v3446 = vmul.f32 %v3438, %v1828
    %v3447 = vld [vmem:[%s6] sm:$0xf]
    %v3448 = vld [vmem:[%s7] sm:$0xf]
    %v3450 = vsel %vm1839, %v3447, 0
    %3452 = vmatprep.subr.mxu0 0.0
    %3453 = vmatpush1.msra.mxu0 %v3439
    %3454 = vmatprep.subr.mxu0 0.0
    %3455 = vmatpush1.msra.mxu0 %v3440
    %3456 = vmatprep.subr.mxu0 0.0
    %3457 = vmatpush1.msra.mxu0 %v3441
    %3458 = vmatprep.subr.mxu0 0.0
    %3459 = vmatpush1.msra.mxu0 %v3442
    %3460 = vmatprep.subr.mxu0 0.0
    %3461 = vmatpush1.msra.mxu0 %v3443
    %3462 = vmatprep.subr.mxu0 0.0
    %3463 = vmatpush1.msra.mxu0 %v3444
    %3464 = vmatprep.subr.mxu0 0.0
    %3465 = vmatpush1.msra.mxu0 %v3445
    %3466 = vmatprep.subr.mxu0 0.0
    %3467 = vmatpush1.msra.mxu0 %v3446
    %3468 = vmatprep.subr.mxu0 0.0
    %3469 = vmatpush1.msra.mxu0 0.0
    %3470 = vmatprep.subr.mxu0 0.0
    %3471 = vmatpush1.msra.mxu0 0.0
    %3472 = vmatprep.subr.mxu0 0.0
    %3473 = vmatpush1.msra.mxu0 0.0
    %3474 = vmatprep.subr.mxu0 0.0
    %3475 = vmatpush1.msra.mxu0 0.0
    %3476 = vmatprep.subr.mxu0 0.0
    %3477 = vmatpush1.msra.mxu0 0.0
    %3478 = vmatprep.subr.mxu0 0.0
    %3479 = vmatpush1.msra.mxu0 0.0
    %3480 = vmatprep.subr.mxu0 0.0
    %3481 = vmatpush1.msra.mxu0 0.0
    %3482 = vmatprep.subr.mxu0 0.0
    %3483 = vmatpush1.msra.mxu0 0.0
    %3484 = vmatprep.subr.mxu0 0.0
    %3485 = vmatpush1.msra.mxu0 0.0
    %3486 = vmatprep.subr.mxu0 0.0
    %3487 = vmatpush1.msra.mxu0 0.0
    %3488 = vmatprep.subr.mxu0 0.0
    %3489 = vmatpush1.msra.mxu0 0.0
    %3490 = vmatprep.subr.mxu0 0.0
    %3491 = vmatpush1.msra.mxu0 0.0
    %3492 = vmatprep.subr.mxu0 0.0
    %3493 = vmatpush1.msra.mxu0 0.0
    %3494 = vmatprep.subr.mxu0 0.0
    %3495 = vmatpush1.msra.mxu0 0.0
    %3496 = vmatprep.subr.mxu0 0.0
    %3497 = vmatpush1.msra.mxu0 0.0
    %3498 = vmatprep.subr.mxu0 0.0
    %3499 = vmatpush1.msra.mxu0 0.0
    %3500 = vmatprep.subr.mxu0 0.0
    %3501 = vmatpush1.msra.mxu0 0.0
    %3502 = vmatprep.subr.mxu0 0.0
    %3503 = vmatpush1.msra.mxu0 0.0
    %3504 = vmatprep.subr.mxu0 0.0
    %3505 = vmatpush1.msra.mxu0 0.0
    %3506 = vmatprep.subr.mxu0 0.0
    %3507 = vmatpush1.msra.mxu0 0.0
    %3508 = vmatprep.subr.mxu0 0.0
    %3509 = vmatpush1.msra.mxu0 0.0
    %3510 = vmatprep.subr.mxu0 0.0
    %3511 = vmatpush1.msra.mxu0 0.0
    %3512 = vmatprep.subr.mxu0 0.0
    %3513 = vmatpush1.msra.mxu0 0.0
    %3514 = vmatprep.subr.mxu0 0.0
    %3515 = vmatpush1.msra.mxu0 0.0
    %3516 = vmatprep.mubr.f32.mxu0 0.0
    %3517 = vmatmul.mubr.f32.gmra.mrb[0].mxu0 %v3450
    %v3518 = vpop.f32.mrb[0].mxu0
    %v3519 = vadd.f32 %v3448, %v3518
    %v3520 = vpop.f32.mrb[0].mxu0
    %3521 = vdwg.mxu0
    %v3522 = vmul.f32 %v3519, 0.5
    %v3523 = vtanh.pop %v3522
    %v3524 = vadd.f32 %v3523, 1.0
    %v3525 = vmul.f32 %v3524, 0.5
    %v3526 = vmul.f32 %v3519, %v3525
    %v3527 = vld [vmem:[%s8] sm:$0xff]
    %v3528 = vld [vmem:[%s8 + $0x8] sm:$0xff]
    %v3529 = vld [vmem:[%s8 + $0x10] sm:$0xff]
    %v3530 = vld [vmem:[%s8 + $0x18] sm:$0xff]
    %v3531 = vld [vmem:[%s8 + $0x20] sm:$0xff]
    %v3532 = vld [vmem:[%s8 + $0x28] sm:$0xff]
    %v3533 = vld [vmem:[%s8 + $0x30] sm:$0xff]
    %v3534 = vld [vmem:[%s8 + $0x38] sm:$0xff]
    %v3535 = vld [vmem:[%s9] sm:$0xff]
    %v3536 = vld [vmem:[%s9 + $0x8] sm:$0xff]
    %v3537 = vld [vmem:[%s9 + $0x10] sm:$0xff]
    %v3538 = vld [vmem:[%s9 + $0x18] sm:$0xff]
    %v3539 = vld [vmem:[%s9 + $0x20] sm:$0xff]
    %v3540 = vld [vmem:[%s9 + $0x28] sm:$0xff]
    %v3541 = vld [vmem:[%s9 + $0x30] sm:$0xff]
    %v3542 = vld [vmem:[%s9 + $0x38] sm:$0xff]
    %v3544 = vsel %vm1934, %v3527, 0
    %v3547 = vsel %vm1934, %v3528, 0
    %v3550 = vsel %vm1934, %v3529, 0
    %v3553 = vsel %vm1934, %v3530, 0
    %v3556 = vsel %vm1934, %v3531, 0
    %v3559 = vsel %vm1934, %v3532, 0
    %v3562 = vsel %vm1934, %v3533, 0
    %v3565 = vsel %vm1934, %v3534, 0
    %v3568 = vsel %vm1959, %v3526, 0
    %3570 = vmatprep.subr.mxu0 0.0
    %3571 = vmatpush1.msra.mxu0 %v3568
    %3572 = vmatprep.subr.mxu0 0.0
    %3573 = vmatpush1.msra.mxu0 0.0
    %3574 = vmatprep.subr.mxu0 0.0
    %3575 = vmatpush1.msra.mxu0 0.0
    %3576 = vmatprep.subr.mxu0 0.0
    %3577 = vmatpush1.msra.mxu0 0.0
    %3578 = vmatprep.subr.mxu0 0.0
    %3579 = vmatpush1.msra.mxu0 0.0
    %3580 = vmatprep.subr.mxu0 0.0
    %3581 = vmatpush1.msra.mxu0 0.0
    %3582 = vmatprep.subr.mxu0 0.0
    %3583 = vmatpush1.msra.mxu0 0.0
    %3584 = vmatprep.subr.mxu0 0.0
    %3585 = vmatpush1.msra.mxu0 0.0
    %3586 = vmatprep.subr.mxu0 0.0
    %3587 = vmatpush1.msra.mxu0 0.0
    %3588 = vmatprep.subr.mxu0 0.0
    %3589 = vmatpush1.msra.mxu0 0.0
    %3590 = vmatprep.subr.mxu0 0.0
    %3591 = vmatpush1.msra.mxu0 0.0
    %3592 = vmatprep.subr.mxu0 0.0
    %3593 = vmatpush1.msra.mxu0 0.0
    %3594 = vmatprep.subr.mxu0 0.0
    %3595 = vmatpush1.msra.mxu0 0.0
    %3596 = vmatprep.subr.mxu0 0.0
    %3597 = vmatpush1.msra.mxu0 0.0
    %3598 = vmatprep.subr.mxu0 0.0
    %3599 = vmatpush1.msra.mxu0 0.0
    %3600 = vmatprep.subr.mxu0 0.0
    %3601 = vmatpush1.msra.mxu0 0.0
    %3602 = vmatprep.subr.mxu0 0.0
    %3603 = vmatpush1.msra.mxu0 0.0
    %3604 = vmatprep.subr.mxu0 0.0
    %3605 = vmatpush1.msra.mxu0 0.0
    %3606 = vmatprep.subr.mxu0 0.0
    %3607 = vmatpush1.msra.mxu0 0.0
    %3608 = vmatprep.subr.mxu0 0.0
    %3609 = vmatpush1.msra.mxu0 0.0
    %3610 = vmatprep.subr.mxu0 0.0
    %3611 = vmatpush1.msra.mxu0 0.0
    %3612 = vmatprep.subr.mxu0 0.0
    %3613 = vmatpush1.msra.mxu0 0.0
    %3614 = vmatprep.subr.mxu0 0.0
    %3615 = vmatpush1.msra.mxu0 0.0
    %3616 = vmatprep.subr.mxu0 0.0
    %3617 = vmatpush1.msra.mxu0 0.0
    %3618 = vmatprep.subr.mxu0 0.0
    %3619 = vmatpush1.msra.mxu0 0.0
    %3620 = vmatprep.subr.mxu0 0.0
    %3621 = vmatpush1.msra.mxu0 0.0
    %3622 = vmatprep.subr.mxu0 0.0
    %3623 = vmatpush1.msra.mxu0 0.0
    %3624 = vmatprep.subr.mxu0 0.0
    %3625 = vmatpush1.msra.mxu0 0.0
    %3626 = vmatprep.subr.mxu0 0.0
    %3627 = vmatpush1.msra.mxu0 0.0
    %3628 = vmatprep.subr.mxu0 0.0
    %3629 = vmatpush1.msra.mxu0 0.0
    %3630 = vmatprep.subr.mxu0 0.0
    %3631 = vmatpush1.msra.mxu0 0.0
    %3632 = vmatprep.subr.mxu0 0.0
    %3633 = vmatpush1.msra.mxu0 0.0
    %3634 = vmatprep.mubr.f32.mxu0 0.0
    %3635 = vmatmul.mubr.f32.gmra.mrb[0].mxu0 %v3544
    %v3636 = vpop.f32.mrb[0].mxu0
    %v3637 = vadd.f32 %v3535, %v3636
    %v3638 = vpop.f32.mrb[0].mxu0
    %3639 = vmatprep.mubr.f32.mxu0 0.0
    %3640 = vmatmul.mubr.f32.gmra.mrb[0].mxu0 %v3547
    %v3641 = vpop.f32.mrb[0].mxu0
    %v3642 = vadd.f32 %v3536, %v3641
    %v3643 = vpop.f32.mrb[0].mxu0
    %3644 = vmatprep.mubr.f32.mxu0 0.0
    %3645 = vmatmul.mubr.f32.gmra.mrb[0].mxu0 %v3550
    %v3646 = vpop.f32.mrb[0].mxu0
    %v3647 = vadd.f32 %v3537, %v3646
    %v3648 = vpop.f32.mrb[0].mxu0
    %3649 = vmatprep.mubr.f32.mxu0 0.0
    %3650 = vmatmul.mubr.f32.gmra.mrb[0].mxu0 %v3553
    %v3651 = vpop.f32.mrb[0].mxu0
    %v3652 = vadd.f32 %v3538, %v3651
    %v3653 = vpop.f32.mrb[0].mxu0
    %3654 = vmatprep.mubr.f32.mxu0 0.0
    %3655 = vmatmul.mubr.f32.gmra.mrb[0].mxu0 %v3556
    %v3656 = vpop.f32.mrb[0].mxu0
    %v3657 = vadd.f32 %v3539, %v3656
    %v3658 = vpop.f32.mrb[0].mxu0
    %3659 = vmatprep.mubr.f32.mxu0 0.0
    %3660 = vmatmul.mubr.f32.gmra.mrb[0].mxu0 %v3559
    %v3661 = vpop.f32.mrb[0].mxu0
    %v3662 = vadd.f32 %v3540, %v3661
    %v3663 = vpop.f32.mrb[0].mxu0
    %3664 = vmatprep.mubr.f32.mxu0 0.0
    %3665 = vmatmul.mubr.f32.gmra.mrb[0].mxu0 %v3562
    %v3666 = vpop.f32.mrb[0].mxu0
    %v3667 = vadd.f32 %v3541, %v3666
    %v3668 = vpop.f32.mrb[0].mxu0
    %3669 = vmatprep.mubr.f32.mxu0 0.0
    %3670 = vmatmul.mubr.f32.gmra.mrb[0].mxu0 %v3565
    %v3671 = vpop.f32.mrb[0].mxu0
    %v3672 = vadd.f32 %v3542, %v3671
    %v3673 = vpop.f32.mrb[0].mxu0
    %3674 = vdwg.mxu0
    %v3675 = vmul.f32 %v3637, 0.5
    %v3676 = vmul.f32 %v3642, 0.5
    %v3677 = vmul.f32 %v3647, 0.5
    %v3678 = vmul.f32 %v3652, 0.5
    %v3679 = vmul.f32 %v3657, 0.5
    %v3680 = vmul.f32 %v3662, 0.5
    %v3681 = vmul.f32 %v3667, 0.5
    %v3682 = vmul.f32 %v3672, 0.5
    %v3683 = vtanh.pop %v3675
    %v3684 = vtanh.pop %v3676
    %v3685 = vtanh.pop %v3677
    %v3686 = vtanh.pop %v3678
    %v3687 = vtanh.pop %v3679
    %v3688 = vtanh.pop %v3680
    %v3689 = vtanh.pop %v3681
    %v3690 = vtanh.pop %v3682
    %v3691 = vadd.f32 %v3683, 1.0
    %v3692 = vadd.f32 %v3684, 1.0
    %v3693 = vadd.f32 %v3685, 1.0
    %v3694 = vadd.f32 %v3686, 1.0
    %v3695 = vadd.f32 %v3687, 1.0
    %v3696 = vadd.f32 %v3688, 1.0
    %v3697 = vadd.f32 %v3689, 1.0
    %v3698 = vadd.f32 %v3690, 1.0
    %v3699 = vmul.f32 %v3691, 0.5
    %v3700 = vmul.f32 %v3692, 0.5
    %v3701 = vmul.f32 %v3693, 0.5
    %v3702 = vmul.f32 %v3694, 0.5
    %v3703 = vmul.f32 %v3695, 0.5
    %v3704 = vmul.f32 %v3696, 0.5
    %v3705 = vmul.f32 %v3697, 0.5
    %v3706 = vmul.f32 %v3698, 0.5
    %3708 = vset.pattern.permute.xlu0 0
    %3709 = vperm.xlu0 %3708, %v3699
    %v3710 = vpop.permute.xlu0 %3709
    %3713 = vset.pattern.permute.xlu0 0
    %3714 = vperm.xlu0 %3713, %v3700
    %v3715 = vpop.permute.xlu0 %3714
    %3718 = vset.pattern.permute.xlu0 0
    %3719 = vperm.xlu0 %3718, %v3701
    %v3720 = vpop.permute.xlu0 %3719
    %3723 = vset.pattern.permute.xlu0 0
    %3724 = vperm.xlu0 %3723, %v3702
    %v3725 = vpop.permute.xlu0 %3724
    %3728 = vset.pattern.permute.xlu0 0
    %3729 = vperm.xlu0 %3728, %v3703
    %v3730 = vpop.permute.xlu0 %3729
    %3733 = vset.pattern.permute.xlu0 0
    %3734 = vperm.xlu0 %3733, %v3704
    %v3735 = vpop.permute.xlu0 %3734
    %3738 = vset.pattern.permute.xlu0 0
    %3739 = vperm.xlu0 %3738, %v3705
    %v3740 = vpop.permute.xlu0 %3739
    %3743 = vset.pattern.permute.xlu0 0
    %3744 = vperm.xlu0 %3743, %v3706
    %v3745 = vpop.permute.xlu0 %3744
    %v3747 = vmul.f32 %v3399, %v3710
    %v3748 = vmul.f32 %v3400, %v3710
    %v3749 = vmul.f32 %v3401, %v3715
    %v3750 = vmul.f32 %v3402, %v3715
    %v3751 = vmul.f32 %v3403, %v3720
    %v3752 = vmul.f32 %v3404, %v3720
    %v3753 = vmul.f32 %v3405, %v3725
    %v3754 = vmul.f32 %v3406, %v3725
    %v3755 = vmul.f32 %v3407, %v3730
    %v3756 = vmul.f32 %v3408, %v3730
    %v3757 = vmul.f32 %v3409, %v3735
    %v3758 = vmul.f32 %v3410, %v3735
    %v3759 = vmul.f32 %v3411, %v3740
    %v3760 = vmul.f32 %v3412, %v3740
    %v3761 = vmul.f32 %v3413, %v3745
    %v3762 = vmul.f32 %v3414, %v3745
    %3763 = vmatprep.subr.mxu0 %v3748
    %3764 = vmatpush1.msra.mxu0 %v3747
    %3765 = vmatprep.subr.mxu0 %v3750
    %3766 = vmatpush1.msra.mxu0 %v3749
    %3767 = vmatprep.subr.mxu0 %v3752
    %3768 = vmatpush1.msra.mxu0 %v3751
    %3769 = vmatprep.subr.mxu0 %v3754
    %3770 = vmatpush1.msra.mxu0 %v3753
    %3771 = vmatprep.subr.mxu0 %v3756
    %3772 = vmatpush1.msra.mxu0 %v3755
    %3773 = vmatprep.subr.mxu0 %v3758
    %3774 = vmatpush1.msra.mxu0 %v3757
    %3775 = vmatprep.subr.mxu0 %v3760
    %3776 = vmatpush1.msra.mxu0 %v3759
    %3777 = vmatprep.subr.mxu0 %v3762
    %3778 = vmatpush1.msra.mxu0 %v3761
    %3779 = vmatprep.subr.mxu0 0.0
    %3780 = vmatpush1.msra.mxu0 0.0
    %3781 = vmatprep.subr.mxu0 0.0
    %3782 = vmatpush1.msra.mxu0 0.0
    %3783 = vmatprep.subr.mxu0 0.0
    %3784 = vmatpush1.msra.mxu0 0.0
    %3785 = vmatprep.subr.mxu0 0.0
    %3786 = vmatpush1.msra.mxu0 0.0
    %3787 = vmatprep.subr.mxu0 0.0
    %3788 = vmatpush1.msra.mxu0 0.0
    %3789 = vmatprep.subr.mxu0 0.0
    %3790 = vmatpush1.msra.mxu0 0.0
    %3791 = vmatprep.subr.mxu0 0.0
    %3792 = vmatpush1.msra.mxu0 0.0
    %3793 = vmatprep.subr.mxu0 0.0
    %3794 = vmatpush1.msra.mxu0 0.0
    %3795 = vmatprep.subr.mxu0 0.0
    %3796 = vmatpush1.msra.mxu0 0.0
    %3797 = vmatprep.subr.mxu0 0.0
    %3798 = vmatpush1.msra.mxu0 0.0
    %3799 = vmatprep.subr.mxu0 0.0
    %3800 = vmatpush1.msra.mxu0 0.0
    %3801 = vmatprep.subr.mxu0 0.0
    %3802 = vmatpush1.msra.mxu0 0.0
    %3803 = vmatprep.subr.mxu0 0.0
    %3804 = vmatpush1.msra.mxu0 0.0
    %3805 = vmatprep.subr.mxu0 0.0
    %3806 = vmatpush1.msra.mxu0 0.0
    %3807 = vmatprep.subr.mxu0 0.0
    %3808 = vmatpush1.msra.mxu0 0.0
    %3809 = vmatprep.subr.mxu0 0.0
    %3810 = vmatpush1.msra.mxu0 0.0
    %3811 = vmatprep.subr.mxu0 0.0
    %3812 = vmatpush1.msra.mxu0 0.0
    %3813 = vmatprep.subr.mxu0 0.0
    %3814 = vmatpush1.msra.mxu0 0.0
    %3815 = vmatprep.subr.mxu0 0.0
    %3816 = vmatpush1.msra.mxu0 0.0
    %3817 = vmatprep.subr.mxu0 0.0
    %3818 = vmatpush1.msra.mxu0 0.0
    %3819 = vmatprep.subr.mxu0 0.0
    %3820 = vmatpush1.msra.mxu0 0.0
    %3821 = vmatprep.subr.mxu0 0.0
    %3822 = vmatpush1.msra.mxu0 0.0
    %3823 = vmatprep.subr.mxu0 0.0
    %3824 = vmatpush1.msra.mxu0 0.0
    %3825 = vmatprep.subr.mxu0 0.0
    %3826 = vmatpush1.msra.mxu0 0.0
    %3827 = vmatprep.mubr.f32.mxu0 0.0
    %3828 = vmatmul.mubr.f32.gmra.mrb[0].mxu0 %v2167
    %v3829 = vpop.f32.mrb[0].mxu0
    %v3830 = vadd.f32 %v2159, %v3829
    %v3831 = vpop.f32.mrb[0].mxu0
    %v3832 = vadd.f32 %v2159, %v3831
    %3833 = vmatprep.mubr.f32.mxu0 0.0
    %3834 = vmatmul.mubr.f32.gmra.mrb[0].mxu0 %v2170
    %v3835 = vpop.f32.mrb[0].mxu0
    %v3836 = vadd.f32 %v2164, %v3835
    %v3837 = vpop.f32.mrb[0].mxu0
    %v3838 = vadd.f32 %v2164, %v3837
    %3839 = vdwg.mxu0
    %v3840 = vadd.f32 %v3830, %v2258
    %v3841 = vadd.f32 %v3832, %v2259
    %v3842 = vadd.f32 %v3836, %v2260
    %v3843 = vadd.f32 %v3838, %v2261
    %s3844 = scalar_lea.vmem [#allocation2], 32
    %3845 = vst [vmem:[%s3844] sm:$0xff] %v3840
    %3846 = vst [vmem:[%s3844 + $0x8] sm:$0xff] %v3841
    %3847 = vst [vmem:[%s3844 + $0x10] sm:$0xff] %v3842
    %3848 = vst [vmem:[%s3844 + $0x18] sm:$0xff] %v3843
    // Predicated region
    $region50: #{tpu_custom_call.1} parent=1 // pred_check
      _
    $region51: #{tpu_custom_call.1} parent=1 // pred_check_branch
      %3850 = sbr.rel (0) target = $region53
    $region52: #{tpu_custom_call.1} parent=1 // pred_region
      %s3852 = ssub.s32 1024, 1024
      %3853 = vsyncadd [#allocation3], %s3852
      %s3854 = sshll.u32 [#allocation2], 4
      %s3855 = int_to_ptr.vmem [resolvable:$true] %s3854
      %3860 = dma.vmem_to_hbm [thread:$0]  %s3855, 1024, %s12, [#allocation3], 256, 256, 16
    $region53: #{tpu_custom_call.1} parent=1 // pred_fallthru
      _
    // Predicated region
    $region54: #{tpu_custom_call.1} parent=1 // pred_check
      _
    $region55: #{tpu_custom_call.1} parent=1 // pred_check_branch
      %3862 = sbr.rel (0) target = $region57
    $region56: #{tpu_custom_call.1} parent=1 // pred_region
      %3863 = dma.done [#allocation3], 1024
    $region57: #{tpu_custom_call.1} parent=1 // pred_fallthru
      _
    %3864 = vsyncpa [#allocation3], 1

</llo_original>
